<compile_context>
chip_gen: v5e
topology: v5e:2x2
jax: 0.10.0
libtpu: 0.0.40
codegen_flags: <defaults>
</compile_context>

<pallas_src>
import functools

import numpy as np
import jax
import jax.numpy as jnp
from jax import lax
from jax.experimental import pallas as pl
from jax.experimental.pallas import tpu as pltpu

VMEM = pltpu.MemorySpace.VMEM


def _vmem_specs(n):
    return [pl.BlockSpec(memory_space=VMEM) for _ in range(n)]


# ---------------------------------------------------------------------------
# Kernel 1: fused modality projection + BN01 + ReLU + per-node EdgeConv lin-1
#           (channel-major [C, T], frame axis padded to 128 lanes)
# ---------------------------------------------------------------------------
def _input_proj_kernel(x_ref, wp_ref, bp_ref, s_ref, t_ref, wpre_ref, bpre_ref, o_ref):
    # h = relu(bn01(W_proj @ x + b))  (modality projections collapsed into one dot)
    x = x_ref[...].astype(jnp.bfloat16)
    h = jnp.dot(wp_ref[...], x, preferred_element_type=jnp.float32) + bp_ref[...]
    h = jnp.maximum(h * s_ref[...] + t_ref[...], 0.0)
    # per-node EdgeConv first-layer projections for all 3 branches, [6*c0, T]
    o_ref[...] = (jnp.dot(wpre_ref[...], h.astype(jnp.bfloat16),
                          preferred_element_type=jnp.float32) + bpre_ref[...])


def input_proj(x_cm, fp):
    k = fp["w_pre"].shape[0]
    t = x_cm.shape[1]
    return pl.pallas_call(
        _input_proj_kernel,
        out_shape=jax.ShapeDtypeStruct((k, t), jnp.float32),
        in_specs=_vmem_specs(7),
        out_specs=pl.BlockSpec(memory_space=VMEM),
    )(x_cm, fp["w_proj"], fp["b_proj"], fp["s01"], fp["t01"],
      fp["w_pre"], fp["b_pre"])


# ---------------------------------------------------------------------------
# Kernel 2: fused per-branch graph stage, grid=(3,), per-branch partial outputs
#   branch k: BN1k+ReLU -> SAGE21 (shared W) -> BN21+ReLU -> SAGE3k
#   SAGE mean aggregation = transposed row-normalised dense adjacency matmul.
#   The Wl/Wr dot pair of each SAGE layer is fused into one [*, 2C] dot.
# ---------------------------------------------------------------------------
def _branch_kernel(y_ref, adjT_ref, s1_ref, t1_ref, w21_ref, bl21_ref,
                   s21_ref, t21_ref, w3_ref, bl3_ref, o_ref):
    y = jnp.maximum(y_ref[0] * s1_ref[0] + t1_ref[0], 0.0)              # [c0, T]
    adjT = adjT_ref[0]                                                   # [T, T] bf16
    agg = jnp.dot(y.astype(jnp.bfloat16), adjT,
                  preferred_element_type=jnp.float32)                    # mean agg
    z = (jnp.dot(w21_ref[...],
                 jnp.concatenate([agg, y], axis=0).astype(jnp.bfloat16),
                 preferred_element_type=jnp.float32) + bl21_ref[...])    # SAGE21
    z = jnp.maximum(z * s21_ref[...] + t21_ref[...], 0.0)                # BN21+ReLU
    agg2 = jnp.dot(z.astype(jnp.bfloat16), adjT,
                   preferred_element_type=jnp.float32)
    o_ref[0] = (jnp.dot(w3_ref[0],
                        jnp.concatenate([agg2, z], axis=0).astype(jnp.bfloat16),
                        preferred_element_type=jnp.float32) + bl3_ref[0])  # SAGE3k


def branch_stage(y_stack, adj_stack, fp):
    nb, c0, t = y_stack.shape
    c1 = fp["w21"].shape[0]
    d = fp["w3"].shape[1]
    bmap = lambda b: (b, 0, 0)
    smap = lambda b: (0, 0)
    return pl.pallas_call(
        _branch_kernel,
        out_shape=jax.ShapeDtypeStruct((nb, d, t), jnp.float32),
        grid=(nb,),
        in_specs=[
            pl.BlockSpec((1, c0, t), bmap),       # EdgeConv outputs per branch
            pl.BlockSpec((1, t, t), bmap),        # adjacency^T per branch (bf16)
            pl.BlockSpec((1, c0, 1), bmap),       # bn1k scale
            pl.BlockSpec((1, c0, 1), bmap),       # bn1k shift
            pl.BlockSpec((c1, 2 * c0), smap),     # fused sage21 [Wl|Wr]^T (shared)
            pl.BlockSpec((c1, 1), smap),          # sage21 bias
            pl.BlockSpec((c1, 1), smap),          # bn21 scale
            pl.BlockSpec((c1, 1), smap),          # bn21 shift
            pl.BlockSpec((1, d, 2 * c1), bmap),   # fused sage3k [Wl|Wr]^T
            pl.BlockSpec((1, d, 1), bmap),        # sage3k bias
        ],
        out_specs=pl.BlockSpec((1, d, t), bmap),
        # independent branches -> "parallel": megacore-splittable on v7x.
        compiler_params=pltpu.CompilerParams(dimension_semantics=("parallel",)),
    )(y_stack, adj_stack, fp["s1"], fp["t1"], fp["w21"], fp["bl21"],
      fp["s21"], fp["t21"], fp["w3"], fp["bl3"])


# ---------------------------------------------------------------------------
# Kernel 3: both Refinement heads fused into one call, grid=(2,)
#   softmax(ch) -> conv1x1_in -> 10 x DilatedResidualLayer -> conv1x1_out
#   Layout [C, Tpad] (Tpad multiple of 128).  Temporal shifts = pltpu.roll on
#   the XLU + explicit lane masks (reproduces Conv1d zero padding, including
#   the wrapped lanes).  The three tap matmuls are fused into one K=3C dot.
#   The running activation is carried across heads in a VMEM scratch.
# ---------------------------------------------------------------------------
def _refine_kernel(x_ref, w_in_ref, b_in_ref, wkc_ref, wk1_ref, b3_ref,
                   w1_ref, b1_ref, w_out_ref, b_out_ref, o_ref, carry_ref,
                   *, t_valid, n_layers):
    tpad = carry_ref.shape[1]

    @pl.when(pl.program_id(0) == 0)
    def _():
        carry_ref[...] = x_ref[...]          # head 1 consumes xr0; head 2 the carry

    x = carry_ref[...]
    # channel softmax (== torch.softmax(x[1, C, T], dim=1)); EUP reciprocal
    m = jnp.max(x, axis=0, keepdims=True)
    e = jnp.exp(x - m)
    sm = e * pl.reciprocal(jnp.sum(e, axis=0, keepdims=True), approx=True)

    col = lax.broadcasted_iota(jnp.int32, (1, tpad), 1)
    valid = col < t_valid

    f = (jnp.dot(w_in_ref[0], sm.astype(jnp.bfloat16),
                 preferred_element_type=jnp.float32) + b_in_ref[0])
    f = jnp.where(valid, f, 0.0)             # padded frames stay exactly zero

    for i in range(n_layers):
        d = 2 ** i
        if d < t_valid:
            # roll(f, d)[:, t] = f[:, t-d]; mask the d wrapped leading lanes.
            f_m = jnp.where(col >= d, pltpu.roll(f, d, axis=1), 0.0)
            # roll(f, T-d)[:, t] = f[:, t+d]; mask the d wrapped trailing lanes.
            f_p = jnp.where(col < tpad - d, pltpu.roll(f, tpad - d, axis=1), 0.0)
            taps = jnp.concatenate([f_m, f, f_p], axis=0).astype(jnp.bfloat16)
            y = (jnp.dot(wkc_ref[0, i], taps,
                         preferred_element_type=jnp.float32) + b3_ref[0, i])
        else:
            # dilation >= num valid frames -> both side taps only see zero padding
            y = (jnp.dot(wk1_ref[0, i], f.astype(jnp.bfloat16),
                         preferred_element_type=jnp.float32) + b3_ref[0, i])
        y = jnp.maximum(y, 0.0)
        z = (jnp.dot(w1_ref[0, i], y.astype(jnp.bfloat16),
                     preferred_element_type=jnp.float32) + b1_ref[0, i])
        f = jnp.where(valid, f + z, 0.0)      # residual add (+dropout=id), re-zero pad

    out = (jnp.dot(w_out_ref[0], f.astype(jnp.bfloat16),
                   preferred_element_type=jnp.float32) + b_out_ref[0])
    o_ref[0] = out
    carry_ref[...] = out                      # feeds the next head's softmax


def refinement_heads(x_ct, rp, t_valid):
    nh, interm, d_out = rp["w_in"].shape
    nl = rp["wkc"].shape[1]
    tpad = x_ct.shape[1]
    hmap3 = lambda b: (b, 0, 0)
    hmap4 = lambda b: (b, 0, 0, 0)
    return pl.pallas_call(
        functools.partial(_refine_kernel, t_valid=t_valid, n_layers=nl),
        out_shape=jax.ShapeDtypeStruct((nh, d_out, tpad), jnp.float32),
        grid=(nh,),
        in_specs=[
            pl.BlockSpec((d_out, tpad), lambda b: (0, 0)),       # xr0 (head 0 only)
            pl.BlockSpec((1, interm, d_out), hmap3),             # w_in
            pl.BlockSpec((1, interm, 1), hmap3),                 # b_in
            pl.BlockSpec((1, nl, interm, 3 * interm), hmap4),    # [wk0|wk1|wk2]
            pl.BlockSpec((1, nl, interm, interm), hmap4),        # wk1 (center only)
            pl.BlockSpec((1, nl, interm, 1), hmap4),             # b3
            pl.BlockSpec((1, nl, interm, interm), hmap4),        # w1
            pl.BlockSpec((1, nl, interm, 1), hmap4),             # b1
            pl.BlockSpec((1, d_out, interm), hmap3),             # w_out
            pl.BlockSpec((1, d_out, 1), hmap3),                  # b_out
        ],
        out_specs=pl.BlockSpec((1, d_out, tpad), hmap3),
        scratch_shapes=[pltpu.VMEM((d_out, tpad), jnp.float32)],
        compiler_params=pltpu.CompilerParams(dimension_semantics=("arbitrary",)),
    )(x_ct, rp["w_in"], rp["b_in"], rp["wkc"], rp["wk1"], rp["b3"],
      rp["w1"], rp["b1"], rp["w_out"], rp["b_out"])


# ---------------------------------------------------------------------------
# Forward pass (jitted)
# ---------------------------------------------------------------------------
@jax.jit
def spell_forward(fp, x, ei_f, ei_b, ei_a):
    n = x.shape[0]
    c0 = fp["s01"].shape[0]
    tpad = max(128, ((n + 127) // 128) * 128)   # node/frame axis -> lane-dense

    # channel-major input, node axis zero-padded ONCE to a multiple of 128
    x_cm = jnp.pad(x.T, ((0, 0), (0, tpad - n)))                      # [feat, T]

    # fused input projection + BN01 + ReLU + per-node EdgeConv linear-1
    ab_cm = input_proj(x_cm, fp)                                       # [6c0, T]
    ab = ab_cm.T                                                       # [T, 6c0]

    edge_sets = (ei_f, ei_b, ei_a)
    y_list, adj_list = [], []
    for k, ei in enumerate(edge_sets):
        src, dst = ei[0], ei[1]
        a_k = ab[:, 2 * k * c0:(2 * k + 1) * c0]        # applies to x_i = x[dst]
        b_k = ab[:, (2 * k + 1) * c0:(2 * k + 2) * c0]  # applies to x_j = x[src]
        pre = a_k[dst] + b_k[src]                       # [E_k, c0] gather glue
        # EdgeConv ReLU + second linear: tiny (E~100, 32x32) -> plain XLA dot,
        # fused with the surrounding gathers (removes 3 launch-bound pallas_calls).
        msg = jnp.maximum(pre, 0.0) @ fp["w2"][k] + fp["b2"][k]
        # TODO(synk): scatter-max aggregation has no clean Pallas/matmul form on
        # TPU; jax.ops.segment_max with the PyG empty-group -> 0 convention.
        agg = jax.ops.segment_max(msg, dst, num_segments=tpad)
        cnt = jnp.zeros((tpad, 1), jnp.float32).at[dst].add(1.0)
        y_list.append(jnp.where(cnt > 0, agg, 0.0).T)                  # [c0, T]
        # transposed row-normalised adjacency, built ONCE per edge subset and
        # reused for both SAGE layers; bf16 halves VMEM/DMA bytes.  (For large
        # N this block should be row-tiled instead of whole-N resident.)
        a_cnt = jnp.zeros((tpad, tpad), jnp.float32).at[src, dst].add(1.0)
        deg = jnp.maximum(jnp.sum(a_cnt, axis=0, keepdims=True), 1.0)
        adj_list.append((a_cnt / deg).astype(jnp.bfloat16))

    y_stack = jnp.stack(y_list)                                        # [3, c0, T]
    adj_stack = jnp.stack(adj_list)                                    # [3, T, T]

    # per-branch partial outputs ("parallel" grid axis), summed in XLA
    parts = branch_stage(y_stack, adj_stack, fp)                       # [3, d, T]
    xr0 = jnp.sum(parts, axis=0)                                       # [d, T] (= padded out^T)

    # both refinement heads in one grid=(2,) call (VMEM-carried activation)
    xr12 = refinement_heads(xr0, fp["ref"], n)                         # [2, d, T]

    # reference stacks (xr0, xr1, xr2, xr2); xr3 is dead -> never computed
    stacked = jnp.stack([xr0, xr12[0], xr12[1], xr12[1]], axis=0)[:, :, :n]
    return jnp.transpose(stacked, (0, 2, 1))                           # [4, N, d]


# ---------------------------------------------------------------------------
# Parameter init (natural per-module layout) + host-side fusion/stacking
# ---------------------------------------------------------------------------
def init_params(key, cfg, feat_dim, interm_dim=64, num_ref_layers=10):
    c0, c1 = cfg["channel1"], cfg["channel2"]
    d = cfg["final_dim"]
    half = feat_dim // cfg["num_modality"]
    keys = iter(jax.random.split(key, 512))

    def nrm(shape, scale=0.1):
        return scale * jax.random.normal(next(keys), shape, jnp.float32)

    def bn(c):
        gamma = 1.0 + nrm((1, c))
        beta = nrm((1, c))
        mean = nrm((1, c))
        var = 1.0 + jnp.abs(nrm((1, c)))
        scale = gamma / jnp.sqrt(var + 1e-5)
        shift = beta - mean * scale
        return scale, shift

    def edge_p():
        return dict(w1=nrm((2 * c0, c0)), b1=nrm((1, c0)),
                    w2=nrm((c0, c0)), b2=nrm((1, c0)))

    def sage_p(cin, cout):
        return dict(wl=nrm((cin, cout)), bl=nrm((1, cout)), wr=nrm((cin, cout)))

    def ref_p():
        layers = [dict(wk0=nrm((interm_dim, interm_dim)),
                       wk1=nrm((interm_dim, interm_dim)),
                       wk2=nrm((interm_dim, interm_dim)),
                       b3=nrm((interm_dim, 1)),
                       w1=nrm((interm_dim, interm_dim)),
                       b1=nrm((interm_dim, 1)))
                  for _ in range(num_ref_layers)]
        return dict(w_in=nrm((interm_dim, d)), b_in=nrm((interm_dim, 1)),
                    layers=layers,
                    w_out=nrm((d, interm_dim)), b_out=nrm((d, 1)))

    p = {}
    p["w011"], p["b011"] = nrm((half, c0)), nrm((1, c0))
    p["w012"], p["b012"] = nrm((feat_dim - half, c0)), nrm((1, c0))
    p["bn01_s"], p["bn01_t"] = bn(c0)
    p["edge11"], (p["bn11_s"], p["bn11_t"]) = edge_p(), bn(c0)
    p["edge12"], (p["bn12_s"], p["bn12_t"]) = edge_p(), bn(c0)
    p["edge13"], (p["bn13_s"], p["bn13_t"]) = edge_p(), bn(c0)
    p["sage21"] = sage_p(c0, c1)
    p["bn21_s"], p["bn21_t"] = bn(c1)
    p["sage31"] = sage_p(c1, d)
    p["sage32"] = sage_p(c1, d)
    p["sage33"] = sage_p(c1, d)
    p["ref1"], p["ref2"], p["ref3"] = ref_p(), ref_p(), ref_p()
    return p


def fuse_params(p, cfg):
    c0 = cfg["channel1"]
    bf = jnp.bfloat16
    fp = {}

    # collapsed modality projections (+ folded BN01), channel-major, bf16 MXU weights
    w_proj = jnp.concatenate([p["w011"], p["w012"]], axis=0)           # [feat, c0]
    fp["w_proj"] = w_proj.T.astype(bf)                                  # [c0, feat]
    fp["b_proj"] = (p["b011"] + p["b012"]).T                            # [c0, 1]
    fp["s01"], fp["t01"] = p["bn01_s"].T, p["bn01_t"].T                 # [c0, 1]

    # EdgeConv linear-1 hoisted to per-node form; bias folded into the x_i block
    pre_w, pre_b = [], []
    for nm in ("edge11", "edge12", "edge13"):
        w1 = p[nm]["w1"]                       # [2*c0, c0]
        w1a, w1b = w1[:c0], w1[c0:]
        pre_w += [w1a - w1b, w1b]              # x_i block / x_j block
        pre_b += [p[nm]["b1"], jnp.zeros_like(p[nm]["b1"])]
    fp["w_pre"] = jnp.concatenate(pre_w, axis=1).T.astype(bf)           # [6c0, c0]
    fp["b_pre"] = jnp.concatenate(pre_b, axis=1).T                      # [6c0, 1]
    fp["w2"] = [p[nm]["w2"] for nm in ("edge11", "edge12", "edge13")]
    fp["b2"] = [p[nm]["b2"] for nm in ("edge11", "edge12", "edge13")]

    # branch-fused graph stage (channel-major, fused [Wl|Wr] SAGE weights)
    fp["s1"] = jnp.stack([p["bn11_s"].T, p["bn12_s"].T, p["bn13_s"].T])  # [3,c0,1]
    fp["t1"] = jnp.stack([p["bn11_t"].T, p["bn12_t"].T, p["bn13_t"].T])
    fp["w21"] = jnp.concatenate([p["sage21"]["wl"], p["sage21"]["wr"]],
                                axis=0).T.astype(bf)                     # [c1, 2c0]
    fp["bl21"] = p["sage21"]["bl"].T                                     # [c1, 1]
    fp["s21"], fp["t21"] = p["bn21_s"].T, p["bn21_t"].T
    fp["w3"] = jnp.stack(
        [jnp.concatenate([p[nm]["wl"], p[nm]["wr"]], axis=0).T
         for nm in ("sage31", "sage32", "sage33")]).astype(bf)           # [3, d, 2c1]
    fp["bl3"] = jnp.stack(
        [p[nm]["bl"].T for nm in ("sage31", "sage32", "sage33")])        # [3, d, 1]

    # refinement heads: stack the 2 live heads; pre-concat the 3 tap weights
    def head(rp):
        L = rp["layers"]
        return dict(
            w_in=rp["w_in"].astype(bf), b_in=rp["b_in"],
            wkc=jnp.stack([jnp.concatenate([l["wk0"], l["wk1"], l["wk2"]], axis=1)
                           for l in L]).astype(bf),                      # [nl, C, 3C]
            wk1=jnp.stack([l["wk1"] for l in L]).astype(bf),             # [nl, C, C]
            b3=jnp.stack([l["b3"] for l in L]),
            w1=jnp.stack([l["w1"] for l in L]).astype(bf),
            b1=jnp.stack([l["b1"] for l in L]),
            w_out=rp["w_out"].astype(bf), b_out=rp["b_out"])
    h1, h2 = head(p["ref1"]), head(p["ref2"])
    fp["ref"] = {k: jnp.stack([h1[k], h2[k]], axis=0) for k in h1}
    # p["ref3"] feeds only the dead xr3 branch -> not needed at inference
    return fp


# ---------------------------------------------------------------------------
# Main
# ---------------------------------------------------------------------------
if __name__ == "__main__":
    cfg = dict(use_spf=False, use_ref=True, num_modality=2,
               channel1=32, channel2=32, final_dim=16,
               num_att_heads=0, dropout=0.2)

    num_nodes = 24
    feat_dim = 32

    key = jax.random.PRNGKey(0)
    k_x, k_p = jax.random.split(key)
    x = jax.random.normal(k_x, (num_nodes, feat_dim), jnp.float32)

    # simple temporal graph: edges to neighbors within distance 2 plus self loops;
    # edge_attr = sign of the temporal offset (drives the f/b/all split).
    src_l, dst_l, attr_l = [], [], []
    for i in range(num_nodes):
        for off in (-2, -1, 0, 1, 2):
            j = i + off
            if 0 <= j < num_nodes:
                src_l.append(i)
                dst_l.append(j)
                attr_l.append(float(np.sign(off)))
    edge_index = np.stack([np.array(src_l, np.int32), np.array(dst_l, np.int32)], axis=0)
    edge_attr = np.array(attr_l, np.float32)

    # static host-side edge-subset split (boolean masks -> dynamic shapes, so
    # this stays outside jit; self loops appear in both f and b as in the ref).
    ei_f = jnp.asarray(edge_index[:, edge_attr <= 0])
    ei_b = jnp.asarray(edge_index[:, edge_attr >= 0])
    ei_a = jnp.asarray(edge_index)

    params = init_params(k_p, cfg, feat_dim)
    fparams = fuse_params(params, cfg)

    out = spell_forward(fparams, x, ei_f, ei_b, ei_a)
    out = jax.block_until_ready(out)
    assert out.shape == (4, num_nodes, cfg["final_dim"]), out.shape
    assert bool(jnp.all(jnp.isfinite(out)))
    print("KERNEL_OK")
</pallas_src>

<mosaic_0001>
module attributes {stable_mosaic.version = 11 : i64} {
  func.func @_input_proj_kernel(%arg0: memref<32x128xf32, #tpu.memory_space<vmem>>, %arg1: memref<32x32xbf16, #tpu.memory_space<vmem>>, %arg2: memref<32x1xf32, #tpu.memory_space<vmem>>, %arg3: memref<32x1xf32, #tpu.memory_space<vmem>>, %arg4: memref<32x1xf32, #tpu.memory_space<vmem>>, %arg5: memref<192x32xbf16, #tpu.memory_space<vmem>>, %arg6: memref<192x1xf32, #tpu.memory_space<vmem>>, %arg7: memref<192x128xf32, #tpu.memory_space<vmem>>) attributes {dimension_semantics = [], scalar_prefetch = 0 : i64, scratch_operands = 0 : i64, tpu.core_type = #tpu.core_type<tc>} {
    %c0 = arith.constant 0 : index
    %c0_0 = arith.constant 0 : index
    %0 = vector.load %arg0[%c0, %c0_0] : memref<32x128xf32, #tpu.memory_space<vmem>>, vector<32x128xf32>
    %1 = arith.truncf %0 : vector<32x128xf32> to vector<32x128xbf16>
    %c0_1 = arith.constant 0 : index
    %c0_2 = arith.constant 0 : index
    %2 = vector.load %arg1[%c0_1, %c0_2] : memref<32x32xbf16, #tpu.memory_space<vmem>>, vector<32x32xbf16>
    %cst = arith.constant dense<0.000000e+00> : vector<32x128xf32>
    %3 = tpu.matmul %2, %1, %cst {dimension_numbers = #tpu.dot_dimension_numbers<[1], [0], [0], [1], [0, 0, 1, 1], [], []>} : vector<32x32xbf16>, vector<32x128xbf16>, vector<32x128xf32> -> vector<32x128xf32>
    %c0_3 = arith.constant 0 : index
    %c0_4 = arith.constant 0 : index
    %4 = vector.load %arg2[%c0_3, %c0_4] : memref<32x1xf32, #tpu.memory_space<vmem>>, vector<32x1xf32>
    %5 = vector.broadcast %4 : vector<32x1xf32> to vector<32x128xf32>
    %6 = arith.addf %3, %5 : vector<32x128xf32>
    %c0_5 = arith.constant 0 : index
    %c0_6 = arith.constant 0 : index
    %7 = vector.load %arg3[%c0_5, %c0_6] : memref<32x1xf32, #tpu.memory_space<vmem>>, vector<32x1xf32>
    %8 = vector.broadcast %7 : vector<32x1xf32> to vector<32x128xf32>
    %9 = arith.mulf %6, %8 : vector<32x128xf32>
    %c0_7 = arith.constant 0 : index
    %c0_8 = arith.constant 0 : index
    %10 = vector.load %arg4[%c0_7, %c0_8] : memref<32x1xf32, #tpu.memory_space<vmem>>, vector<32x1xf32>
    %11 = vector.broadcast %10 : vector<32x1xf32> to vector<32x128xf32>
    %12 = arith.addf %9, %11 : vector<32x128xf32>
    %cst_9 = arith.constant 0.000000e+00 : f32
    %13 = vector.broadcast %cst_9 : f32 to vector<32x128xf32>
    %14 = arith.maximumf %12, %13 : vector<32x128xf32>
    %c0_10 = arith.constant 0 : index
    %c0_11 = arith.constant 0 : index
    %15 = vector.load %arg5[%c0_10, %c0_11] : memref<192x32xbf16, #tpu.memory_space<vmem>>, vector<192x32xbf16>
    %16 = arith.truncf %14 : vector<32x128xf32> to vector<32x128xbf16>
    %cst_12 = arith.constant dense<0.000000e+00> : vector<192x128xf32>
    %17 = tpu.matmul %15, %16, %cst_12 {dimension_numbers = #tpu.dot_dimension_numbers<[1], [0], [0], [1], [0, 0, 1, 1], [], []>} : vector<192x32xbf16>, vector<32x128xbf16>, vector<192x128xf32> -> vector<192x128xf32>
    %c0_13 = arith.constant 0 : index
    %c0_14 = arith.constant 0 : index
    %18 = vector.load %arg6[%c0_13, %c0_14] : memref<192x1xf32, #tpu.memory_space<vmem>>, vector<192x1xf32>
    %19 = vector.broadcast %18 : vector<192x1xf32> to vector<192x128xf32>
    %20 = arith.addf %17, %19 : vector<192x128xf32>
    %c0_15 = arith.constant 0 : index
    %c0_16 = arith.constant 0 : index
    %21 = vector.load %arg7[%c0_15, %c0_16] : memref<192x128xf32, #tpu.memory_space<vmem>>, vector<192x128xf32>
    tpu.vector_store %arg7[%c0_15, %c0_16], %20 {strides = array<i32>} : memref<192x128xf32, #tpu.memory_space<vmem>>, vector<192x128xf32>,
    return
  }
}

module attributes {stable_mosaic.version = 11 : i64} {
  func.func @_branch_kernel(%arg0: i32, %arg1: memref<1x32x128xf32, #tpu.memory_space<vmem>>, %arg2: memref<1x128x128xbf16, #tpu.memory_space<vmem>>, %arg3: memref<1x32x1xf32, #tpu.memory_space<vmem>>, %arg4: memref<1x32x1xf32, #tpu.memory_space<vmem>>, %arg5: memref<32x64xbf16, #tpu.memory_space<vmem>>, %arg6: memref<32x1xf32, #tpu.memory_space<vmem>>, %arg7: memref<32x1xf32, #tpu.memory_space<vmem>>, %arg8: memref<32x1xf32, #tpu.memory_space<vmem>>, %arg9: memref<1x16x64xbf16, #tpu.memory_space<vmem>>, %arg10: memref<1x16x1xf32, #tpu.memory_space<vmem>>, %arg11: memref<1x16x128xf32, #tpu.memory_space<vmem>>) attributes {dimension_semantics = [#tpu.dimension_semantics<parallel>], iteration_bounds = array<i64: 3>, scalar_prefetch = 0 : i64, scratch_operands = 0 : i64, tpu.core_type = #tpu.core_type<tc>, window_params = [{transform_indices = @transform_0, window_bounds = array<i64: 1, 32, 128>}, {transform_indices = @transform_1, window_bounds = array<i64: 1, 128, 128>}, {transform_indices = @transform_2, window_bounds = array<i64: 1, 32, 1>}, {transform_indices = @transform_3, window_bounds = array<i64: 1, 32, 1>}, {pipeline_mode = #tpu.pipeline_mode<synchronous>, transform_indices = @transform_4, window_bounds = array<i64: 32, 64>}, {pipeline_mode = #tpu.pipeline_mode<synchronous>, transform_indices = @transform_5, window_bounds = array<i64: 32, 1>}, {pipeline_mode = #tpu.pipeline_mode<synchronous>, transform_indices = @transform_6, window_bounds = array<i64: 32, 1>}, {pipeline_mode = #tpu.pipeline_mode<synchronous>, transform_indices = @transform_7, window_bounds = array<i64: 32, 1>}, {transform_indices = @transform_8, window_bounds = array<i64: 1, 16, 64>}, {transform_indices = @transform_9, window_bounds = array<i64: 1, 16, 1>}, {transform_indices = @transform_10, window_bounds = array<i64: 1, 16, 128>}]} {
    %c0 = arith.constant 0 : index
    %c0_0 = arith.constant 0 : index
    %c0_1 = arith.constant 0 : index
    %0 = vector.load %arg1[%c0, %c0_0, %c0_1] : memref<1x32x128xf32, #tpu.memory_space<vmem>>, vector<1x32x128xf32>
    %1 = vector.shape_cast %0 : vector<1x32x128xf32> to vector<32x128xf32>
    %c0_2 = arith.constant 0 : index
    %c0_3 = arith.constant 0 : index
    %c0_4 = arith.constant 0 : index
    %2 = vector.load %arg3[%c0_2, %c0_3, %c0_4] : memref<1x32x1xf32, #tpu.memory_space<vmem>>, vector<1x32x1xf32>
    %3 = vector.shape_cast %2 : vector<1x32x1xf32> to vector<32x1xf32>
    %4 = vector.broadcast %3 : vector<32x1xf32> to vector<32x128xf32>
    %5 = arith.mulf %1, %4 : vector<32x128xf32>
    %c0_5 = arith.constant 0 : index
    %c0_6 = arith.constant 0 : index
    %c0_7 = arith.constant 0 : index
    %6 = vector.load %arg4[%c0_5, %c0_6, %c0_7] : memref<1x32x1xf32, #tpu.memory_space<vmem>>, vector<1x32x1xf32>
    %7 = vector.shape_cast %6 : vector<1x32x1xf32> to vector<32x1xf32>
    %8 = vector.broadcast %7 : vector<32x1xf32> to vector<32x128xf32>
    %9 = arith.addf %5, %8 : vector<32x128xf32>
    %cst = arith.constant 0.000000e+00 : f32
    %10 = vector.broadcast %cst : f32 to vector<32x128xf32>
    %11 = arith.maximumf %9, %10 : vector<32x128xf32>
    %c0_8 = arith.constant 0 : index
    %c0_9 = arith.constant 0 : index
    %c0_10 = arith.constant 0 : index
    %12 = vector.load %arg2[%c0_8, %c0_9, %c0_10] : memref<1x128x128xbf16, #tpu.memory_space<vmem>>, vector<1x128x128xbf16>
    %13 = vector.shape_cast %12 : vector<1x128x128xbf16> to vector<128x128xbf16>
    %14 = arith.truncf %11 : vector<32x128xf32> to vector<32x128xbf16>
    %cst_11 = arith.constant dense<0.000000e+00> : vector<32x128xf32>
    %15 = tpu.matmul %14, %13, %cst_11 {dimension_numbers = #tpu.dot_dimension_numbers<[1], [0], [0], [1], [0, 0, 1, 1], [], []>} : vector<32x128xbf16>, vector<128x128xbf16>, vector<32x128xf32> -> vector<32x128xf32>
    %c0_12 = arith.constant 0 : index
    %c0_13 = arith.constant 0 : index
    %16 = vector.load %arg5[%c0_12, %c0_13] : memref<32x64xbf16, #tpu.memory_space<vmem>>, vector<32x64xbf16>
    %17 = tpu.concatenate %15, %11 in 0 : vector<32x128xf32>, vector<32x128xf32> -> vector<64x128xf32>
    %18 = arith.truncf %17 : vector<64x128xf32> to vector<64x128xbf16>
    %cst_14 = arith.constant dense<0.000000e+00> : vector<32x128xf32>
    %19 = tpu.matmul %16, %18, %cst_14 {dimension_numbers = #tpu.dot_dimension_numbers<[1], [0], [0], [1], [0, 0, 1, 1], [], []>} : vector<32x64xbf16>, vector<64x128xbf16>, vector<32x128xf32> -> vector<32x128xf32>
    %c0_15 = arith.constant 0 : index
    %c0_16 = arith.constant 0 : index
    %20 = vector.load %arg6[%c0_15, %c0_16] : memref<32x1xf32, #tpu.memory_space<vmem>>, vector<32x1xf32>
    %21 = vector.broadcast %20 : vector<32x1xf32> to vector<32x128xf32>
    %22 = arith.addf %19, %21 : vector<32x128xf32>
    %c0_17 = arith.constant 0 : index
    %c0_18 = arith.constant 0 : index
    %23 = vector.load %arg7[%c0_17, %c0_18] : memref<32x1xf32, #tpu.memory_space<vmem>>, vector<32x1xf32>
    %24 = vector.broadcast %23 : vector<32x1xf32> to vector<32x128xf32>
    %25 = arith.mulf %22, %24 : vector<32x128xf32>
    %c0_19 = arith.constant 0 : index
    %c0_20 = arith.constant 0 : index
    %26 = vector.load %arg8[%c0_19, %c0_20] : memref<32x1xf32, #tpu.memory_space<vmem>>, vector<32x1xf32>
    %27 = vector.broadcast %26 : vector<32x1xf32> to vector<32x128xf32>
    %28 = arith.addf %25, %27 : vector<32x128xf32>
    %cst_21 = arith.constant 0.000000e+00 : f32
    %29 = vector.broadcast %cst_21 : f32 to vector<32x128xf32>
    %30 = arith.maximumf %28, %29 : vector<32x128xf32>
    %31 = arith.truncf %30 : vector<32x128xf32> to vector<32x128xbf16>
    %cst_22 = arith.constant dense<0.000000e+00> : vector<32x128xf32>
    %32 = tpu.matmul %31, %13, %cst_22 {dimension_numbers = #tpu.dot_dimension_numbers<[1], [0], [0], [1], [0, 0, 1, 1], [], []>} : vector<32x128xbf16>, vector<128x128xbf16>, vector<32x128xf32> -> vector<32x128xf32>
    %c0_23 = arith.constant 0 : index
    %c0_24 = arith.constant 0 : index
    %c0_25 = arith.constant 0 : index
    %33 = vector.load %arg9[%c0_23, %c0_24, %c0_25] : memref<1x16x64xbf16, #tpu.memory_space<vmem>>, vector<1x16x64xbf16>
    %34 = vector.shape_cast %33 : vector<1x16x64xbf16> to vector<16x64xbf16>
    %35 = tpu.concatenate %32, %30 in 0 : vector<32x128xf32>, vector<32x128xf32> -> vector<64x128xf32>
    %36 = arith.truncf %35 : vector<64x128xf32> to vector<64x128xbf16>
    %cst_26 = arith.constant dense<0.000000e+00> : vector<16x128xf32>
    %37 = tpu.matmul %34, %36, %cst_26 {dimension_numbers = #tpu.dot_dimension_numbers<[1], [0], [0], [1], [0, 0, 1, 1], [], []>} : vector<16x64xbf16>, vector<64x128xbf16>, vector<16x128xf32> -> vector<16x128xf32>
    %c0_27 = arith.constant 0 : index
    %c0_28 = arith.constant 0 : index
    %c0_29 = arith.constant 0 : index
    %38 = vector.load %arg10[%c0_27, %c0_28, %c0_29] : memref<1x16x1xf32, #tpu.memory_space<vmem>>, vector<1x16x1xf32>
    %39 = vector.shape_cast %38 : vector<1x16x1xf32> to vector<16x1xf32>
    %40 = vector.broadcast %39 : vector<16x1xf32> to vector<16x128xf32>
    %41 = arith.addf %37, %40 : vector<16x128xf32>
    %c0_30 = arith.constant 0 : index
    %c0_31 = arith.constant 0 : index
    %c0_32 = arith.constant 0 : index
    %42 = vector.load %arg11[%c0_30, %c0_31, %c0_32] : memref<1x16x128xf32, #tpu.memory_space<vmem>>, vector<1x16x128xf32>
    %43 = vector.shape_cast %42 : vector<1x16x128xf32> to vector<16x128xf32>
    %44 = vector.shape_cast %41 : vector<16x128xf32> to vector<1x16x128xf32>
    tpu.vector_store %arg11[%c0_30, %c0_31, %c0_32], %44 {strides = array<i32>} : memref<1x16x128xf32, #tpu.memory_space<vmem>>, vector<1x16x128xf32>,
    return
  }
  func.func @transform_0(%arg0: i32) -> (i32, i32, i32) {
    %c0_i32 = arith.constant 0 : i32
    %c0_i32_0 = arith.constant 0 : i32
    %c0_i32_1 = arith.constant 0 : i32
    return %arg0, %c0_i32, %c0_i32_0 : i32, i32, i32
  }
  func.func @transform_1(%arg0: i32) -> (i32, i32, i32) {
    %c0_i32 = arith.constant 0 : i32
    %c0_i32_0 = arith.constant 0 : i32
    %c0_i32_1 = arith.constant 0 : i32
    return %arg0, %c0_i32, %c0_i32_0 : i32, i32, i32
  }
  func.func @transform_2(%arg0: i32) -> (i32, i32, i32) {
    %c0_i32 = arith.constant 0 : i32
    %c0_i32_0 = arith.constant 0 : i32
    %c0_i32_1 = arith.constant 0 : i32
    return %arg0, %c0_i32, %c0_i32_0 : i32, i32, i32
  }
  func.func @transform_3(%arg0: i32) -> (i32, i32, i32) {
    %c0_i32 = arith.constant 0 : i32
    %c0_i32_0 = arith.constant 0 : i32
    %c0_i32_1 = arith.constant 0 : i32
    return %arg0, %c0_i32, %c0_i32_0 : i32, i32, i32
  }
  func.func @transform_4(%arg0: i32) -> (i32, i32) {
    %c0_i32 = arith.constant 0 : i32
    %c0_i32_0 = arith.constant 0 : i32
    %c0_i32_1 = arith.constant 0 : i32
    return %c0_i32, %c0_i32_0 : i32, i32
  }
  func.func @transform_5(%arg0: i32) -> (i32, i32) {
    %c0_i32 = arith.constant 0 : i32
    %c0_i32_0 = arith.constant 0 : i32
    %c0_i32_1 = arith.constant 0 : i32
    return %c0_i32, %c0_i32_0 : i32, i32
  }
  func.func @transform_6(%arg0: i32) -> (i32, i32) {
    %c0_i32 = arith.constant 0 : i32
    %c0_i32_0 = arith.constant 0 : i32
    %c0_i32_1 = arith.constant 0 : i32
    return %c0_i32, %c0_i32_0 : i32, i32
  }
  func.func @transform_7(%arg0: i32) -> (i32, i32) {
    %c0_i32 = arith.constant 0 : i32
    %c0_i32_0 = arith.constant 0 : i32
    %c0_i32_1 = arith.constant 0 : i32
    return %c0_i32, %c0_i32_0 : i32, i32
  }
  func.func @transform_8(%arg0: i32) -> (i32, i32, i32) {
    %c0_i32 = arith.constant 0 : i32
    %c0_i32_0 = arith.constant 0 : i32
    %c0_i32_1 = arith.constant 0 : i32
    return %arg0, %c0_i32, %c0_i32_0 : i32, i32, i32
  }
  func.func @transform_9(%arg0: i32) -> (i32, i32, i32) {
    %c0_i32 = arith.constant 0 : i32
    %c0_i32_0 = arith.constant 0 : i32
    %c0_i32_1 = arith.constant 0 : i32
    return %arg0, %c0_i32, %c0_i32_0 : i32, i32, i32
  }
  func.func @transform_10(%arg0: i32) -> (i32, i32, i32) {
    %c0_i32 = arith.constant 0 : i32
    %c0_i32_0 = arith.constant 0 : i32
    %c0_i32_1 = arith.constant 0 : i32
    return %arg0, %c0_i32, %c0_i32_0 : i32, i32, i32
  }
}

module attributes {stable_mosaic.version = 11 : i64} {
  func.func @_refine_kernel(%arg0: i32, %arg1: memref<16x128xf32, #tpu.memory_space<vmem>>, %arg2: memref<1x64x16xbf16, #tpu.memory_space<vmem>>, %arg3: memref<1x64x1xf32, #tpu.memory_space<vmem>>, %arg4: memref<1x10x64x192xbf16, #tpu.memory_space<vmem>>, %arg5: memref<1x10x64x64xbf16, #tpu.memory_space<vmem>>, %arg6: memref<1x10x64x1xf32, #tpu.memory_space<vmem>>, %arg7: memref<1x10x64x64xbf16, #tpu.memory_space<vmem>>, %arg8: memref<1x10x64x1xf32, #tpu.memory_space<vmem>>, %arg9: memref<1x16x64xbf16, #tpu.memory_space<vmem>>, %arg10: memref<1x16x1xf32, #tpu.memory_space<vmem>>, %arg11: memref<1x16x128xf32, #tpu.memory_space<vmem>>, %arg12: memref<16x128xf32, #tpu.memory_space<vmem>>) attributes {dimension_semantics = [#tpu.dimension_semantics<arbitrary>], iteration_bounds = array<i64: 2>, scalar_prefetch = 0 : i64, scratch_operands = 1 : i64, tpu.core_type = #tpu.core_type<tc>, window_params = [{pipeline_mode = #tpu.pipeline_mode<synchronous>, transform_indices = @transform_0, window_bounds = array<i64: 16, 128>}, {transform_indices = @transform_1, window_bounds = array<i64: 1, 64, 16>}, {transform_indices = @transform_2, window_bounds = array<i64: 1, 64, 1>}, {transform_indices = @transform_3, window_bounds = array<i64: 1, 10, 64, 192>}, {transform_indices = @transform_4, window_bounds = array<i64: 1, 10, 64, 64>}, {transform_indices = @transform_5, window_bounds = array<i64: 1, 10, 64, 1>}, {transform_indices = @transform_6, window_bounds = array<i64: 1, 10, 64, 64>}, {transform_indices = @transform_7, window_bounds = array<i64: 1, 10, 64, 1>}, {transform_indices = @transform_8, window_bounds = array<i64: 1, 16, 64>}, {transform_indices = @transform_9, window_bounds = array<i64: 1, 16, 1>}, {transform_indices = @transform_10, window_bounds = array<i64: 1, 16, 128>}]} {
    %c0_i32 = arith.constant 0 : i32
    %0 = arith.cmpi eq, %arg0, %c0_i32 : i32
    %1 = arith.extui %0 : i1 to i32
    %c0_i32_0 = arith.constant 0 : i32
    %2 = arith.cmpi ne, %1, %c0_i32_0 : i32
    scf.if %2 {
      %c0_234 = arith.constant 0 : index
      %c0_235 = arith.constant 0 : index
      %346 = vector.load %arg1[%c0_234, %c0_235] : memref<16x128xf32, #tpu.memory_space<vmem>>, vector<16x128xf32>
      %c0_236 = arith.constant 0 : index
      %c0_237 = arith.constant 0 : index
      %347 = vector.load %arg12[%c0_236, %c0_237] : memref<16x128xf32, #tpu.memory_space<vmem>>, vector<16x128xf32>
      tpu.vector_store %arg12[%c0_236, %c0_237], %346 {strides = array<i32>} : memref<16x128xf32, #tpu.memory_space<vmem>>, vector<16x128xf32>,
    } else {
    }
    %c0 = arith.constant 0 : index
    %c0_1 = arith.constant 0 : index
    %3 = vector.load %arg12[%c0, %c0_1] : memref<16x128xf32, #tpu.memory_space<vmem>>, vector<16x128xf32>
    %cst = arith.constant dense<0xFF800000> : vector<128xf32>
    %4 = vector.multi_reduction <maximumf>, %3, %cst [0] : vector<16x128xf32> to vector<128xf32>
    %5 = vector.shape_cast %4 : vector<128xf32> to vector<1x128xf32>
    %6 = vector.broadcast %5 : vector<1x128xf32> to vector<16x128xf32>
    %7 = arith.subf %3, %6 : vector<16x128xf32>
    %8 = math.exp %7 : vector<16x128xf32>
    %cst_2 = arith.constant dense<0.000000e+00> : vector<128xf32>
    %9 = vector.multi_reduction <add>, %8, %cst_2 [0] : vector<16x128xf32> to vector<128xf32>
    %10 = vector.shape_cast %9 : vector<128xf32> to vector<1x128xf32>
    %11 = tpu.reciprocal %10 {approx = true} : vector<1x128xf32> -> vector<1x128xf32>
    %12 = vector.broadcast %11 : vector<1x128xf32> to vector<16x128xf32>
    %13 = arith.mulf %8, %12 : vector<16x128xf32>
    %14 = tpu.iota {dimensions = array<i32: 1>} : vector<1x128xi32>
    %c24_i32 = arith.constant 24 : i32
    %15 = vector.broadcast %c24_i32 : i32 to vector<1x128xi32>
    %16 = arith.cmpi slt, %14, %15 : vector<1x128xi32>
    %c0_3 = arith.constant 0 : index
    %c0_4 = arith.constant 0 : index
    %c0_5 = arith.constant 0 : index
    %17 = vector.load %arg2[%c0_3, %c0_4, %c0_5] : memref<1x64x16xbf16, #tpu.memory_space<vmem>>, vector<1x64x16xbf16>
    %18 = vector.shape_cast %17 : vector<1x64x16xbf16> to vector<64x16xbf16>
    %19 = arith.truncf %13 : vector<16x128xf32> to vector<16x128xbf16>
    %cst_6 = arith.constant dense<0.000000e+00> : vector<64x128xf32>
    %20 = tpu.matmul %18, %19, %cst_6 {dimension_numbers = #tpu.dot_dimension_numbers<[1], [0], [0], [1], [0, 0, 1, 1], [], []>} : vector<64x16xbf16>, vector<16x128xbf16>, vector<64x128xf32> -> vector<64x128xf32>
    %c0_7 = arith.constant 0 : index
    %c0_8 = arith.constant 0 : index
    %c0_9 = arith.constant 0 : index
    %21 = vector.load %arg3[%c0_7, %c0_8, %c0_9] : memref<1x64x1xf32, #tpu.memory_space<vmem>>, vector<1x64x1xf32>
    %22 = vector.shape_cast %21 : vector<1x64x1xf32> to vector<64x1xf32>
    %23 = vector.broadcast %22 : vector<64x1xf32> to vector<64x128xf32>
    %24 = arith.addf %20, %23 : vector<64x128xf32>
    %cst_10 = arith.constant 0.000000e+00 : f32
    %25 = vector.shape_cast %16 : vector<1x128xi1> to vector<1x128xi1>
    %26 = vector.broadcast %25 : vector<1x128xi1> to vector<64x128xi1>
    %27 = vector.broadcast %cst_10 : f32 to vector<64x128xf32>
    %28 = arith.select %26, %24, %27 : vector<64x128xi1>, vector<64x128xf32>
    %c1_i32 = arith.constant 1 : i32
    %29 = vector.broadcast %c1_i32 : i32 to vector<1x128xi32>
    %30 = arith.cmpi sge, %14, %29 : vector<1x128xi32>
    %c1_i32_11 = arith.constant 1 : i32
    %31 = tpu.dynamic_rotate %28 by %c1_i32_11 dim 1 : vector<64x128xf32>, i32 -> vector<64x128xf32>
    %cst_12 = arith.constant 0.000000e+00 : f32
    %32 = vector.shape_cast %30 : vector<1x128xi1> to vector<1x128xi1>
    %33 = vector.broadcast %32 : vector<1x128xi1> to vector<64x128xi1>
    %34 = vector.broadcast %cst_12 : f32 to vector<64x128xf32>
    %35 = arith.select %33, %31, %34 : vector<64x128xi1>, vector<64x128xf32>
    %c127_i32 = arith.constant 127 : i32
    %36 = vector.broadcast %c127_i32 : i32 to vector<1x128xi32>
    %37 = arith.cmpi slt, %14, %36 : vector<1x128xi32>
    %c127_i32_13 = arith.constant 127 : i32
    %38 = tpu.dynamic_rotate %28 by %c127_i32_13 dim 1 : vector<64x128xf32>, i32 -> vector<64x128xf32>
    %cst_14 = arith.constant 0.000000e+00 : f32
    %39 = vector.shape_cast %37 : vector<1x128xi1> to vector<1x128xi1>
    %40 = vector.broadcast %39 : vector<1x128xi1> to vector<64x128xi1>
    %41 = vector.broadcast %cst_14 : f32 to vector<64x128xf32>
    %42 = arith.select %40, %38, %41 : vector<64x128xi1>, vector<64x128xf32>
    %43 = tpu.concatenate %35, %28, %42 in 0 : vector<64x128xf32>, vector<64x128xf32>, vector<64x128xf32> -> vector<192x128xf32>
    %44 = arith.truncf %43 : vector<192x128xf32> to vector<192x128xbf16>
    %c0_15 = arith.constant 0 : index
    %c0_16 = arith.constant 0 : index
    %c0_17 = arith.constant 0 : index
    %c0_18 = arith.constant 0 : index
    %45 = vector.load %arg4[%c0_15, %c0_16, %c0_17, %c0_18] : memref<1x10x64x192xbf16, #tpu.memory_space<vmem>>, vector<1x1x64x192xbf16>
    %46 = vector.shape_cast %45 : vector<1x1x64x192xbf16> to vector<64x192xbf16>
    %cst_19 = arith.constant dense<0.000000e+00> : vector<64x128xf32>
    %47 = tpu.matmul %46, %44, %cst_19 {dimension_numbers = #tpu.dot_dimension_numbers<[1], [0], [0], [1], [0, 0, 1, 1], [], []>} : vector<64x192xbf16>, vector<192x128xbf16>, vector<64x128xf32> -> vector<64x128xf32>
    %c0_20 = arith.constant 0 : index
    %c0_21 = arith.constant 0 : index
    %c0_22 = arith.constant 0 : index
    %c0_23 = arith.constant 0 : index
    %48 = vector.load %arg6[%c0_20, %c0_21, %c0_22, %c0_23] : memref<1x10x64x1xf32, #tpu.memory_space<vmem>>, vector<1x1x64x1xf32>
    %49 = vector.shape_cast %48 : vector<1x1x64x1xf32> to vector<64x1xf32>
    %50 = vector.broadcast %49 : vector<64x1xf32> to vector<64x128xf32>
    %51 = arith.addf %47, %50 : vector<64x128xf32>
    %cst_24 = arith.constant 0.000000e+00 : f32
    %52 = vector.broadcast %cst_24 : f32 to vector<64x128xf32>
    %53 = arith.maximumf %51, %52 : vector<64x128xf32>
    %c0_25 = arith.constant 0 : index
    %c0_26 = arith.constant 0 : index
    %c0_27 = arith.constant 0 : index
    %c0_28 = arith.constant 0 : index
    %54 = vector.load %arg7[%c0_25, %c0_26, %c0_27, %c0_28] : memref<1x10x64x64xbf16, #tpu.memory_space<vmem>>, vector<1x1x64x64xbf16>
    %55 = vector.shape_cast %54 : vector<1x1x64x64xbf16> to vector<64x64xbf16>
    %56 = arith.truncf %53 : vector<64x128xf32> to vector<64x128xbf16>
    %cst_29 = arith.constant dense<0.000000e+00> : vector<64x128xf32>
    %57 = tpu.matmul %55, %56, %cst_29 {dimension_numbers = #tpu.dot_dimension_numbers<[1], [0], [0], [1], [0, 0, 1, 1], [], []>} : vector<64x64xbf16>, vector<64x128xbf16>, vector<64x128xf32> -> vector<64x128xf32>
    %c0_30 = arith.constant 0 : index
    %c0_31 = arith.constant 0 : index
    %c0_32 = arith.constant 0 : index
    %c0_33 = arith.constant 0 : index
    %58 = vector.load %arg8[%c0_30, %c0_31, %c0_32, %c0_33] : memref<1x10x64x1xf32, #tpu.memory_space<vmem>>, vector<1x1x64x1xf32>
    %59 = vector.shape_cast %58 : vector<1x1x64x1xf32> to vector<64x1xf32>
    %60 = vector.broadcast %59 : vector<64x1xf32> to vector<64x128xf32>
    %61 = arith.addf %57, %60 : vector<64x128xf32>
    %62 = arith.addf %28, %61 : vector<64x128xf32>
    %cst_34 = arith.constant 0.000000e+00 : f32
    %63 = vector.shape_cast %16 : vector<1x128xi1> to vector<1x128xi1>
    %64 = vector.broadcast %63 : vector<1x128xi1> to vector<64x128xi1>
    %65 = vector.broadcast %cst_34 : f32 to vector<64x128xf32>
    %66 = arith.select %64, %62, %65 : vector<64x128xi1>, vector<64x128xf32>
    %c2_i32 = arith.constant 2 : i32
    %67 = vector.broadcast %c2_i32 : i32 to vector<1x128xi32>
    %68 = arith.cmpi sge, %14, %67 : vector<1x128xi32>
    %c2_i32_35 = arith.constant 2 : i32
    %69 = tpu.dynamic_rotate %66 by %c2_i32_35 dim 1 : vector<64x128xf32>, i32 -> vector<64x128xf32>
    %cst_36 = arith.constant 0.000000e+00 : f32
    %70 = vector.shape_cast %68 : vector<1x128xi1> to vector<1x128xi1>
    %71 = vector.broadcast %70 : vector<1x128xi1> to vector<64x128xi1>
    %72 = vector.broadcast %cst_36 : f32 to vector<64x128xf32>
    %73 = arith.select %71, %69, %72 : vector<64x128xi1>, vector<64x128xf32>
    %c126_i32 = arith.constant 126 : i32
    %74 = vector.broadcast %c126_i32 : i32 to vector<1x128xi32>
    %75 = arith.cmpi slt, %14, %74 : vector<1x128xi32>
    %c126_i32_37 = arith.constant 126 : i32
    %76 = tpu.dynamic_rotate %66 by %c126_i32_37 dim 1 : vector<64x128xf32>, i32 -> vector<64x128xf32>
    %cst_38 = arith.constant 0.000000e+00 : f32
    %77 = vector.shape_cast %75 : vector<1x128xi1> to vector<1x128xi1>
    %78 = vector.broadcast %77 : vector<1x128xi1> to vector<64x128xi1>
    %79 = vector.broadcast %cst_38 : f32 to vector<64x128xf32>
    %80 = arith.select %78, %76, %79 : vector<64x128xi1>, vector<64x128xf32>
    %81 = tpu.concatenate %73, %66, %80 in 0 : vector<64x128xf32>, vector<64x128xf32>, vector<64x128xf32> -> vector<192x128xf32>
    %82 = arith.truncf %81 : vector<192x128xf32> to vector<192x128xbf16>
    %c0_39 = arith.constant 0 : index
    %c1 = arith.constant 1 : index
    %c0_40 = arith.constant 0 : index
    %c0_41 = arith.constant 0 : index
    %83 = vector.load %arg4[%c0_39, %c1, %c0_40, %c0_41] : memref<1x10x64x192xbf16, #tpu.memory_space<vmem>>, vector<1x1x64x192xbf16>
    %84 = vector.shape_cast %83 : vector<1x1x64x192xbf16> to vector<64x192xbf16>
    %cst_42 = arith.constant dense<0.000000e+00> : vector<64x128xf32>
    %85 = tpu.matmul %84, %82, %cst_42 {dimension_numbers = #tpu.dot_dimension_numbers<[1], [0], [0], [1], [0, 0, 1, 1], [], []>} : vector<64x192xbf16>, vector<192x128xbf16>, vector<64x128xf32> -> vector<64x128xf32>
    %c0_43 = arith.constant 0 : index
    %c1_44 = arith.constant 1 : index
    %c0_45 = arith.constant 0 : index
    %c0_46 = arith.constant 0 : index
    %86 = vector.load %arg6[%c0_43, %c1_44, %c0_45, %c0_46] : memref<1x10x64x1xf32, #tpu.memory_space<vmem>>, vector<1x1x64x1xf32>
    %87 = vector.shape_cast %86 : vector<1x1x64x1xf32> to vector<64x1xf32>
    %88 = vector.broadcast %87 : vector<64x1xf32> to vector<64x128xf32>
    %89 = arith.addf %85, %88 : vector<64x128xf32>
    %cst_47 = arith.constant 0.000000e+00 : f32
    %90 = vector.broadcast %cst_47 : f32 to vector<64x128xf32>
    %91 = arith.maximumf %89, %90 : vector<64x128xf32>
    %c0_48 = arith.constant 0 : index
    %c1_49 = arith.constant 1 : index
    %c0_50 = arith.constant 0 : index
    %c0_51 = arith.constant 0 : index
    %92 = vector.load %arg7[%c0_48, %c1_49, %c0_50, %c0_51] : memref<1x10x64x64xbf16, #tpu.memory_space<vmem>>, vector<1x1x64x64xbf16>
    %93 = vector.shape_cast %92 : vector<1x1x64x64xbf16> to vector<64x64xbf16>
    %94 = arith.truncf %91 : vector<64x128xf32> to vector<64x128xbf16>
    %cst_52 = arith.constant dense<0.000000e+00> : vector<64x128xf32>
    %95 = tpu.matmul %93, %94, %cst_52 {dimension_numbers = #tpu.dot_dimension_numbers<[1], [0], [0], [1], [0, 0, 1, 1], [], []>} : vector<64x64xbf16>, vector<64x128xbf16>, vector<64x128xf32> -> vector<64x128xf32>
    %c0_53 = arith.constant 0 : index
    %c1_54 = arith.constant 1 : index
    %c0_55 = arith.constant 0 : index
    %c0_56 = arith.constant 0 : index
    %96 = vector.load %arg8[%c0_53, %c1_54, %c0_55, %c0_56] : memref<1x10x64x1xf32, #tpu.memory_space<vmem>>, vector<1x1x64x1xf32>
    %97 = vector.shape_cast %96 : vector<1x1x64x1xf32> to vector<64x1xf32>
    %98 = vector.broadcast %97 : vector<64x1xf32> to vector<64x128xf32>
    %99 = arith.addf %95, %98 : vector<64x128xf32>
    %100 = arith.addf %66, %99 : vector<64x128xf32>
    %cst_57 = arith.constant 0.000000e+00 : f32
    %101 = vector.shape_cast %16 : vector<1x128xi1> to vector<1x128xi1>
    %102 = vector.broadcast %101 : vector<1x128xi1> to vector<64x128xi1>
    %103 = vector.broadcast %cst_57 : f32 to vector<64x128xf32>
    %104 = arith.select %102, %100, %103 : vector<64x128xi1>, vector<64x128xf32>
    %c4_i32 = arith.constant 4 : i32
    %105 = vector.broadcast %c4_i32 : i32 to vector<1x128xi32>
    %106 = arith.cmpi sge, %14, %105 : vector<1x128xi32>
    %c4_i32_58 = arith.constant 4 : i32
    %107 = tpu.dynamic_rotate %104 by %c4_i32_58 dim 1 : vector<64x128xf32>, i32 -> vector<64x128xf32>
    %cst_59 = arith.constant 0.000000e+00 : f32
    %108 = vector.shape_cast %106 : vector<1x128xi1> to vector<1x128xi1>
    %109 = vector.broadcast %108 : vector<1x128xi1> to vector<64x128xi1>
    %110 = vector.broadcast %cst_59 : f32 to vector<64x128xf32>
    %111 = arith.select %109, %107, %110 : vector<64x128xi1>, vector<64x128xf32>
    %c124_i32 = arith.constant 124 : i32
    %112 = vector.broadcast %c124_i32 : i32 to vector<1x128xi32>
    %113 = arith.cmpi slt, %14, %112 : vector<1x128xi32>
    %c124_i32_60 = arith.constant 124 : i32
    %114 = tpu.dynamic_rotate %104 by %c124_i32_60 dim 1 : vector<64x128xf32>, i32 -> vector<64x128xf32>
    %cst_61 = arith.constant 0.000000e+00 : f32
    %115 = vector.shape_cast %113 : vector<1x128xi1> to vector<1x128xi1>
    %116 = vector.broadcast %115 : vector<1x128xi1> to vector<64x128xi1>
    %117 = vector.broadcast %cst_61 : f32 to vector<64x128xf32>
    %118 = arith.select %116, %114, %117 : vector<64x128xi1>, vector<64x128xf32>
    %119 = tpu.concatenate %111, %104, %118 in 0 : vector<64x128xf32>, vector<64x128xf32>, vector<64x128xf32> -> vector<192x128xf32>
    %120 = arith.truncf %119 : vector<192x128xf32> to vector<192x128xbf16>
    %c0_62 = arith.constant 0 : index
    %c2 = arith.constant 2 : index
    %c0_63 = arith.constant 0 : index
    %c0_64 = arith.constant 0 : index
    %121 = vector.load %arg4[%c0_62, %c2, %c0_63, %c0_64] : memref<1x10x64x192xbf16, #tpu.memory_space<vmem>>, vector<1x1x64x192xbf16>
    %122 = vector.shape_cast %121 : vector<1x1x64x192xbf16> to vector<64x192xbf16>
    %cst_65 = arith.constant dense<0.000000e+00> : vector<64x128xf32>
    %123 = tpu.matmul %122, %120, %cst_65 {dimension_numbers = #tpu.dot_dimension_numbers<[1], [0], [0], [1], [0, 0, 1, 1], [], []>} : vector<64x192xbf16>, vector<192x128xbf16>, vector<64x128xf32> -> vector<64x128xf32>
    %c0_66 = arith.constant 0 : index
    %c2_67 = arith.constant 2 : index
    %c0_68 = arith.constant 0 : index
    %c0_69 = arith.constant 0 : index
    %124 = vector.load %arg6[%c0_66, %c2_67, %c0_68, %c0_69] : memref<1x10x64x1xf32, #tpu.memory_space<vmem>>, vector<1x1x64x1xf32>
    %125 = vector.shape_cast %124 : vector<1x1x64x1xf32> to vector<64x1xf32>
    %126 = vector.broadcast %125 : vector<64x1xf32> to vector<64x128xf32>
    %127 = arith.addf %123, %126 : vector<64x128xf32>
    %cst_70 = arith.constant 0.000000e+00 : f32
    %128 = vector.broadcast %cst_70 : f32 to vector<64x128xf32>
    %129 = arith.maximumf %127, %128 : vector<64x128xf32>
    %c0_71 = arith.constant 0 : index
    %c2_72 = arith.constant 2 : index
    %c0_73 = arith.constant 0 : index
    %c0_74 = arith.constant 0 : index
    %130 = vector.load %arg7[%c0_71, %c2_72, %c0_73, %c0_74] : memref<1x10x64x64xbf16, #tpu.memory_space<vmem>>, vector<1x1x64x64xbf16>
    %131 = vector.shape_cast %130 : vector<1x1x64x64xbf16> to vector<64x64xbf16>
    %132 = arith.truncf %129 : vector<64x128xf32> to vector<64x128xbf16>
    %cst_75 = arith.constant dense<0.000000e+00> : vector<64x128xf32>
    %133 = tpu.matmul %131, %132, %cst_75 {dimension_numbers = #tpu.dot_dimension_numbers<[1], [0], [0], [1], [0, 0, 1, 1], [], []>} : vector<64x64xbf16>, vector<64x128xbf16>, vector<64x128xf32> -> vector<64x128xf32>
    %c0_76 = arith.constant 0 : index
    %c2_77 = arith.constant 2 : index
    %c0_78 = arith.constant 0 : index
    %c0_79 = arith.constant 0 : index
    %134 = vector.load %arg8[%c0_76, %c2_77, %c0_78, %c0_79] : memref<1x10x64x1xf32, #tpu.memory_space<vmem>>, vector<1x1x64x1xf32>
    %135 = vector.shape_cast %134 : vector<1x1x64x1xf32> to vector<64x1xf32>
    %136 = vector.broadcast %135 : vector<64x1xf32> to vector<64x128xf32>
    %137 = arith.addf %133, %136 : vector<64x128xf32>
    %138 = arith.addf %104, %137 : vector<64x128xf32>
    %cst_80 = arith.constant 0.000000e+00 : f32
    %139 = vector.shape_cast %16 : vector<1x128xi1> to vector<1x128xi1>
    %140 = vector.broadcast %139 : vector<1x128xi1> to vector<64x128xi1>
    %141 = vector.broadcast %cst_80 : f32 to vector<64x128xf32>
    %142 = arith.select %140, %138, %141 : vector<64x128xi1>, vector<64x128xf32>
    %c8_i32 = arith.constant 8 : i32
    %143 = vector.broadcast %c8_i32 : i32 to vector<1x128xi32>
    %144 = arith.cmpi sge, %14, %143 : vector<1x128xi32>
    %c8_i32_81 = arith.constant 8 : i32
    %145 = tpu.dynamic_rotate %142 by %c8_i32_81 dim 1 : vector<64x128xf32>, i32 -> vector<64x128xf32>
    %cst_82 = arith.constant 0.000000e+00 : f32
    %146 = vector.shape_cast %144 : vector<1x128xi1> to vector<1x128xi1>
    %147 = vector.broadcast %146 : vector<1x128xi1> to vector<64x128xi1>
    %148 = vector.broadcast %cst_82 : f32 to vector<64x128xf32>
    %149 = arith.select %147, %145, %148 : vector<64x128xi1>, vector<64x128xf32>
    %c120_i32 = arith.constant 120 : i32
    %150 = vector.broadcast %c120_i32 : i32 to vector<1x128xi32>
    %151 = arith.cmpi slt, %14, %150 : vector<1x128xi32>
    %c120_i32_83 = arith.constant 120 : i32
    %152 = tpu.dynamic_rotate %142 by %c120_i32_83 dim 1 : vector<64x128xf32>, i32 -> vector<64x128xf32>
    %cst_84 = arith.constant 0.000000e+00 : f32
    %153 = vector.shape_cast %151 : vector<1x128xi1> to vector<1x128xi1>
    %154 = vector.broadcast %153 : vector<1x128xi1> to vector<64x128xi1>
    %155 = vector.broadcast %cst_84 : f32 to vector<64x128xf32>
    %156 = arith.select %154, %152, %155 : vector<64x128xi1>, vector<64x128xf32>
    %157 = tpu.concatenate %149, %142, %156 in 0 : vector<64x128xf32>, vector<64x128xf32>, vector<64x128xf32> -> vector<192x128xf32>
    %158 = arith.truncf %157 : vector<192x128xf32> to vector<192x128xbf16>
    %c0_85 = arith.constant 0 : index
    %c3 = arith.constant 3 : index
    %c0_86 = arith.constant 0 : index
    %c0_87 = arith.constant 0 : index
    %159 = vector.load %arg4[%c0_85, %c3, %c0_86, %c0_87] : memref<1x10x64x192xbf16, #tpu.memory_space<vmem>>, vector<1x1x64x192xbf16>
    %160 = vector.shape_cast %159 : vector<1x1x64x192xbf16> to vector<64x192xbf16>
    %cst_88 = arith.constant dense<0.000000e+00> : vector<64x128xf32>
    %161 = tpu.matmul %160, %158, %cst_88 {dimension_numbers = #tpu.dot_dimension_numbers<[1], [0], [0], [1], [0, 0, 1, 1], [], []>} : vector<64x192xbf16>, vector<192x128xbf16>, vector<64x128xf32> -> vector<64x128xf32>
    %c0_89 = arith.constant 0 : index
    %c3_90 = arith.constant 3 : index
    %c0_91 = arith.constant 0 : index
    %c0_92 = arith.constant 0 : index
    %162 = vector.load %arg6[%c0_89, %c3_90, %c0_91, %c0_92] : memref<1x10x64x1xf32, #tpu.memory_space<vmem>>, vector<1x1x64x1xf32>
    %163 = vector.shape_cast %162 : vector<1x1x64x1xf32> to vector<64x1xf32>
    %164 = vector.broadcast %163 : vector<64x1xf32> to vector<64x128xf32>
    %165 = arith.addf %161, %164 : vector<64x128xf32>
    %cst_93 = arith.constant 0.000000e+00 : f32
    %166 = vector.broadcast %cst_93 : f32 to vector<64x128xf32>
    %167 = arith.maximumf %165, %166 : vector<64x128xf32>
    %c0_94 = arith.constant 0 : index
    %c3_95 = arith.constant 3 : index
    %c0_96 = arith.constant 0 : index
    %c0_97 = arith.constant 0 : index
    %168 = vector.load %arg7[%c0_94, %c3_95, %c0_96, %c0_97] : memref<1x10x64x64xbf16, #tpu.memory_space<vmem>>, vector<1x1x64x64xbf16>
    %169 = vector.shape_cast %168 : vector<1x1x64x64xbf16> to vector<64x64xbf16>
    %170 = arith.truncf %167 : vector<64x128xf32> to vector<64x128xbf16>
    %cst_98 = arith.constant dense<0.000000e+00> : vector<64x128xf32>
    %171 = tpu.matmul %169, %170, %cst_98 {dimension_numbers = #tpu.dot_dimension_numbers<[1], [0], [0], [1], [0, 0, 1, 1], [], []>} : vector<64x64xbf16>, vector<64x128xbf16>, vector<64x128xf32> -> vector<64x128xf32>
    %c0_99 = arith.constant 0 : index
    %c3_100 = arith.constant 3 : index
    %c0_101 = arith.constant 0 : index
    %c0_102 = arith.constant 0 : index
    %172 = vector.load %arg8[%c0_99, %c3_100, %c0_101, %c0_102] : memref<1x10x64x1xf32, #tpu.memory_space<vmem>>, vector<1x1x64x1xf32>
    %173 = vector.shape_cast %172 : vector<1x1x64x1xf32> to vector<64x1xf32>
    %174 = vector.broadcast %173 : vector<64x1xf32> to vector<64x128xf32>
    %175 = arith.addf %171, %174 : vector<64x128xf32>
    %176 = arith.addf %142, %175 : vector<64x128xf32>
    %cst_103 = arith.constant 0.000000e+00 : f32
    %177 = vector.shape_cast %16 : vector<1x128xi1> to vector<1x128xi1>
    %178 = vector.broadcast %177 : vector<1x128xi1> to vector<64x128xi1>
    %179 = vector.broadcast %cst_103 : f32 to vector<64x128xf32>
    %180 = arith.select %178, %176, %179 : vector<64x128xi1>, vector<64x128xf32>
    %c16_i32 = arith.constant 16 : i32
    %181 = vector.broadcast %c16_i32 : i32 to vector<1x128xi32>
    %182 = arith.cmpi sge, %14, %181 : vector<1x128xi32>
    %c16_i32_104 = arith.constant 16 : i32
    %183 = tpu.dynamic_rotate %180 by %c16_i32_104 dim 1 : vector<64x128xf32>, i32 -> vector<64x128xf32>
    %cst_105 = arith.constant 0.000000e+00 : f32
    %184 = vector.shape_cast %182 : vector<1x128xi1> to vector<1x128xi1>
    %185 = vector.broadcast %184 : vector<1x128xi1> to vector<64x128xi1>
    %186 = vector.broadcast %cst_105 : f32 to vector<64x128xf32>
    %187 = arith.select %185, %183, %186 : vector<64x128xi1>, vector<64x128xf32>
    %c112_i32 = arith.constant 112 : i32
    %188 = vector.broadcast %c112_i32 : i32 to vector<1x128xi32>
    %189 = arith.cmpi slt, %14, %188 : vector<1x128xi32>
    %c112_i32_106 = arith.constant 112 : i32
    %190 = tpu.dynamic_rotate %180 by %c112_i32_106 dim 1 : vector<64x128xf32>, i32 -> vector<64x128xf32>
    %cst_107 = arith.constant 0.000000e+00 : f32
    %191 = vector.shape_cast %189 : vector<1x128xi1> to vector<1x128xi1>
    %192 = vector.broadcast %191 : vector<1x128xi1> to vector<64x128xi1>
    %193 = vector.broadcast %cst_107 : f32 to vector<64x128xf32>
    %194 = arith.select %192, %190, %193 : vector<64x128xi1>, vector<64x128xf32>
    %195 = tpu.concatenate %187, %180, %194 in 0 : vector<64x128xf32>, vector<64x128xf32>, vector<64x128xf32> -> vector<192x128xf32>
    %196 = arith.truncf %195 : vector<192x128xf32> to vector<192x128xbf16>
    %c0_108 = arith.constant 0 : index
    %c4 = arith.constant 4 : index
    %c0_109 = arith.constant 0 : index
    %c0_110 = arith.constant 0 : index
    %197 = vector.load %arg4[%c0_108, %c4, %c0_109, %c0_110] : memref<1x10x64x192xbf16, #tpu.memory_space<vmem>>, vector<1x1x64x192xbf16>
    %198 = vector.shape_cast %197 : vector<1x1x64x192xbf16> to vector<64x192xbf16>
    %cst_111 = arith.constant dense<0.000000e+00> : vector<64x128xf32>
    %199 = tpu.matmul %198, %196, %cst_111 {dimension_numbers = #tpu.dot_dimension_numbers<[1], [0], [0], [1], [0, 0, 1, 1], [], []>} : vector<64x192xbf16>, vector<192x128xbf16>, vector<64x128xf32> -> vector<64x128xf32>
    %c0_112 = arith.constant 0 : index
    %c4_113 = arith.constant 4 : index
    %c0_114 = arith.constant 0 : index
    %c0_115 = arith.constant 0 : index
    %200 = vector.load %arg6[%c0_112, %c4_113, %c0_114, %c0_115] : memref<1x10x64x1xf32, #tpu.memory_space<vmem>>, vector<1x1x64x1xf32>
    %201 = vector.shape_cast %200 : vector<1x1x64x1xf32> to vector<64x1xf32>
    %202 = vector.broadcast %201 : vector<64x1xf32> to vector<64x128xf32>
    %203 = arith.addf %199, %202 : vector<64x128xf32>
    %cst_116 = arith.constant 0.000000e+00 : f32
    %204 = vector.broadcast %cst_116 : f32 to vector<64x128xf32>
    %205 = arith.maximumf %203, %204 : vector<64x128xf32>
    %c0_117 = arith.constant 0 : index
    %c4_118 = arith.constant 4 : index
    %c0_119 = arith.constant 0 : index
    %c0_120 = arith.constant 0 : index
    %206 = vector.load %arg7[%c0_117, %c4_118, %c0_119, %c0_120] : memref<1x10x64x64xbf16, #tpu.memory_space<vmem>>, vector<1x1x64x64xbf16>
    %207 = vector.shape_cast %206 : vector<1x1x64x64xbf16> to vector<64x64xbf16>
    %208 = arith.truncf %205 : vector<64x128xf32> to vector<64x128xbf16>
    %cst_121 = arith.constant dense<0.000000e+00> : vector<64x128xf32>
    %209 = tpu.matmul %207, %208, %cst_121 {dimension_numbers = #tpu.dot_dimension_numbers<[1], [0], [0], [1], [0, 0, 1, 1], [], []>} : vector<64x64xbf16>, vector<64x128xbf16>, vector<64x128xf32> -> vector<64x128xf32>
    %c0_122 = arith.constant 0 : index
    %c4_123 = arith.constant 4 : index
    %c0_124 = arith.constant 0 : index
    %c0_125 = arith.constant 0 : index
    %210 = vector.load %arg8[%c0_122, %c4_123, %c0_124, %c0_125] : memref<1x10x64x1xf32, #tpu.memory_space<vmem>>, vector<1x1x64x1xf32>
    %211 = vector.shape_cast %210 : vector<1x1x64x1xf32> to vector<64x1xf32>
    %212 = vector.broadcast %211 : vector<64x1xf32> to vector<64x128xf32>
    %213 = arith.addf %209, %212 : vector<64x128xf32>
    %214 = arith.addf %180, %213 : vector<64x128xf32>
    %cst_126 = arith.constant 0.000000e+00 : f32
    %215 = vector.shape_cast %16 : vector<1x128xi1> to vector<1x128xi1>
    %216 = vector.broadcast %215 : vector<1x128xi1> to vector<64x128xi1>
    %217 = vector.broadcast %cst_126 : f32 to vector<64x128xf32>
    %218 = arith.select %216, %214, %217 : vector<64x128xi1>, vector<64x128xf32>
    %c0_127 = arith.constant 0 : index
    %c5 = arith.constant 5 : index
    %c0_128 = arith.constant 0 : index
    %c0_129 = arith.constant 0 : index
    %219 = vector.load %arg5[%c0_127, %c5, %c0_128, %c0_129] : memref<1x10x64x64xbf16, #tpu.memory_space<vmem>>, vector<1x1x64x64xbf16>
    %220 = vector.shape_cast %219 : vector<1x1x64x64xbf16> to vector<64x64xbf16>
    %221 = arith.truncf %218 : vector<64x128xf32> to vector<64x128xbf16>
    %cst_130 = arith.constant dense<0.000000e+00> : vector<64x128xf32>
    %222 = tpu.matmul %220, %221, %cst_130 {dimension_numbers = #tpu.dot_dimension_numbers<[1], [0], [0], [1], [0, 0, 1, 1], [], []>} : vector<64x64xbf16>, vector<64x128xbf16>, vector<64x128xf32> -> vector<64x128xf32>
    %c0_131 = arith.constant 0 : index
    %c5_132 = arith.constant 5 : index
    %c0_133 = arith.constant 0 : index
    %c0_134 = arith.constant 0 : index
    %223 = vector.load %arg6[%c0_131, %c5_132, %c0_133, %c0_134] : memref<1x10x64x1xf32, #tpu.memory_space<vmem>>, vector<1x1x64x1xf32>
    %224 = vector.shape_cast %223 : vector<1x1x64x1xf32> to vector<64x1xf32>
    %225 = vector.broadcast %224 : vector<64x1xf32> to vector<64x128xf32>
    %226 = arith.addf %222, %225 : vector<64x128xf32>
    %cst_135 = arith.constant 0.000000e+00 : f32
    %227 = vector.broadcast %cst_135 : f32 to vector<64x128xf32>
    %228 = arith.maximumf %226, %227 : vector<64x128xf32>
    %c0_136 = arith.constant 0 : index
    %c5_137 = arith.constant 5 : index
    %c0_138 = arith.constant 0 : index
    %c0_139 = arith.constant 0 : index
    %229 = vector.load %arg7[%c0_136, %c5_137, %c0_138, %c0_139] : memref<1x10x64x64xbf16, #tpu.memory_space<vmem>>, vector<1x1x64x64xbf16>
    %230 = vector.shape_cast %229 : vector<1x1x64x64xbf16> to vector<64x64xbf16>
    %231 = arith.truncf %228 : vector<64x128xf32> to vector<64x128xbf16>
    %cst_140 = arith.constant dense<0.000000e+00> : vector<64x128xf32>
    %232 = tpu.matmul %230, %231, %cst_140 {dimension_numbers = #tpu.dot_dimension_numbers<[1], [0], [0], [1], [0, 0, 1, 1], [], []>} : vector<64x64xbf16>, vector<64x128xbf16>, vector<64x128xf32> -> vector<64x128xf32>
    %c0_141 = arith.constant 0 : index
    %c5_142 = arith.constant 5 : index
    %c0_143 = arith.constant 0 : index
    %c0_144 = arith.constant 0 : index
    %233 = vector.load %arg8[%c0_141, %c5_142, %c0_143, %c0_144] : memref<1x10x64x1xf32, #tpu.memory_space<vmem>>, vector<1x1x64x1xf32>
    %234 = vector.shape_cast %233 : vector<1x1x64x1xf32> to vector<64x1xf32>
    %235 = vector.broadcast %234 : vector<64x1xf32> to vector<64x128xf32>
    %236 = arith.addf %232, %235 : vector<64x128xf32>
    %237 = arith.addf %218, %236 : vector<64x128xf32>
    %cst_145 = arith.constant 0.000000e+00 : f32
    %238 = vector.shape_cast %16 : vector<1x128xi1> to vector<1x128xi1>
    %239 = vector.broadcast %238 : vector<1x128xi1> to vector<64x128xi1>
    %240 = vector.broadcast %cst_145 : f32 to vector<64x128xf32>
    %241 = arith.select %239, %237, %240 : vector<64x128xi1>, vector<64x128xf32>
    %c0_146 = arith.constant 0 : index
    %c6 = arith.constant 6 : index
    %c0_147 = arith.constant 0 : index
    %c0_148 = arith.constant 0 : index
    %242 = vector.load %arg5[%c0_146, %c6, %c0_147, %c0_148] : memref<1x10x64x64xbf16, #tpu.memory_space<vmem>>, vector<1x1x64x64xbf16>
    %243 = vector.shape_cast %242 : vector<1x1x64x64xbf16> to vector<64x64xbf16>
    %244 = arith.truncf %241 : vector<64x128xf32> to vector<64x128xbf16>
    %cst_149 = arith.constant dense<0.000000e+00> : vector<64x128xf32>
    %245 = tpu.matmul %243, %244, %cst_149 {dimension_numbers = #tpu.dot_dimension_numbers<[1], [0], [0], [1], [0, 0, 1, 1], [], []>} : vector<64x64xbf16>, vector<64x128xbf16>, vector<64x128xf32> -> vector<64x128xf32>
    %c0_150 = arith.constant 0 : index
    %c6_151 = arith.constant 6 : index
    %c0_152 = arith.constant 0 : index
    %c0_153 = arith.constant 0 : index
    %246 = vector.load %arg6[%c0_150, %c6_151, %c0_152, %c0_153] : memref<1x10x64x1xf32, #tpu.memory_space<vmem>>, vector<1x1x64x1xf32>
    %247 = vector.shape_cast %246 : vector<1x1x64x1xf32> to vector<64x1xf32>
    %248 = vector.broadcast %247 : vector<64x1xf32> to vector<64x128xf32>
    %249 = arith.addf %245, %248 : vector<64x128xf32>
    %cst_154 = arith.constant 0.000000e+00 : f32
    %250 = vector.broadcast %cst_154 : f32 to vector<64x128xf32>
    %251 = arith.maximumf %249, %250 : vector<64x128xf32>
    %c0_155 = arith.constant 0 : index
    %c6_156 = arith.constant 6 : index
    %c0_157 = arith.constant 0 : index
    %c0_158 = arith.constant 0 : index
    %252 = vector.load %arg7[%c0_155, %c6_156, %c0_157, %c0_158] : memref<1x10x64x64xbf16, #tpu.memory_space<vmem>>, vector<1x1x64x64xbf16>
    %253 = vector.shape_cast %252 : vector<1x1x64x64xbf16> to vector<64x64xbf16>
    %254 = arith.truncf %251 : vector<64x128xf32> to vector<64x128xbf16>
    %cst_159 = arith.constant dense<0.000000e+00> : vector<64x128xf32>
    %255 = tpu.matmul %253, %254, %cst_159 {dimension_numbers = #tpu.dot_dimension_numbers<[1], [0], [0], [1], [0, 0, 1, 1], [], []>} : vector<64x64xbf16>, vector<64x128xbf16>, vector<64x128xf32> -> vector<64x128xf32>
    %c0_160 = arith.constant 0 : index
    %c6_161 = arith.constant 6 : index
    %c0_162 = arith.constant 0 : index
    %c0_163 = arith.constant 0 : index
    %256 = vector.load %arg8[%c0_160, %c6_161, %c0_162, %c0_163] : memref<1x10x64x1xf32, #tpu.memory_space<vmem>>, vector<1x1x64x1xf32>
    %257 = vector.shape_cast %256 : vector<1x1x64x1xf32> to vector<64x1xf32>
    %258 = vector.broadcast %257 : vector<64x1xf32> to vector<64x128xf32>
    %259 = arith.addf %255, %258 : vector<64x128xf32>
    %260 = arith.addf %241, %259 : vector<64x128xf32>
    %cst_164 = arith.constant 0.000000e+00 : f32
    %261 = vector.shape_cast %16 : vector<1x128xi1> to vector<1x128xi1>
    %262 = vector.broadcast %261 : vector<1x128xi1> to vector<64x128xi1>
    %263 = vector.broadcast %cst_164 : f32 to vector<64x128xf32>
    %264 = arith.select %262, %260, %263 : vector<64x128xi1>, vector<64x128xf32>
    %c0_165 = arith.constant 0 : index
    %c7 = arith.constant 7 : index
    %c0_166 = arith.constant 0 : index
    %c0_167 = arith.constant 0 : index
    %265 = vector.load %arg5[%c0_165, %c7, %c0_166, %c0_167] : memref<1x10x64x64xbf16, #tpu.memory_space<vmem>>, vector<1x1x64x64xbf16>
    %266 = vector.shape_cast %265 : vector<1x1x64x64xbf16> to vector<64x64xbf16>
    %267 = arith.truncf %264 : vector<64x128xf32> to vector<64x128xbf16>
    %cst_168 = arith.constant dense<0.000000e+00> : vector<64x128xf32>
    %268 = tpu.matmul %266, %267, %cst_168 {dimension_numbers = #tpu.dot_dimension_numbers<[1], [0], [0], [1], [0, 0, 1, 1], [], []>} : vector<64x64xbf16>, vector<64x128xbf16>, vector<64x128xf32> -> vector<64x128xf32>
    %c0_169 = arith.constant 0 : index
    %c7_170 = arith.constant 7 : index
    %c0_171 = arith.constant 0 : index
    %c0_172 = arith.constant 0 : index
    %269 = vector.load %arg6[%c0_169, %c7_170, %c0_171, %c0_172] : memref<1x10x64x1xf32, #tpu.memory_space<vmem>>, vector<1x1x64x1xf32>
    %270 = vector.shape_cast %269 : vector<1x1x64x1xf32> to vector<64x1xf32>
    %271 = vector.broadcast %270 : vector<64x1xf32> to vector<64x128xf32>
    %272 = arith.addf %268, %271 : vector<64x128xf32>
    %cst_173 = arith.constant 0.000000e+00 : f32
    %273 = vector.broadcast %cst_173 : f32 to vector<64x128xf32>
    %274 = arith.maximumf %272, %273 : vector<64x128xf32>
    %c0_174 = arith.constant 0 : index
    %c7_175 = arith.constant 7 : index
    %c0_176 = arith.constant 0 : index
    %c0_177 = arith.constant 0 : index
    %275 = vector.load %arg7[%c0_174, %c7_175, %c0_176, %c0_177] : memref<1x10x64x64xbf16, #tpu.memory_space<vmem>>, vector<1x1x64x64xbf16>
    %276 = vector.shape_cast %275 : vector<1x1x64x64xbf16> to vector<64x64xbf16>
    %277 = arith.truncf %274 : vector<64x128xf32> to vector<64x128xbf16>
    %cst_178 = arith.constant dense<0.000000e+00> : vector<64x128xf32>
    %278 = tpu.matmul %276, %277, %cst_178 {dimension_numbers = #tpu.dot_dimension_numbers<[1], [0], [0], [1], [0, 0, 1, 1], [], []>} : vector<64x64xbf16>, vector<64x128xbf16>, vector<64x128xf32> -> vector<64x128xf32>
    %c0_179 = arith.constant 0 : index
    %c7_180 = arith.constant 7 : index
    %c0_181 = arith.constant 0 : index
    %c0_182 = arith.constant 0 : index
    %279 = vector.load %arg8[%c0_179, %c7_180, %c0_181, %c0_182] : memref<1x10x64x1xf32, #tpu.memory_space<vmem>>, vector<1x1x64x1xf32>
    %280 = vector.shape_cast %279 : vector<1x1x64x1xf32> to vector<64x1xf32>
    %281 = vector.broadcast %280 : vector<64x1xf32> to vector<64x128xf32>
    %282 = arith.addf %278, %281 : vector<64x128xf32>
    %283 = arith.addf %264, %282 : vector<64x128xf32>
    %cst_183 = arith.constant 0.000000e+00 : f32
    %284 = vector.shape_cast %16 : vector<1x128xi1> to vector<1x128xi1>
    %285 = vector.broadcast %284 : vector<1x128xi1> to vector<64x128xi1>
    %286 = vector.broadcast %cst_183 : f32 to vector<64x128xf32>
    %287 = arith.select %285, %283, %286 : vector<64x128xi1>, vector<64x128xf32>
    %c0_184 = arith.constant 0 : index
    %c8 = arith.constant 8 : index
    %c0_185 = arith.constant 0 : index
    %c0_186 = arith.constant 0 : index
    %288 = vector.load %arg5[%c0_184, %c8, %c0_185, %c0_186] : memref<1x10x64x64xbf16, #tpu.memory_space<vmem>>, vector<1x1x64x64xbf16>
    %289 = vector.shape_cast %288 : vector<1x1x64x64xbf16> to vector<64x64xbf16>
    %290 = arith.truncf %287 : vector<64x128xf32> to vector<64x128xbf16>
    %cst_187 = arith.constant dense<0.000000e+00> : vector<64x128xf32>
    %291 = tpu.matmul %289, %290, %cst_187 {dimension_numbers = #tpu.dot_dimension_numbers<[1], [0], [0], [1], [0, 0, 1, 1], [], []>} : vector<64x64xbf16>, vector<64x128xbf16>, vector<64x128xf32> -> vector<64x128xf32>
    %c0_188 = arith.constant 0 : index
    %c8_189 = arith.constant 8 : index
    %c0_190 = arith.constant 0 : index
    %c0_191 = arith.constant 0 : index
    %292 = vector.load %arg6[%c0_188, %c8_189, %c0_190, %c0_191] : memref<1x10x64x1xf32, #tpu.memory_space<vmem>>, vector<1x1x64x1xf32>
    %293 = vector.shape_cast %292 : vector<1x1x64x1xf32> to vector<64x1xf32>
    %294 = vector.broadcast %293 : vector<64x1xf32> to vector<64x128xf32>
    %295 = arith.addf %291, %294 : vector<64x128xf32>
    %cst_192 = arith.constant 0.000000e+00 : f32
    %296 = vector.broadcast %cst_192 : f32 to vector<64x128xf32>
    %297 = arith.maximumf %295, %296 : vector<64x128xf32>
    %c0_193 = arith.constant 0 : index
    %c8_194 = arith.constant 8 : index
    %c0_195 = arith.constant 0 : index
    %c0_196 = arith.constant 0 : index
    %298 = vector.load %arg7[%c0_193, %c8_194, %c0_195, %c0_196] : memref<1x10x64x64xbf16, #tpu.memory_space<vmem>>, vector<1x1x64x64xbf16>
    %299 = vector.shape_cast %298 : vector<1x1x64x64xbf16> to vector<64x64xbf16>
    %300 = arith.truncf %297 : vector<64x128xf32> to vector<64x128xbf16>
    %cst_197 = arith.constant dense<0.000000e+00> : vector<64x128xf32>
    %301 = tpu.matmul %299, %300, %cst_197 {dimension_numbers = #tpu.dot_dimension_numbers<[1], [0], [0], [1], [0, 0, 1, 1], [], []>} : vector<64x64xbf16>, vector<64x128xbf16>, vector<64x128xf32> -> vector<64x128xf32>
    %c0_198 = arith.constant 0 : index
    %c8_199 = arith.constant 8 : index
    %c0_200 = arith.constant 0 : index
    %c0_201 = arith.constant 0 : index
    %302 = vector.load %arg8[%c0_198, %c8_199, %c0_200, %c0_201] : memref<1x10x64x1xf32, #tpu.memory_space<vmem>>, vector<1x1x64x1xf32>
    %303 = vector.shape_cast %302 : vector<1x1x64x1xf32> to vector<64x1xf32>
    %304 = vector.broadcast %303 : vector<64x1xf32> to vector<64x128xf32>
    %305 = arith.addf %301, %304 : vector<64x128xf32>
    %306 = arith.addf %287, %305 : vector<64x128xf32>
    %cst_202 = arith.constant 0.000000e+00 : f32
    %307 = vector.shape_cast %16 : vector<1x128xi1> to vector<1x128xi1>
    %308 = vector.broadcast %307 : vector<1x128xi1> to vector<64x128xi1>
    %309 = vector.broadcast %cst_202 : f32 to vector<64x128xf32>
    %310 = arith.select %308, %306, %309 : vector<64x128xi1>, vector<64x128xf32>
    %c0_203 = arith.constant 0 : index
    %c9 = arith.constant 9 : index
    %c0_204 = arith.constant 0 : index
    %c0_205 = arith.constant 0 : index
    %311 = vector.load %arg5[%c0_203, %c9, %c0_204, %c0_205] : memref<1x10x64x64xbf16, #tpu.memory_space<vmem>>, vector<1x1x64x64xbf16>
    %312 = vector.shape_cast %311 : vector<1x1x64x64xbf16> to vector<64x64xbf16>
    %313 = arith.truncf %310 : vector<64x128xf32> to vector<64x128xbf16>
    %cst_206 = arith.constant dense<0.000000e+00> : vector<64x128xf32>
    %314 = tpu.matmul %312, %313, %cst_206 {dimension_numbers = #tpu.dot_dimension_numbers<[1], [0], [0], [1], [0, 0, 1, 1], [], []>} : vector<64x64xbf16>, vector<64x128xbf16>, vector<64x128xf32> -> vector<64x128xf32>
    %c0_207 = arith.constant 0 : index
    %c9_208 = arith.constant 9 : index
    %c0_209 = arith.constant 0 : index
    %c0_210 = arith.constant 0 : index
    %315 = vector.load %arg6[%c0_207, %c9_208, %c0_209, %c0_210] : memref<1x10x64x1xf32, #tpu.memory_space<vmem>>, vector<1x1x64x1xf32>
    %316 = vector.shape_cast %315 : vector<1x1x64x1xf32> to vector<64x1xf32>
    %317 = vector.broadcast %316 : vector<64x1xf32> to vector<64x128xf32>
    %318 = arith.addf %314, %317 : vector<64x128xf32>
    %cst_211 = arith.constant 0.000000e+00 : f32
    %319 = vector.broadcast %cst_211 : f32 to vector<64x128xf32>
    %320 = arith.maximumf %318, %319 : vector<64x128xf32>
    %c0_212 = arith.constant 0 : index
    %c9_213 = arith.constant 9 : index
    %c0_214 = arith.constant 0 : index
    %c0_215 = arith.constant 0 : index
    %321 = vector.load %arg7[%c0_212, %c9_213, %c0_214, %c0_215] : memref<1x10x64x64xbf16, #tpu.memory_space<vmem>>, vector<1x1x64x64xbf16>
    %322 = vector.shape_cast %321 : vector<1x1x64x64xbf16> to vector<64x64xbf16>
    %323 = arith.truncf %320 : vector<64x128xf32> to vector<64x128xbf16>
    %cst_216 = arith.constant dense<0.000000e+00> : vector<64x128xf32>
    %324 = tpu.matmul %322, %323, %cst_216 {dimension_numbers = #tpu.dot_dimension_numbers<[1], [0], [0], [1], [0, 0, 1, 1], [], []>} : vector<64x64xbf16>, vector<64x128xbf16>, vector<64x128xf32> -> vector<64x128xf32>
    %c0_217 = arith.constant 0 : index
    %c9_218 = arith.constant 9 : index
    %c0_219 = arith.constant 0 : index
    %c0_220 = arith.constant 0 : index
    %325 = vector.load %arg8[%c0_217, %c9_218, %c0_219, %c0_220] : memref<1x10x64x1xf32, #tpu.memory_space<vmem>>, vector<1x1x64x1xf32>
    %326 = vector.shape_cast %325 : vector<1x1x64x1xf32> to vector<64x1xf32>
    %327 = vector.broadcast %326 : vector<64x1xf32> to vector<64x128xf32>
    %328 = arith.addf %324, %327 : vector<64x128xf32>
    %329 = arith.addf %310, %328 : vector<64x128xf32>
    %cst_221 = arith.constant 0.000000e+00 : f32
    %330 = vector.shape_cast %16 : vector<1x128xi1> to vector<1x128xi1>
    %331 = vector.broadcast %330 : vector<1x128xi1> to vector<64x128xi1>
    %332 = vector.broadcast %cst_221 : f32 to vector<64x128xf32>
    %333 = arith.select %331, %329, %332 : vector<64x128xi1>, vector<64x128xf32>
    %c0_222 = arith.constant 0 : index
    %c0_223 = arith.constant 0 : index
    %c0_224 = arith.constant 0 : index
    %334 = vector.load %arg9[%c0_222, %c0_223, %c0_224] : memref<1x16x64xbf16, #tpu.memory_space<vmem>>, vector<1x16x64xbf16>
    %335 = vector.shape_cast %334 : vector<1x16x64xbf16> to vector<16x64xbf16>
    %336 = arith.truncf %333 : vector<64x128xf32> to vector<64x128xbf16>
    %cst_225 = arith.constant dense<0.000000e+00> : vector<16x128xf32>
    %337 = tpu.matmul %335, %336, %cst_225 {dimension_numbers = #tpu.dot_dimension_numbers<[1], [0], [0], [1], [0, 0, 1, 1], [], []>} : vector<16x64xbf16>, vector<64x128xbf16>, vector<16x128xf32> -> vector<16x128xf32>
    %c0_226 = arith.constant 0 : index
    %c0_227 = arith.constant 0 : index
    %c0_228 = arith.constant 0 : index
    %338 = vector.load %arg10[%c0_226, %c0_227, %c0_228] : memref<1x16x1xf32, #tpu.memory_space<vmem>>, vector<1x16x1xf32>
    %339 = vector.shape_cast %338 : vector<1x16x1xf32> to vector<16x1xf32>
    %340 = vector.broadcast %339 : vector<16x1xf32> to vector<16x128xf32>
    %341 = arith.addf %337, %340 : vector<16x128xf32>
    %c0_229 = arith.constant 0 : index
    %c0_230 = arith.constant 0 : index
    %c0_231 = arith.constant 0 : index
    %342 = vector.load %arg11[%c0_229, %c0_230, %c0_231] : memref<1x16x128xf32, #tpu.memory_space<vmem>>, vector<1x16x128xf32>
    %343 = vector.shape_cast %342 : vector<1x16x128xf32> to vector<16x128xf32>
    %344 = vector.shape_cast %341 : vector<16x128xf32> to vector<1x16x128xf32>
    tpu.vector_store %arg11[%c0_229, %c0_230, %c0_231], %344 {strides = array<i32>} : memref<1x16x128xf32, #tpu.memory_space<vmem>>, vector<1x16x128xf32>,
    %c0_232 = arith.constant 0 : index
    %c0_233 = arith.constant 0 : index
    %345 = vector.load %arg12[%c0_232, %c0_233] : memref<16x128xf32, #tpu.memory_space<vmem>>, vector<16x128xf32>
    tpu.vector_store %arg12[%c0_232, %c0_233], %341 {strides = array<i32>} : memref<16x128xf32, #tpu.memory_space<vmem>>, vector<16x128xf32>,
    return
  }
  func.func @transform_0(%arg0: i32) -> (i32, i32) {
    %c0_i32 = arith.constant 0 : i32
    %c0_i32_0 = arith.constant 0 : i32
    %c0_i32_1 = arith.constant 0 : i32
    return %c0_i32, %c0_i32_0 : i32, i32
  }
  func.func @transform_1(%arg0: i32) -> (i32, i32, i32) {
    %c0_i32 = arith.constant 0 : i32
    %c0_i32_0 = arith.constant 0 : i32
    %c0_i32_1 = arith.constant 0 : i32
    return %arg0, %c0_i32, %c0_i32_0 : i32, i32, i32
  }
  func.func @transform_2(%arg0: i32) -> (i32, i32, i32) {
    %c0_i32 = arith.constant 0 : i32
    %c0_i32_0 = arith.constant 0 : i32
    %c0_i32_1 = arith.constant 0 : i32
    return %arg0, %c0_i32, %c0_i32_0 : i32, i32, i32
  }
  func.func @transform_3(%arg0: i32) -> (i32, i32, i32, i32) {
    %c0_i32 = arith.constant 0 : i32
    %c0_i32_0 = arith.constant 0 : i32
    %c0_i32_1 = arith.constant 0 : i32
    %c0_i32_2 = arith.constant 0 : i32
    return %arg0, %c0_i32, %c0_i32_0, %c0_i32_1 : i32, i32, i32, i32
  }
  func.func @transform_4(%arg0: i32) -> (i32, i32, i32, i32) {
    %c0_i32 = arith.constant 0 : i32
    %c0_i32_0 = arith.constant 0 : i32
    %c0_i32_1 = arith.constant 0 : i32
    %c0_i32_2 = arith.constant 0 : i32
    return %arg0, %c0_i32, %c0_i32_0, %c0_i32_1 : i32, i32, i32, i32
  }
  func.func @transform_5(%arg0: i32) -> (i32, i32, i32, i32) {
    %c0_i32 = arith.constant 0 : i32
    %c0_i32_0 = arith.constant 0 : i32
    %c0_i32_1 = arith.constant 0 : i32
    %c0_i32_2 = arith.constant 0 : i32
    return %arg0, %c0_i32, %c0_i32_0, %c0_i32_1 : i32, i32, i32, i32
  }
  func.func @transform_6(%arg0: i32) -> (i32, i32, i32, i32) {
    %c0_i32 = arith.constant 0 : i32
    %c0_i32_0 = arith.constant 0 : i32
    %c0_i32_1 = arith.constant 0 : i32
    %c0_i32_2 = arith.constant 0 : i32
    return %arg0, %c0_i32, %c0_i32_0, %c0_i32_1 : i32, i32, i32, i32
  }
  func.func @transform_7(%arg0: i32) -> (i32, i32, i32, i32) {
    %c0_i32 = arith.constant 0 : i32
    %c0_i32_0 = arith.constant 0 : i32
    %c0_i32_1 = arith.constant 0 : i32
    %c0_i32_2 = arith.constant 0 : i32
    return %arg0, %c0_i32, %c0_i32_0, %c0_i32_1 : i32, i32, i32, i32
  }
  func.func @transform_8(%arg0: i32) -> (i32, i32, i32) {
    %c0_i32 = arith.constant 0 : i32
    %c0_i32_0 = arith.constant 0 : i32
    %c0_i32_1 = arith.constant 0 : i32
    return %arg0, %c0_i32, %c0_i32_0 : i32, i32, i32
  }
  func.func @transform_9(%arg0: i32) -> (i32, i32, i32) {
    %c0_i32 = arith.constant 0 : i32
    %c0_i32_0 = arith.constant 0 : i32
    %c0_i32_1 = arith.constant 0 : i32
    return %arg0, %c0_i32, %c0_i32_0 : i32, i32, i32
  }
  func.func @transform_10(%arg0: i32) -> (i32, i32, i32) {
    %c0_i32 = arith.constant 0 : i32
    %c0_i32_0 = arith.constant 0 : i32
    %c0_i32_1 = arith.constant 0 : i32
    return %arg0, %c0_i32, %c0_i32_0 : i32, i32, i32
  }
}

</mosaic_0001>

<llo_original>
// kernel: spell_forward.3
$region0: #{spell_forward.3}
  #allocation0 [shape = 'u32[]', space=smem, size = 0x4, offset = 0x4, fixed_abs, tag = 'smem constant byte address 0x4 - core index']
  #allocation1 [shape = 'u32[72,128]{1,0:T(1,128)}', space=vmem, size = 0x9000, scoped, tag = 'internal scratch']
  %s0 = inlined_call_operand.vmem [shape: f32[32,128], index: 0, kind: input, shape index: {}]
  %s1 = inlined_call_operand.vmem [shape: bf16[32,32], index: 1, kind: input, shape index: {}]
  %s2 = inlined_call_operand.vmem [shape: f32[32,1], index: 2, kind: input, shape index: {}]
  %s3 = inlined_call_operand.vmem [shape: f32[32,1], index: 3, kind: input, shape index: {}]
  %s4 = inlined_call_operand.vmem [shape: f32[32,1], index: 4, kind: input, shape index: {}]
  %s5 = inlined_call_operand.vmem [shape: bf16[192,32], index: 5, kind: input, shape index: {}]
  %s6 = inlined_call_operand.vmem [shape: f32[192,1], index: 6, kind: input, shape index: {}]
  %s7 = inlined_call_operand.vmem [shape: f32[192,128], index: 7, kind: output, shape index: {}]
  %s8 = sld [smem:[#allocation0]]
  $region38: #{spell_forward.3} parent=0
    _
  %s10 = ssub.s32 1, %s8
  %s11 = scalar_select 0, %s10, %s8
  // Predicated region
  $region2: #{spell_forward.3} parent=0 // pred_check
    _
  $region3: #{spell_forward.3} parent=0 // pred_check_branch
    %13 = sbr.rel (0) target = $region5
  $region4: #{spell_forward.3} parent=0 // pred_region
    _
  $region5: #{spell_forward.3} parent=0 // pred_fallthru
    _
  // Predicated region
  $region6: #{spell_forward.3} parent=0 // pred_check
    _
  $region7: #{spell_forward.3} parent=0 // pred_check_branch
    %15 = sbr.rel (0) target = $region9
  $region8: #{spell_forward.3} parent=0 // pred_region
    _
  $region9: #{spell_forward.3} parent=0 // pred_fallthru
    _
  // Predicated region
  $region10: #{spell_forward.3} parent=0 // pred_check
    _
  $region11: #{spell_forward.3} parent=0 // pred_check_branch
    %17 = sbr.rel (0) target = $region13
  $region12: #{spell_forward.3} parent=0 // pred_region
    _
  $region13: #{spell_forward.3} parent=0 // pred_fallthru
    _
  // Predicated region
  $region14: #{spell_forward.3} parent=0 // pred_check
    _
  $region15: #{spell_forward.3} parent=0 // pred_check_branch
    %19 = sbr.rel (0) target = $region17
  $region16: #{spell_forward.3} parent=0 // pred_region
    _
  $region17: #{spell_forward.3} parent=0 // pred_fallthru
    _
  // Predicated region
  $region18: #{spell_forward.3} parent=0 // pred_check
    _
  $region19: #{spell_forward.3} parent=0 // pred_check_branch
    %21 = sbr.rel (0) target = $region21
  $region20: #{spell_forward.3} parent=0 // pred_region
    _
  $region21: #{spell_forward.3} parent=0 // pred_fallthru
    _
  // Predicated region
  $region22: #{spell_forward.3} parent=0 // pred_check
    _
  $region23: #{spell_forward.3} parent=0 // pred_check_branch
    %23 = sbr.rel (0) target = $region25
  $region24: #{spell_forward.3} parent=0 // pred_region
    _
  $region25: #{spell_forward.3} parent=0 // pred_fallthru
    _
  // Predicated region
  $region26: #{spell_forward.3} parent=0 // pred_check
    _
  $region27: #{spell_forward.3} parent=0 // pred_check_branch
    %25 = sbr.rel (0) target = $region29
  $region28: #{spell_forward.3} parent=0 // pred_region
    _
  $region29: #{spell_forward.3} parent=0 // pred_fallthru
    _
  %v27 = vld [vmem:[%s0] sm:$0xff]
  %v28 = vld [vmem:[%s0 + $0x8] sm:$0xff]
  %v29 = vld [vmem:[%s0 + $0x10] sm:$0xff]
  %v30 = vld [vmem:[%s0 + $0x18] sm:$0xff]
  %v31 = vpack.c.bf16 %v28, %v27
  %v32 = vpack.c.bf16 %v30, %v29
  %v33 = vld [vmem:[%s1] sm:$0xf]
  %v34 = vld [vmem:[%s1 + $0x4] sm:$0xf]
  %v35 = vld [vmem:[%s1 + $0x8] sm:$0xf]
  %v36 = vld [vmem:[%s1 + $0xc] sm:$0xf]
  %v37 = vld [vmem:[%s2] sm:$0xff]
  %v38 = vld [vmem:[%s2 + $0x8] sm:$0xff]
  %v39 = vld [vmem:[%s2 + $0x10] sm:$0xff]
  %v40 = vld [vmem:[%s2 + $0x18] sm:$0xff]
  %42 = vset.pattern.permute.xlu0 0
  %43 = vperm.xlu0 %42, %v37
  %v44 = vpop.permute.xlu0 %43
  %47 = vset.pattern.permute.xlu0 0
  %48 = vperm.xlu0 %47, %v38
  %v49 = vpop.permute.xlu0 %48
  %52 = vset.pattern.permute.xlu0 0
  %53 = vperm.xlu0 %52, %v39
  %v54 = vpop.permute.xlu0 %53
  %57 = vset.pattern.permute.xlu0 0
  %58 = vperm.xlu0 %57, %v40
  %v59 = vpop.permute.xlu0 %58
  %v65 = vunpack.c.l.b16 %v33
  %v66 = vunpack.c.l.b16 %v34
  %v67 = vunpack.c.l.b16 %v35
  %v68 = vunpack.c.l.b16 %v36
  %v69 = vpack.c.b16 %v66, %v65
  %v70 = vpack.c.b16 %v68, %v67
  %vm71 = vcmask 261120
  %v73 = vsel %vm71, %v69, 0
  %v76 = vsel %vm71, %v70, 0
  %78 = vmatpush.bf16.msra.mxu0 0
  %79 = vmatpush.bf16.msra.mxu0 0
  %80 = vmatpush.bf16.msra.mxu0 0
  %81 = vmatpush.bf16.msra.mxu0 0
  %82 = vmatpush.bf16.msra.mxu0 0
  %83 = vmatpush.bf16.msra.mxu0 0
  %84 = vmatpush.bf16.msra.mxu0 %v32
  %85 = vmatpush.bf16.msra.mxu0 %v31
  %86 = vmatmul.bf16.gmra.mxu0 %v73
  %v87 = vpop.f32.mrf.mxu0
  %v88 = vadd.f32 %v44, %v87
  %v89 = vpop.f32.mrf.mxu0
  %v90 = vadd.f32 %v49, %v89
  %91 = vmatmul.bf16.gmra.mxu0 %v76
  %v92 = vpop.f32.mrf.mxu0
  %v93 = vadd.f32 %v54, %v92
  %v94 = vpop.f32.mrf.mxu0
  %v95 = vadd.f32 %v59, %v94
  %96 = vdwg.mxu0
  %v97 = vld [vmem:[%s3] sm:$0xff]
  %v98 = vld [vmem:[%s3 + $0x8] sm:$0xff]
  %v99 = vld [vmem:[%s3 + $0x10] sm:$0xff]
  %v100 = vld [vmem:[%s3 + $0x18] sm:$0xff]
  %102 = vset.pattern.permute.xlu0 0
  %103 = vperm.xlu0 %102, %v97
  %v104 = vpop.permute.xlu0 %103
  %107 = vset.pattern.permute.xlu0 0
  %108 = vperm.xlu0 %107, %v98
  %v109 = vpop.permute.xlu0 %108
  %112 = vset.pattern.permute.xlu0 0
  %113 = vperm.xlu0 %112, %v99
  %v114 = vpop.permute.xlu0 %113
  %117 = vset.pattern.permute.xlu0 0
  %118 = vperm.xlu0 %117, %v100
  %v119 = vpop.permute.xlu0 %118
  %v121 = vmul.f32 %v88, %v104
  %v122 = vmul.f32 %v90, %v109
  %v123 = vmul.f32 %v93, %v114
  %v124 = vmul.f32 %v95, %v119
  %v125 = vld [vmem:[%s4] sm:$0xff]
  %v126 = vld [vmem:[%s4 + $0x8] sm:$0xff]
  %v127 = vld [vmem:[%s4 + $0x10] sm:$0xff]
  %v128 = vld [vmem:[%s4 + $0x18] sm:$0xff]
  %130 = vset.pattern.permute.xlu0 0
  %131 = vperm.xlu0 %130, %v125
  %v132 = vpop.permute.xlu0 %131
  %135 = vset.pattern.permute.xlu0 0
  %136 = vperm.xlu0 %135, %v126
  %v137 = vpop.permute.xlu0 %136
  %140 = vset.pattern.permute.xlu0 0
  %141 = vperm.xlu0 %140, %v127
  %v142 = vpop.permute.xlu0 %141
  %145 = vset.pattern.permute.xlu0 0
  %146 = vperm.xlu0 %145, %v128
  %v147 = vpop.permute.xlu0 %146
  %v149 = vadd.f32 %v121, %v132
  %v150 = vadd.f32 %v122, %v137
  %v151 = vadd.f32 %v123, %v142
  %v152 = vadd.f32 %v124, %v147
  %v153 = vmax.f32 %v149, 0.0
  %v154 = vmax.f32 %v150, 0.0
  %v155 = vmax.f32 %v151, 0.0
  %v156 = vmax.f32 %v152, 0.0
  %v157 = vld [vmem:[%s5] sm:$0xf]
  %v158 = vld [vmem:[%s5 + $0x4] sm:$0xf]
  %v159 = vld [vmem:[%s5 + $0x8] sm:$0xf]
  %v160 = vld [vmem:[%s5 + $0xc] sm:$0xf]
  %v161 = vld [vmem:[%s5 + $0x10] sm:$0xf]
  %v162 = vld [vmem:[%s5 + $0x14] sm:$0xf]
  %v163 = vld [vmem:[%s5 + $0x18] sm:$0xf]
  %v164 = vld [vmem:[%s5 + $0x1c] sm:$0xf]
  %v165 = vld [vmem:[%s5 + $0x20] sm:$0xf]
  %v166 = vld [vmem:[%s5 + $0x24] sm:$0xf]
  %v167 = vld [vmem:[%s5 + $0x28] sm:$0xf]
  %v168 = vld [vmem:[%s5 + $0x2c] sm:$0xf]
  %v169 = vld [vmem:[%s5 + $0x30] sm:$0xf]
  %v170 = vld [vmem:[%s5 + $0x34] sm:$0xf]
  %v171 = vld [vmem:[%s5 + $0x38] sm:$0xf]
  %v172 = vld [vmem:[%s5 + $0x3c] sm:$0xf]
  %v173 = vld [vmem:[%s5 + $0x40] sm:$0xf]
  %v174 = vld [vmem:[%s5 + $0x44] sm:$0xf]
  %v175 = vld [vmem:[%s5 + $0x48] sm:$0xf]
  %v176 = vld [vmem:[%s5 + $0x4c] sm:$0xf]
  %v177 = vld [vmem:[%s5 + $0x50] sm:$0xf]
  %v178 = vld [vmem:[%s5 + $0x54] sm:$0xf]
  %v179 = vld [vmem:[%s5 + $0x58] sm:$0xf]
  %v180 = vld [vmem:[%s5 + $0x5c] sm:$0xf]
  %v181 = vpack.c.bf16 %v154, %v153
  %v182 = vpack.c.bf16 %v156, %v155
  %v183 = vld [vmem:[%s6] sm:$0xff]
  %v184 = vld [vmem:[%s6 + $0x8] sm:$0xff]
  %v185 = vld [vmem:[%s6 + $0x10] sm:$0xff]
  %v186 = vld [vmem:[%s6 + $0x18] sm:$0xff]
  %v187 = vld [vmem:[%s6 + $0x20] sm:$0xff]
  %v188 = vld [vmem:[%s6 + $0x28] sm:$0xff]
  %v189 = vld [vmem:[%s6 + $0x30] sm:$0xff]
  %v190 = vld [vmem:[%s6 + $0x38] sm:$0xff]
  %v191 = vld [vmem:[%s6 + $0x40] sm:$0xff]
  %v192 = vld [vmem:[%s6 + $0x48] sm:$0xff]
  %v193 = vld [vmem:[%s6 + $0x50] sm:$0xff]
  %v194 = vld [vmem:[%s6 + $0x58] sm:$0xff]
  %v195 = vld [vmem:[%s6 + $0x60] sm:$0xff]
  %v196 = vld [vmem:[%s6 + $0x68] sm:$0xff]
  %v197 = vld [vmem:[%s6 + $0x70] sm:$0xff]
  %v198 = vld [vmem:[%s6 + $0x78] sm:$0xff]
  %v199 = vld [vmem:[%s6 + $0x80] sm:$0xff]
  %v200 = vld [vmem:[%s6 + $0x88] sm:$0xff]
  %v201 = vld [vmem:[%s6 + $0x90] sm:$0xff]
  %v202 = vld [vmem:[%s6 + $0x98] sm:$0xff]
  %v203 = vld [vmem:[%s6 + $0xa0] sm:$0xff]
  %v204 = vld [vmem:[%s6 + $0xa8] sm:$0xff]
  %v205 = vld [vmem:[%s6 + $0xb0] sm:$0xff]
  %v206 = vld [vmem:[%s6 + $0xb8] sm:$0xff]
  %208 = vset.pattern.permute.xlu0 0
  %209 = vperm.xlu0 %208, %v183
  %v210 = vpop.permute.xlu0 %209
  %213 = vset.pattern.permute.xlu0 0
  %214 = vperm.xlu0 %213, %v184
  %v215 = vpop.permute.xlu0 %214
  %218 = vset.pattern.permute.xlu0 0
  %219 = vperm.xlu0 %218, %v185
  %v220 = vpop.permute.xlu0 %219
  %223 = vset.pattern.permute.xlu0 0
  %224 = vperm.xlu0 %223, %v186
  %v225 = vpop.permute.xlu0 %224
  %228 = vset.pattern.permute.xlu0 0
  %229 = vperm.xlu0 %228, %v187
  %v230 = vpop.permute.xlu0 %229
  %233 = vset.pattern.permute.xlu0 0
  %234 = vperm.xlu0 %233, %v188
  %v235 = vpop.permute.xlu0 %234
  %238 = vset.pattern.permute.xlu0 0
  %239 = vperm.xlu0 %238, %v189
  %v240 = vpop.permute.xlu0 %239
  %243 = vset.pattern.permute.xlu0 0
  %244 = vperm.xlu0 %243, %v190
  %v245 = vpop.permute.xlu0 %244
  %248 = vset.pattern.permute.xlu0 0
  %249 = vperm.xlu0 %248, %v191
  %v250 = vpop.permute.xlu0 %249
  %253 = vset.pattern.permute.xlu0 0
  %254 = vperm.xlu0 %253, %v192
  %v255 = vpop.permute.xlu0 %254
  %258 = vset.pattern.permute.xlu0 0
  %259 = vperm.xlu0 %258, %v193
  %v260 = vpop.permute.xlu0 %259
  %263 = vset.pattern.permute.xlu0 0
  %264 = vperm.xlu0 %263, %v194
  %v265 = vpop.permute.xlu0 %264
  %268 = vset.pattern.permute.xlu0 0
  %269 = vperm.xlu0 %268, %v195
  %v270 = vpop.permute.xlu0 %269
  %273 = vset.pattern.permute.xlu0 0
  %274 = vperm.xlu0 %273, %v196
  %v275 = vpop.permute.xlu0 %274
  %278 = vset.pattern.permute.xlu0 0
  %279 = vperm.xlu0 %278, %v197
  %v280 = vpop.permute.xlu0 %279
  %283 = vset.pattern.permute.xlu0 0
  %284 = vperm.xlu0 %283, %v198
  %v285 = vpop.permute.xlu0 %284
  %288 = vset.pattern.permute.xlu0 0
  %289 = vperm.xlu0 %288, %v199
  %v290 = vpop.permute.xlu0 %289
  %293 = vset.pattern.permute.xlu0 0
  %294 = vperm.xlu0 %293, %v200
  %v295 = vpop.permute.xlu0 %294
  %298 = vset.pattern.permute.xlu0 0
  %299 = vperm.xlu0 %298, %v201
  %v300 = vpop.permute.xlu0 %299
  %303 = vset.pattern.permute.xlu0 0
  %304 = vperm.xlu0 %303, %v202
  %v305 = vpop.permute.xlu0 %304
  %308 = vset.pattern.permute.xlu0 0
  %309 = vperm.xlu0 %308, %v203
  %v310 = vpop.permute.xlu0 %309
  %313 = vset.pattern.permute.xlu0 0
  %314 = vperm.xlu0 %313, %v204
  %v315 = vpop.permute.xlu0 %314
  %318 = vset.pattern.permute.xlu0 0
  %319 = vperm.xlu0 %318, %v205
  %v320 = vpop.permute.xlu0 %319
  %323 = vset.pattern.permute.xlu0 0
  %324 = vperm.xlu0 %323, %v206
  %v325 = vpop.permute.xlu0 %324
  %v351 = vunpack.c.l.b16 %v157
  %v352 = vunpack.c.l.b16 %v158
  %v353 = vunpack.c.l.b16 %v159
  %v354 = vunpack.c.l.b16 %v160
  %v355 = vunpack.c.l.b16 %v161
  %v356 = vunpack.c.l.b16 %v162
  %v357 = vunpack.c.l.b16 %v163
  %v358 = vunpack.c.l.b16 %v164
  %v359 = vunpack.c.l.b16 %v165
  %v360 = vunpack.c.l.b16 %v166
  %v361 = vunpack.c.l.b16 %v167
  %v362 = vunpack.c.l.b16 %v168
  %v363 = vunpack.c.l.b16 %v169
  %v364 = vunpack.c.l.b16 %v170
  %v365 = vunpack.c.l.b16 %v171
  %v366 = vunpack.c.l.b16 %v172
  %v367 = vunpack.c.l.b16 %v173
  %v368 = vunpack.c.l.b16 %v174
  %v369 = vunpack.c.l.b16 %v175
  %v370 = vunpack.c.l.b16 %v176
  %v371 = vunpack.c.l.b16 %v177
  %v372 = vunpack.c.l.b16 %v178
  %v373 = vunpack.c.l.b16 %v179
  %v374 = vunpack.c.l.b16 %v180
  %v375 = vpack.c.b16 %v352, %v351
  %v376 = vpack.c.b16 %v354, %v353
  %v377 = vpack.c.b16 %v356, %v355
  %v378 = vpack.c.b16 %v358, %v357
  %v379 = vpack.c.b16 %v360, %v359
  %v380 = vpack.c.b16 %v362, %v361
  %v381 = vpack.c.b16 %v364, %v363
  %v382 = vpack.c.b16 %v366, %v365
  %v383 = vpack.c.b16 %v368, %v367
  %v384 = vpack.c.b16 %v370, %v369
  %v385 = vpack.c.b16 %v372, %v371
  %v386 = vpack.c.b16 %v374, %v373
  %v388 = vsel %vm71, %v375, 0
  %v391 = vsel %vm71, %v376, 0
  %v394 = vsel %vm71, %v377, 0
  %v397 = vsel %vm71, %v378, 0
  %v400 = vsel %vm71, %v379, 0
  %v403 = vsel %vm71, %v380, 0
  %v406 = vsel %vm71, %v381, 0
  %v409 = vsel %vm71, %v382, 0
  %v412 = vsel %vm71, %v383, 0
  %v415 = vsel %vm71, %v384, 0
  %v418 = vsel %vm71, %v385, 0
  %v421 = vsel %vm71, %v386, 0
  %423 = vmatpush.bf16.msra.mxu0 0
  %424 = vmatpush.bf16.msra.mxu0 0
  %425 = vmatpush.bf16.msra.mxu0 0
  %426 = vmatpush.bf16.msra.mxu0 0
  %427 = vmatpush.bf16.msra.mxu0 0
  %428 = vmatpush.bf16.msra.mxu0 0
  %429 = vmatpush.bf16.msra.mxu0 %v182
  %430 = vmatpush.bf16.msra.mxu0 %v181
  %431 = vmatmul.bf16.gmra.mxu0 %v388
  %v432 = vpop.f32.mrf.mxu0
  %v433 = vadd.f32 %v210, %v432
  %v434 = vpop.f32.mrf.mxu0
  %v435 = vadd.f32 %v215, %v434
  %436 = vmatmul.bf16.gmra.mxu0 %v391
  %v437 = vpop.f32.mrf.mxu0
  %v438 = vadd.f32 %v220, %v437
  %v439 = vpop.f32.mrf.mxu0
  %v440 = vadd.f32 %v225, %v439
  %441 = vmatmul.bf16.gmra.mxu0 %v394
  %v442 = vpop.f32.mrf.mxu0
  %v443 = vadd.f32 %v230, %v442
  %v444 = vpop.f32.mrf.mxu0
  %v445 = vadd.f32 %v235, %v444
  %446 = vmatmul.bf16.gmra.mxu0 %v397
  %v447 = vpop.f32.mrf.mxu0
  %v448 = vadd.f32 %v240, %v447
  %v449 = vpop.f32.mrf.mxu0
  %v450 = vadd.f32 %v245, %v449
  %451 = vmatmul.bf16.gmra.mxu0 %v400
  %v452 = vpop.f32.mrf.mxu0
  %v453 = vadd.f32 %v250, %v452
  %v454 = vpop.f32.mrf.mxu0
  %v455 = vadd.f32 %v255, %v454
  %456 = vmatmul.bf16.gmra.mxu0 %v403
  %v457 = vpop.f32.mrf.mxu0
  %v458 = vadd.f32 %v260, %v457
  %v459 = vpop.f32.mrf.mxu0
  %v460 = vadd.f32 %v265, %v459
  %461 = vmatmul.bf16.gmra.mxu0 %v406
  %v462 = vpop.f32.mrf.mxu0
  %v463 = vadd.f32 %v270, %v462
  %v464 = vpop.f32.mrf.mxu0
  %v465 = vadd.f32 %v275, %v464
  %466 = vmatmul.bf16.gmra.mxu0 %v409
  %v467 = vpop.f32.mrf.mxu0
  %v468 = vadd.f32 %v280, %v467
  %v469 = vpop.f32.mrf.mxu0
  %v470 = vadd.f32 %v285, %v469
  %471 = vmatmul.bf16.gmra.mxu0 %v412
  %v472 = vpop.f32.mrf.mxu0
  %v473 = vadd.f32 %v290, %v472
  %v474 = vpop.f32.mrf.mxu0
  %v475 = vadd.f32 %v295, %v474
  %476 = vmatmul.bf16.gmra.mxu0 %v415
  %v477 = vpop.f32.mrf.mxu0
  %v478 = vadd.f32 %v300, %v477
  %v479 = vpop.f32.mrf.mxu0
  %v480 = vadd.f32 %v305, %v479
  %481 = vmatmul.bf16.gmra.mxu0 %v418
  %v482 = vpop.f32.mrf.mxu0
  %v483 = vadd.f32 %v310, %v482
  %v484 = vpop.f32.mrf.mxu0
  %v485 = vadd.f32 %v315, %v484
  %486 = vmatmul.bf16.gmra.mxu0 %v421
  %v487 = vpop.f32.mrf.mxu0
  %v488 = vadd.f32 %v320, %v487
  %v489 = vpop.f32.mrf.mxu0
  %v490 = vadd.f32 %v325, %v489
  %491 = vdwg.mxu0
  %492 = vst [vmem:[%s7] sm:$0xff] %v433
  %493 = vst [vmem:[%s7 + $0x8] sm:$0xff] %v435
  %494 = vst [vmem:[%s7 + $0x10] sm:$0xff] %v438
  %495 = vst [vmem:[%s7 + $0x18] sm:$0xff] %v440
  %496 = vst [vmem:[%s7 + $0x20] sm:$0xff] %v443
  %497 = vst [vmem:[%s7 + $0x28] sm:$0xff] %v445
  %498 = vst [vmem:[%s7 + $0x30] sm:$0xff] %v448
  %499 = vst [vmem:[%s7 + $0x38] sm:$0xff] %v450
  %500 = vst [vmem:[%s7 + $0x40] sm:$0xff] %v453
  %501 = vst [vmem:[%s7 + $0x48] sm:$0xff] %v455
  %502 = vst [vmem:[%s7 + $0x50] sm:$0xff] %v458
  %503 = vst [vmem:[%s7 + $0x58] sm:$0xff] %v460
  %504 = vst [vmem:[%s7 + $0x60] sm:$0xff] %v463
  %505 = vst [vmem:[%s7 + $0x68] sm:$0xff] %v465
  %506 = vst [vmem:[%s7 + $0x70] sm:$0xff] %v468
  %507 = vst [vmem:[%s7 + $0x78] sm:$0xff] %v470
  %508 = vst [vmem:[%s7 + $0x80] sm:$0xff] %v473
  %509 = vst [vmem:[%s7 + $0x88] sm:$0xff] %v475
  %510 = vst [vmem:[%s7 + $0x90] sm:$0xff] %v478
  %511 = vst [vmem:[%s7 + $0x98] sm:$0xff] %v480
  %512 = vst [vmem:[%s7 + $0xa0] sm:$0xff] %v483
  %513 = vst [vmem:[%s7 + $0xa8] sm:$0xff] %v485
  %514 = vst [vmem:[%s7 + $0xb0] sm:$0xff] %v488
  %515 = vst [vmem:[%s7 + $0xb8] sm:$0xff] %v490
  // Predicated region
  $region30: #{spell_forward.3} parent=0 // pred_check
    _
  $region31: #{spell_forward.3} parent=0 // pred_check_branch
    %517 = sbr.rel (0) target = $region33
  $region32: #{spell_forward.3} parent=0 // pred_region
    _
  $region33: #{spell_forward.3} parent=0 // pred_fallthru
    _
  // Predicated region
  $region34: #{spell_forward.3} parent=0 // pred_check
    _
  $region35: #{spell_forward.3} parent=0 // pred_check_branch
    %519 = sbr.rel (0) target = $region37
  $region36: #{spell_forward.3} parent=0 // pred_region
    _
  $region37: #{spell_forward.3} parent=0 // pred_fallthru
    _

// kernel: spell_forward.4
$region0: #{spell_forward.4}
  #allocation0 [shape = 'u32[]', space=smem, size = 0x4, offset = 0x4, fixed_abs, tag = 'smem constant byte address 0x4 - core index']
  #allocation1 [shape = 'u32[72,128]{1,0:T(1,128)}', space=vmem, size = 0x9000, scoped, tag = 'internal scratch']
  %s0 = inlined_call_operand.vmem [shape: f32[3,32,128], index: 0, kind: input, shape index: {}]
  %s1 = inlined_call_operand.vmem [shape: bf16[3,128,128], index: 1, kind: input, shape index: {}]
  %s2 = inlined_call_operand.vmem [shape: f32[3,32,1], index: 2, kind: input, shape index: {}]
  %s3 = inlined_call_operand.vmem [shape: f32[3,32,1], index: 3, kind: input, shape index: {}]
  %s4 = inlined_call_operand.vmem [shape: bf16[32,64], index: 4, kind: input, shape index: {}]
  %s5 = inlined_call_operand.vmem [shape: f32[32,1], index: 5, kind: input, shape index: {}]
  %s6 = inlined_call_operand.vmem [shape: f32[32,1], index: 6, kind: input, shape index: {}]
  %s7 = inlined_call_operand.vmem [shape: f32[32,1], index: 7, kind: input, shape index: {}]
  %s8 = inlined_call_operand.vmem [shape: bf16[3,16,64], index: 8, kind: input, shape index: {}]
  %s9 = inlined_call_operand.vmem [shape: f32[3,16,1], index: 9, kind: input, shape index: {}]
  %s10 = inlined_call_operand.vmem [shape: f32[3,16,128], index: 10, kind: output, shape index: {}]
  %s11 = sld [smem:[#allocation0]]
  $region73: #{spell_forward.4} parent=0
    _
  %s13 = ssub.s32 1, %s11
  %s14 = scalar_select 0, %s13, %s11
  loop: start=0, step=1, limit=5
  $region2: #{spell_forward.4} parent=0 // loop_pre_header
    _
  $region3: #{spell_forward.4} parent=0 // loop_header
    %s16 = sphi 0, %s20
    %p17 = scmp.ge.s32.totalorder %s16, 5
    %s26 = sphi 0, %s28
    %s29 = sphi 0, %s26
    %s30 = sphi 0, %s29
    %s46 = sphi 0, %s30
    %s52 = sphi 0, %s54
    %s55 = sphi 0, %s52
    %s56 = sphi 0, %s55
    %s72 = sphi 0, %s56
    %s78 = sphi 0, %s80
    %s81 = sphi 0, %s78
    %s82 = sphi 0, %s81
    %s98 = sphi 0, %s82
    %s104 = sphi 0, %s106
    %s107 = sphi 0, %s104
    %s108 = sphi 0, %s107
    %s124 = sphi 0, %s108
    %s128 = sphi 0, %s128
    %s130 = sphi 0, %s128
    %s131 = sphi 0, %s130
    %s145 = sphi 0, %s131
    %s149 = sphi 0, %s149
    %s151 = sphi 0, %s149
    %s152 = sphi 0, %s151
    %s166 = sphi 0, %s152
    %s170 = sphi 0, %s170
    %s172 = sphi 0, %s170
    %s173 = sphi 0, %s172
    %s187 = sphi 0, %s173
    %s191 = sphi 0, %s191
    %s193 = sphi 0, %s191
    %s194 = sphi 0, %s193
    %s208 = sphi 0, %s194
    %s214 = sphi 0, %s216
    %s217 = sphi 0, %s214
    %s218 = sphi 0, %s217
    %s234 = sphi 0, %s218
    %s240 = sphi 0, %s242
    %s243 = sphi 0, %s240
    %s244 = sphi 0, %s243
    %s260 = sphi 0, %s244
    %s266 = sphi 0, %s268
    %s269 = sphi 0, %s266
    %s270 = sphi 0, %s269
    %s286 = sphi 0, %s270
  $region4: #{spell_forward.4} parent=0 // loop_header_branch
    %19 = sbr.rel (%p17) target = $region8
  $region5: #{spell_forward.4} parent=0 // loop_body
    %s21 = ssub.s32 %s16, 1
    %s22 = ssub.s32 %s16, 2
    %s23 = sadd.s32 %s16, 1
    %s24 = ssub.s32 %s16, %s23
    %p25 = scmp.eq.s32.totalorder %s24, 0
    %s27 = sadd.s32 %s26, 1
    %s28 = scalar_select %p25, %s26, %s27
    %p31 = pneg %p25
    %p32 = scmp.eq.s32.totalorder %s16, 2
    %p33 = por %p31, %p32
    %p34 = scmp.ne.s32.totalorder %s26, %s29
    %p35 = scmp.eq.s32.totalorder %s16, 0
    %p36 = por %p34, %p35
    %p37 = scmp.ne.s32.totalorder %s26, %s29
    %p38 = scmp.eq.s32.totalorder %s21, 2
    %p39 = por %p37, %p38
    %p40 = scmp.ne.s32.totalorder %s29, %s30
    %p41 = scmp.eq.s32.totalorder %s21, 0
    %p42 = por %p40, %p41
    %p43 = scmp.ne.s32.totalorder %s29, %s30
    %p44 = scmp.eq.s32.totalorder %s22, 2
    %p45 = por %p43, %p44
    %p47 = scmp.ne.s32.totalorder %s30, %s46
    %p48 = scmp.eq.s32.totalorder %s22, 0
    %p49 = por %p47, %p48
    %s50 = ssub.s32 %s16, %s23
    %p51 = scmp.eq.s32.totalorder %s50, 0
    %s53 = sadd.s32 %s52, 1
    %s54 = scalar_select %p51, %s52, %s53
    %p57 = pneg %p51
    %p58 = scmp.eq.s32.totalorder %s16, 2
    %p59 = por %p57, %p58
    %p60 = scmp.ne.s32.totalorder %s52, %s55
    %p61 = scmp.eq.s32.totalorder %s16, 0
    %p62 = por %p60, %p61
    %p63 = scmp.ne.s32.totalorder %s52, %s55
    %p64 = scmp.eq.s32.totalorder %s21, 2
    %p65 = por %p63, %p64
    %p66 = scmp.ne.s32.totalorder %s55, %s56
    %p67 = scmp.eq.s32.totalorder %s21, 0
    %p68 = por %p66, %p67
    %p69 = scmp.ne.s32.totalorder %s55, %s56
    %p70 = scmp.eq.s32.totalorder %s22, 2
    %p71 = por %p69, %p70
    %p73 = scmp.ne.s32.totalorder %s56, %s72
    %p74 = scmp.eq.s32.totalorder %s22, 0
    %p75 = por %p73, %p74
    %s76 = ssub.s32 %s16, %s23
    %p77 = scmp.eq.s32.totalorder %s76, 0
    %s79 = sadd.s32 %s78, 1
    %s80 = scalar_select %p77, %s78, %s79
    %p83 = pneg %p77
    %p84 = scmp.eq.s32.totalorder %s16, 2
    %p85 = por %p83, %p84
    %p86 = scmp.ne.s32.totalorder %s78, %s81
    %p87 = scmp.eq.s32.totalorder %s16, 0
    %p88 = por %p86, %p87
    %p89 = scmp.ne.s32.totalorder %s78, %s81
    %p90 = scmp.eq.s32.totalorder %s21, 2
    %p91 = por %p89, %p90
    %p92 = scmp.ne.s32.totalorder %s81, %s82
    %p93 = scmp.eq.s32.totalorder %s21, 0
    %p94 = por %p92, %p93
    %p95 = scmp.ne.s32.totalorder %s81, %s82
    %p96 = scmp.eq.s32.totalorder %s22, 2
    %p97 = por %p95, %p96
    %p99 = scmp.ne.s32.totalorder %s82, %s98
    %p100 = scmp.eq.s32.totalorder %s22, 0
    %p101 = por %p99, %p100
    %s102 = ssub.s32 %s16, %s23
    %p103 = scmp.eq.s32.totalorder %s102, 0
    %s105 = sadd.s32 %s104, 1
    %s106 = scalar_select %p103, %s104, %s105
    %p109 = pneg %p103
    %p110 = scmp.eq.s32.totalorder %s16, 2
    %p111 = por %p109, %p110
    %p112 = scmp.ne.s32.totalorder %s104, %s107
    %p113 = scmp.eq.s32.totalorder %s16, 0
    %p114 = por %p112, %p113
    %p115 = scmp.ne.s32.totalorder %s104, %s107
    %p116 = scmp.eq.s32.totalorder %s21, 2
    %p117 = por %p115, %p116
    %p118 = scmp.ne.s32.totalorder %s107, %s108
    %p119 = scmp.eq.s32.totalorder %s21, 0
    %p120 = por %p118, %p119
    %p121 = scmp.ne.s32.totalorder %s107, %s108
    %p122 = scmp.eq.s32.totalorder %s22, 2
    %p123 = por %p121, %p122
    %p125 = scmp.ne.s32.totalorder %s108, %s124
    %p126 = scmp.eq.s32.totalorder %s22, 0
    %p127 = por %p125, %p126
    %s129 = sadd.s32 %s128, 1
    %p132 = scmp.eq.s32.totalorder %s16, 2
    %p133 = scmp.ne.s32.totalorder %s128, %s130
    %p134 = scmp.eq.s32.totalorder %s16, 0
    %p135 = por %p133, %p134
    %p136 = scmp.ne.s32.totalorder %s128, %s130
    %p137 = scmp.eq.s32.totalorder %s21, 2
    %p138 = por %p136, %p137
    %p139 = scmp.ne.s32.totalorder %s130, %s131
    %p140 = scmp.eq.s32.totalorder %s21, 0
    %p141 = por %p139, %p140
    %p142 = scmp.ne.s32.totalorder %s130, %s131
    %p143 = scmp.eq.s32.totalorder %s22, 2
    %p144 = por %p142, %p143
    %p146 = scmp.ne.s32.totalorder %s131, %s145
    %p147 = scmp.eq.s32.totalorder %s22, 0
    %p148 = por %p146, %p147
    %s150 = sadd.s32 %s149, 1
    %p153 = scmp.eq.s32.totalorder %s16, 2
    %p154 = scmp.ne.s32.totalorder %s149, %s151
    %p155 = scmp.eq.s32.totalorder %s16, 0
    %p156 = por %p154, %p155
    %p157 = scmp.ne.s32.totalorder %s149, %s151
    %p158 = scmp.eq.s32.totalorder %s21, 2
    %p159 = por %p157, %p158
    %p160 = scmp.ne.s32.totalorder %s151, %s152
    %p161 = scmp.eq.s32.totalorder %s21, 0
    %p162 = por %p160, %p161
    %p163 = scmp.ne.s32.totalorder %s151, %s152
    %p164 = scmp.eq.s32.totalorder %s22, 2
    %p165 = por %p163, %p164
    %p167 = scmp.ne.s32.totalorder %s152, %s166
    %p168 = scmp.eq.s32.totalorder %s22, 0
    %p169 = por %p167, %p168
    %s171 = sadd.s32 %s170, 1
    %p174 = scmp.eq.s32.totalorder %s16, 2
    %p175 = scmp.ne.s32.totalorder %s170, %s172
    %p176 = scmp.eq.s32.totalorder %s16, 0
    %p177 = por %p175, %p176
    %p178 = scmp.ne.s32.totalorder %s170, %s172
    %p179 = scmp.eq.s32.totalorder %s21, 2
    %p180 = por %p178, %p179
    %p181 = scmp.ne.s32.totalorder %s172, %s173
    %p182 = scmp.eq.s32.totalorder %s21, 0
    %p183 = por %p181, %p182
    %p184 = scmp.ne.s32.totalorder %s172, %s173
    %p185 = scmp.eq.s32.totalorder %s22, 2
    %p186 = por %p184, %p185
    %p188 = scmp.ne.s32.totalorder %s173, %s187
    %p189 = scmp.eq.s32.totalorder %s22, 0
    %p190 = por %p188, %p189
    %s192 = sadd.s32 %s191, 1
    %p195 = scmp.eq.s32.totalorder %s16, 2
    %p196 = scmp.ne.s32.totalorder %s191, %s193
    %p197 = scmp.eq.s32.totalorder %s16, 0
    %p198 = por %p196, %p197
    %p199 = scmp.ne.s32.totalorder %s191, %s193
    %p200 = scmp.eq.s32.totalorder %s21, 2
    %p201 = por %p199, %p200
    %p202 = scmp.ne.s32.totalorder %s193, %s194
    %p203 = scmp.eq.s32.totalorder %s21, 0
    %p204 = por %p202, %p203
    %p205 = scmp.ne.s32.totalorder %s193, %s194
    %p206 = scmp.eq.s32.totalorder %s22, 2
    %p207 = por %p205, %p206
    %p209 = scmp.ne.s32.totalorder %s194, %s208
    %p210 = scmp.eq.s32.totalorder %s22, 0
    %p211 = por %p209, %p210
    %s212 = ssub.s32 %s16, %s23
    %p213 = scmp.eq.s32.totalorder %s212, 0
    %s215 = sadd.s32 %s214, 1
    %s216 = scalar_select %p213, %s214, %s215
    %p219 = pneg %p213
    %p220 = scmp.eq.s32.totalorder %s16, 2
    %p221 = por %p219, %p220
    %p222 = scmp.ne.s32.totalorder %s214, %s217
    %p223 = scmp.eq.s32.totalorder %s16, 0
    %p224 = por %p222, %p223
    %p225 = scmp.ne.s32.totalorder %s214, %s217
    %p226 = scmp.eq.s32.totalorder %s21, 2
    %p227 = por %p225, %p226
    %p228 = scmp.ne.s32.totalorder %s217, %s218
    %p229 = scmp.eq.s32.totalorder %s21, 0
    %p230 = por %p228, %p229
    %p231 = scmp.ne.s32.totalorder %s217, %s218
    %p232 = scmp.eq.s32.totalorder %s22, 2
    %p233 = por %p231, %p232
    %p235 = scmp.ne.s32.totalorder %s218, %s234
    %p236 = scmp.eq.s32.totalorder %s22, 0
    %p237 = por %p235, %p236
    %s238 = ssub.s32 %s16, %s23
    %p239 = scmp.eq.s32.totalorder %s238, 0
    %s241 = sadd.s32 %s240, 1
    %s242 = scalar_select %p239, %s240, %s241
    %p245 = pneg %p239
    %p246 = scmp.eq.s32.totalorder %s16, 2
    %p247 = por %p245, %p246
    %p248 = scmp.ne.s32.totalorder %s240, %s243
    %p249 = scmp.eq.s32.totalorder %s16, 0
    %p250 = por %p248, %p249
    %p251 = scmp.ne.s32.totalorder %s240, %s243
    %p252 = scmp.eq.s32.totalorder %s21, 2
    %p253 = por %p251, %p252
    %p254 = scmp.ne.s32.totalorder %s243, %s244
    %p255 = scmp.eq.s32.totalorder %s21, 0
    %p256 = por %p254, %p255
    %p257 = scmp.ne.s32.totalorder %s243, %s244
    %p258 = scmp.eq.s32.totalorder %s22, 2
    %p259 = por %p257, %p258
    %p261 = scmp.ne.s32.totalorder %s244, %s260
    %p262 = scmp.eq.s32.totalorder %s22, 0
    %p263 = por %p261, %p262
    %s264 = ssub.s32 %s16, %s23
    %p265 = scmp.eq.s32.totalorder %s264, 0
    %s267 = sadd.s32 %s266, 1
    %s268 = scalar_select %p265, %s266, %s267
    %p271 = pneg %p265
    %p272 = scmp.eq.s32.totalorder %s16, 2
    %p273 = por %p271, %p272
    %p274 = scmp.ne.s32.totalorder %s266, %s269
    %p275 = scmp.eq.s32.totalorder %s16, 0
    %p276 = por %p274, %p275
    %p277 = scmp.ne.s32.totalorder %s266, %s269
    %p278 = scmp.eq.s32.totalorder %s21, 2
    %p279 = por %p277, %p278
    %p280 = scmp.ne.s32.totalorder %s269, %s270
    %p281 = scmp.eq.s32.totalorder %s21, 0
    %p282 = por %p280, %p281
    %p283 = scmp.ne.s32.totalorder %s269, %s270
    %p284 = scmp.eq.s32.totalorder %s22, 2
    %p285 = por %p283, %p284
    %p287 = scmp.ne.s32.totalorder %s270, %s286
    %p288 = scmp.eq.s32.totalorder %s22, 0
    %p289 = por %p287, %p288
    %p290 = scmp.le.s32.totalorder 1, %s16
    %p291 = scmp.lt.s32.totalorder %s16, 4
    %p292 = pnand %p290, %p291
    %p293 = pneg %p292
    // Predicated region
    $region9: #{spell_forward.4} parent=5 // pred_check
      _
    $region10: #{spell_forward.4} parent=5 // pred_check_branch
      %295 = sbr.rel (%p292) target = $region12
    $region11: #{spell_forward.4} parent=5 // pred_region
      %s296 = ssub.s32 %s16, 1
      // Predicated region
      $region13: #{spell_forward.4} parent=11 // pred_check
        %p297 = pneg %p141
      $region14: #{spell_forward.4} parent=11 // pred_check_branch
        %299 = sbr.rel (%p297) target = $region16
      $region15: #{spell_forward.4} parent=11 // pred_region
        _
      $region16: #{spell_forward.4} parent=11 // pred_fallthru
        _
      // Predicated region
      $region17: #{spell_forward.4} parent=11 // pred_check
        %p300 = pneg %p162
      $region18: #{spell_forward.4} parent=11 // pred_check_branch
        %302 = sbr.rel (%p300) target = $region20
      $region19: #{spell_forward.4} parent=11 // pred_region
        _
      $region20: #{spell_forward.4} parent=11 // pred_fallthru
        _
      // Predicated region
      $region21: #{spell_forward.4} parent=11 // pred_check
        %p303 = pneg %p183
      $region22: #{spell_forward.4} parent=11 // pred_check_branch
        %305 = sbr.rel (%p303) target = $region24
      $region23: #{spell_forward.4} parent=11 // pred_region
        _
      $region24: #{spell_forward.4} parent=11 // pred_fallthru
        _
      // Predicated region
      $region25: #{spell_forward.4} parent=11 // pred_check
        %p306 = pneg %p204
      $region26: #{spell_forward.4} parent=11 // pred_check_branch
        %308 = sbr.rel (%p306) target = $region28
      $region27: #{spell_forward.4} parent=11 // pred_region
        _
      $region28: #{spell_forward.4} parent=11 // pred_fallthru
        _
    $region12: #{spell_forward.4} parent=5 // pred_fallthru
      _
    %p309 = scmp.lt.s32.totalorder %s16, 3
    // Predicated region
    $region29: #{spell_forward.4} parent=5 // pred_check
      %p310 = pneg %p309
    $region30: #{spell_forward.4} parent=5 // pred_check_branch
      %312 = sbr.rel (%p310) target = $region32
    $region31: #{spell_forward.4} parent=5 // pred_region
      // Predicated region
      $region33: #{spell_forward.4} parent=31 // pred_check
        %p313 = pneg %p36
      $region34: #{spell_forward.4} parent=31 // pred_check_branch
        %315 = sbr.rel (%p313) target = $region36
      $region35: #{spell_forward.4} parent=31 // pred_region
        %p316 = scmp.lt.s32.totalorder %s16, 2
        %s317 = scalar_select %p316, %s16, 2
        %s318 = smul.addr %s317, 4
        %s319 = smul.addr %s318, 8
        %s320 = scalar_lea.vmem %s0, %s319
      $region36: #{spell_forward.4} parent=31 // pred_fallthru
        _
      // Predicated region
      $region37: #{spell_forward.4} parent=31 // pred_check
        %p321 = pneg %p62
      $region38: #{spell_forward.4} parent=31 // pred_check_branch
        %323 = sbr.rel (%p321) target = $region40
      $region39: #{spell_forward.4} parent=31 // pred_region
        %p324 = scmp.lt.s32.totalorder %s16, 2
        %s325 = scalar_select %p324, %s16, 2
        %s326 = smul.addr %s325, 16
        %s327 = smul.addr %s326, 4
        %s328 = scalar_lea.vmem %s1, %s327
      $region40: #{spell_forward.4} parent=31 // pred_fallthru
        _
      // Predicated region
      $region41: #{spell_forward.4} parent=31 // pred_check
        %p329 = pneg %p88
      $region42: #{spell_forward.4} parent=31 // pred_check_branch
        %331 = sbr.rel (%p329) target = $region44
      $region43: #{spell_forward.4} parent=31 // pred_region
        %p332 = scmp.lt.s32.totalorder %s16, 2
        %s333 = scalar_select %p332, %s16, 2
        %s334 = smul.addr %s333, 4
        %s335 = smul.addr %s334, 8
        %s336 = scalar_lea.vmem %s2, %s335
      $region44: #{spell_forward.4} parent=31 // pred_fallthru
        _
      // Predicated region
      $region45: #{spell_forward.4} parent=31 // pred_check
        %p337 = pneg %p114
      $region46: #{spell_forward.4} parent=31 // pred_check_branch
        %339 = sbr.rel (%p337) target = $region48
      $region47: #{spell_forward.4} parent=31 // pred_region
        %p340 = scmp.lt.s32.totalorder %s16, 2
        %s341 = scalar_select %p340, %s16, 2
        %s342 = smul.addr %s341, 4
        %s343 = smul.addr %s342, 8
        %s344 = scalar_lea.vmem %s3, %s343
      $region48: #{spell_forward.4} parent=31 // pred_fallthru
        _
      // Predicated region
      $region49: #{spell_forward.4} parent=31 // pred_check
        %p345 = pneg %p224
      $region50: #{spell_forward.4} parent=31 // pred_check_branch
        %347 = sbr.rel (%p345) target = $region52
      $region51: #{spell_forward.4} parent=31 // pred_region
        %p348 = scmp.lt.s32.totalorder %s16, 2
        %s349 = scalar_select %p348, %s16, 2
        %s350 = smul.addr %s349, 2
        %s351 = smul.addr %s350, 4
        %s352 = scalar_lea.vmem %s8, %s351
      $region52: #{spell_forward.4} parent=31 // pred_fallthru
        _
      // Predicated region
      $region53: #{spell_forward.4} parent=31 // pred_check
        %p353 = pneg %p250
      $region54: #{spell_forward.4} parent=31 // pred_check_branch
        %355 = sbr.rel (%p353) target = $region56
      $region55: #{spell_forward.4} parent=31 // pred_region
        %p356 = scmp.lt.s32.totalorder %s16, 2
        %s357 = scalar_select %p356, %s16, 2
        %s358 = smul.addr %s357, 2
        %s359 = smul.addr %s358, 8
        %s360 = scalar_lea.vmem %s9, %s359
      $region56: #{spell_forward.4} parent=31 // pred_fallthru
        _
    $region32: #{spell_forward.4} parent=5 // pred_fallthru
      _
    %p361 = scmp.le.s32.totalorder 1, %s16
    %p362 = scmp.lt.s32.totalorder %s16, 4
    %p363 = pnand %p361, %p362
    %p364 = pneg %p363
    // Predicated region
    $region57: #{spell_forward.4} parent=5 // pred_check
      _
    $region58: #{spell_forward.4} parent=5 // pred_check_branch
      %366 = sbr.rel (%p363) target = $region60
    $region59: #{spell_forward.4} parent=5 // pred_region
      %s367 = ssub.s32 %s16, 1
      %p368 = scmp.lt.s32.totalorder %s21, 2
      %s369 = scalar_select %p368, %s21, 2
      %s370 = smul.addr %s369, 4
      %s371 = smul.addr %s370, 8
      %s372 = scalar_lea.vmem %s0, %s371
      %p373 = pneg %p42
      %p374 = pneg %p39
      %p375 = scmp.lt.s32.totalorder %s21, 2
      %s376 = scalar_select %p375, %s21, 2
      %s377 = smul.addr %s376, 16
      %s378 = smul.addr %s377, 4
      %s379 = scalar_lea.vmem %s1, %s378
      %p380 = pneg %p68
      %p381 = pneg %p65
      %p382 = scmp.lt.s32.totalorder %s21, 2
      %s383 = scalar_select %p382, %s21, 2
      %s384 = smul.addr %s383, 4
      %s385 = smul.addr %s384, 8
      %s386 = scalar_lea.vmem %s2, %s385
      %p387 = pneg %p94
      %p388 = pneg %p91
      %p389 = scmp.lt.s32.totalorder %s21, 2
      %s390 = scalar_select %p389, %s21, 2
      %s391 = smul.addr %s390, 4
      %s392 = smul.addr %s391, 8
      %s393 = scalar_lea.vmem %s3, %s392
      %p394 = pneg %p120
      %p395 = pneg %p117
      %p396 = pneg %p141
      %p397 = pneg %p138
      %p398 = pneg %p162
      %p399 = pneg %p159
      %p400 = pneg %p183
      %p401 = pneg %p180
      %p402 = pneg %p204
      %p403 = pneg %p201
      %p404 = scmp.lt.s32.totalorder %s21, 2
      %s405 = scalar_select %p404, %s21, 2
      %s406 = smul.addr %s405, 2
      %s407 = smul.addr %s406, 4
      %s408 = scalar_lea.vmem %s8, %s407
      %p409 = pneg %p230
      %p410 = pneg %p227
      %p411 = scmp.lt.s32.totalorder %s21, 2
      %s412 = scalar_select %p411, %s21, 2
      %s413 = smul.addr %s412, 2
      %s414 = smul.addr %s413, 8
      %s415 = scalar_lea.vmem %s9, %s414
      %p416 = pneg %p256
      %p417 = pneg %p253
      %p418 = pneg %p282
      %p419 = pneg %p279
      %p420 = scmp.lt.s32.totalorder %s21, 2
      %s421 = scalar_select %p420, %s21, 2
      %s422 = smul.addr %s421, 2
      %s423 = smul.addr %s422, 8
      %s424 = scalar_lea.vmem %s10, %s423
      %p425 = scmp.lt.s32.totalorder %s21, 2
      %s426 = scalar_select %p425, %s21, 2
      %s427 = smul.addr %s426, 4
      %s428 = smul.addr %s427, 8
      %s429 = scalar_lea.vmem %s0, %s428
      %p430 = scmp.lt.s32.totalorder %s21, 2
      %s431 = scalar_select %p430, %s21, 2
      %s432 = smul.addr %s431, 16
      %s433 = smul.addr %s432, 4
      %s434 = scalar_lea.vmem %s1, %s433
      %p435 = scmp.lt.s32.totalorder %s21, 2
      %s436 = scalar_select %p435, %s21, 2
      %s437 = smul.addr %s436, 4
      %s438 = smul.addr %s437, 8
      %s439 = scalar_lea.vmem %s2, %s438
      %p440 = scmp.lt.s32.totalorder %s21, 2
      %s441 = scalar_select %p440, %s21, 2
      %s442 = smul.addr %s441, 4
      %s443 = smul.addr %s442, 8
      %s444 = scalar_lea.vmem %s3, %s443
      %p445 = scmp.lt.s32.totalorder %s21, 2
      %s446 = scalar_select %p445, %s21, 2
      %s447 = smul.addr %s446, 2
      %s448 = smul.addr %s447, 4
      %s449 = scalar_lea.vmem %s8, %s448
      %p450 = scmp.lt.s32.totalorder %s21, 2
      %s451 = scalar_select %p450, %s21, 2
      %s452 = smul.addr %s451, 2
      %s453 = smul.addr %s452, 8
      %s454 = scalar_lea.vmem %s9, %s453
      %p455 = scmp.lt.s32.totalorder %s21, 2
      %s456 = scalar_select %p455, %s21, 2
      %s457 = smul.addr %s456, 2
      %s458 = smul.addr %s457, 8
      %s459 = scalar_lea.vmem %s10, %s458
      %v461 = vld [vmem:[%s429] sm:$0xff]
      %v462 = vld [vmem:[%s429 + $0x8] sm:$0xff]
      %v463 = vld [vmem:[%s429 + $0x10] sm:$0xff]
      %v464 = vld [vmem:[%s429 + $0x18] sm:$0xff]
      %v465 = vld [vmem:[%s439] sm:$0xff]
      %v466 = vld [vmem:[%s439 + $0x8] sm:$0xff]
      %v467 = vld [vmem:[%s439 + $0x10] sm:$0xff]
      %v468 = vld [vmem:[%s439 + $0x18] sm:$0xff]
      %470 = vset.pattern.permute.xlu0 0
      %471 = vperm.xlu0 %470, %v465
      %v472 = vpop.permute.xlu0 %471
      %475 = vset.pattern.permute.xlu0 0
      %476 = vperm.xlu0 %475, %v466
      %v477 = vpop.permute.xlu0 %476
      %480 = vset.pattern.permute.xlu0 0
      %481 = vperm.xlu0 %480, %v467
      %v482 = vpop.permute.xlu0 %481
      %485 = vset.pattern.permute.xlu0 0
      %486 = vperm.xlu0 %485, %v468
      %v487 = vpop.permute.xlu0 %486
      %v489 = vmul.f32 %v461, %v472
      %v490 = vmul.f32 %v462, %v477
      %v491 = vmul.f32 %v463, %v482
      %v492 = vmul.f32 %v464, %v487
      %v493 = vld [vmem:[%s444] sm:$0xff]
      %v494 = vld [vmem:[%s444 + $0x8] sm:$0xff]
      %v495 = vld [vmem:[%s444 + $0x10] sm:$0xff]
      %v496 = vld [vmem:[%s444 + $0x18] sm:$0xff]
      %498 = vset.pattern.permute.xlu0 0
      %499 = vperm.xlu0 %498, %v493
      %v500 = vpop.permute.xlu0 %499
      %503 = vset.pattern.permute.xlu0 0
      %504 = vperm.xlu0 %503, %v494
      %v505 = vpop.permute.xlu0 %504
      %508 = vset.pattern.permute.xlu0 0
      %509 = vperm.xlu0 %508, %v495
      %v510 = vpop.permute.xlu0 %509
      %513 = vset.pattern.permute.xlu0 0
      %514 = vperm.xlu0 %513, %v496
      %v515 = vpop.permute.xlu0 %514
      %v517 = vadd.f32 %v489, %v500
      %v518 = vadd.f32 %v490, %v505
      %v519 = vadd.f32 %v491, %v510
      %v520 = vadd.f32 %v492, %v515
      %v521 = vmax.f32 %v517, 0.0
      %v522 = vmax.f32 %v518, 0.0
      %v523 = vmax.f32 %v519, 0.0
      %v524 = vmax.f32 %v520, 0.0
      %v525 = vld [vmem:[%s434] sm:$0xf]
      %v526 = vld [vmem:[%s434 + $0x4] sm:$0xf]
      %v527 = vld [vmem:[%s434 + $0x8] sm:$0xf]
      %v528 = vld [vmem:[%s434 + $0xc] sm:$0xf]
      %v529 = vld [vmem:[%s434 + $0x10] sm:$0xf]
      %v530 = vld [vmem:[%s434 + $0x14] sm:$0xf]
      %v531 = vld [vmem:[%s434 + $0x18] sm:$0xf]
      %v532 = vld [vmem:[%s434 + $0x1c] sm:$0xf]
      %v533 = vld [vmem:[%s434 + $0x20] sm:$0xf]
      %v534 = vld [vmem:[%s434 + $0x24] sm:$0xf]
      %v535 = vld [vmem:[%s434 + $0x28] sm:$0xf]
      %v536 = vld [vmem:[%s434 + $0x2c] sm:$0xf]
      %v537 = vld [vmem:[%s434 + $0x30] sm:$0xf]
      %v538 = vld [vmem:[%s434 + $0x34] sm:$0xf]
      %v539 = vld [vmem:[%s434 + $0x38] sm:$0xf]
      %v540 = vld [vmem:[%s434 + $0x3c] sm:$0xf]
      %v541 = vpack.c.bf16 %v522, %v521
      %v542 = vpack.c.bf16 %v524, %v523
      %v559 = vunpack.c.l.b16 %v525
      %v560 = vunpack.c.l.b16 %v526
      %v561 = vunpack.c.l.b16 %v527
      %v562 = vunpack.c.l.b16 %v528
      %v563 = vunpack.c.l.b16 %v529
      %v564 = vunpack.c.l.b16 %v530
      %v565 = vunpack.c.l.b16 %v531
      %v566 = vunpack.c.l.b16 %v532
      %v567 = vunpack.c.l.b16 %v533
      %v568 = vunpack.c.l.b16 %v534
      %v569 = vunpack.c.l.b16 %v535
      %v570 = vunpack.c.l.b16 %v536
      %v571 = vunpack.c.l.b16 %v537
      %v572 = vunpack.c.l.b16 %v538
      %v573 = vunpack.c.l.b16 %v539
      %v574 = vunpack.c.l.b16 %v540
      %v575 = vpack.c.b16 %v560, %v559
      %v576 = vpack.c.b16 %v562, %v561
      %v577 = vpack.c.b16 %v564, %v563
      %v578 = vpack.c.b16 %v566, %v565
      %v579 = vpack.c.b16 %v568, %v567
      %v580 = vpack.c.b16 %v570, %v569
      %v581 = vpack.c.b16 %v572, %v571
      %v582 = vpack.c.b16 %v574, %v573
      %591 = vmatpush.bf16.msra.mxu0 %v582
      %592 = vmatpush.bf16.msra.mxu0 %v581
      %593 = vmatpush.bf16.msra.mxu0 %v580
      %594 = vmatpush.bf16.msra.mxu0 %v579
      %595 = vmatpush.bf16.msra.mxu0 %v578
      %596 = vmatpush.bf16.msra.mxu0 %v577
      %597 = vmatpush.bf16.msra.mxu0 %v576
      %598 = vmatpush.bf16.msra.mxu0 %v575
      %599 = vmatmul.bf16.gmra.mxu0 %v541
      %v600 = vpop.f32.mrf.mxu0
      %v601 = vadd.f32 0.0, %v600
      %v602 = vpop.f32.mrf.mxu0
      %v603 = vadd.f32 0.0, %v602
      %604 = vmatmul.bf16.gmra.mxu0 %v542
      %v605 = vpop.f32.mrf.mxu0
      %v606 = vadd.f32 0.0, %v605
      %v607 = vpop.f32.mrf.mxu0
      %v608 = vadd.f32 0.0, %v607
      %609 = vdwg.mxu0
      %v610 = vld [vmem:[%s4] sm:$0xf]
      %v611 = vld [vmem:[%s4 + $0x4] sm:$0xf]
      %v612 = vld [vmem:[%s4 + $0x8] sm:$0xf]
      %v613 = vld [vmem:[%s4 + $0xc] sm:$0xf]
      %v614 = vpack.c.bf16 %v603, %v601
      %v615 = vpack.c.bf16 %v608, %v606
      %v616 = vld [vmem:[%s5] sm:$0xff]
      %v617 = vld [vmem:[%s5 + $0x8] sm:$0xff]
      %v618 = vld [vmem:[%s5 + $0x10] sm:$0xff]
      %v619 = vld [vmem:[%s5 + $0x18] sm:$0xff]
      %621 = vset.pattern.permute.xlu0 0
      %622 = vperm.xlu0 %621, %v616
      %v623 = vpop.permute.xlu0 %622
      %626 = vset.pattern.permute.xlu0 0
      %627 = vperm.xlu0 %626, %v617
      %v628 = vpop.permute.xlu0 %627
      %631 = vset.pattern.permute.xlu0 0
      %632 = vperm.xlu0 %631, %v618
      %v633 = vpop.permute.xlu0 %632
      %636 = vset.pattern.permute.xlu0 0
      %637 = vperm.xlu0 %636, %v619
      %v638 = vpop.permute.xlu0 %637
      %v644 = vunpack.c.l.b16 %v610
      %v645 = vunpack.c.l.b16 %v611
      %v646 = vunpack.c.l.b16 %v612
      %v647 = vunpack.c.l.b16 %v613
      %v648 = vpack.c.b16 %v645, %v644
      %v649 = vpack.c.b16 %v647, %v646
      %vm650 = vcmask 523264
      %v652 = vsel %vm650, %v648, 0
      %v655 = vsel %vm650, %v649, 0
      %657 = vmatpush.bf16.msra.mxu0 0
      %658 = vmatpush.bf16.msra.mxu0 0
      %659 = vmatpush.bf16.msra.mxu0 0
      %660 = vmatpush.bf16.msra.mxu0 0
      %661 = vmatpush.bf16.msra.mxu0 %v542
      %662 = vmatpush.bf16.msra.mxu0 %v541
      %663 = vmatpush.bf16.msra.mxu0 %v615
      %664 = vmatpush.bf16.msra.mxu0 %v614
      %665 = vmatmul.bf16.gmra.mxu0 %v652
      %v666 = vpop.f32.mrf.mxu0
      %v667 = vadd.f32 %v623, %v666
      %v668 = vpop.f32.mrf.mxu0
      %v669 = vadd.f32 %v628, %v668
      %670 = vmatmul.bf16.gmra.mxu0 %v655
      %v671 = vpop.f32.mrf.mxu0
      %v672 = vadd.f32 %v633, %v671
      %v673 = vpop.f32.mrf.mxu0
      %v674 = vadd.f32 %v638, %v673
      %675 = vdwg.mxu0
      %v676 = vld [vmem:[%s6] sm:$0xff]
      %v677 = vld [vmem:[%s6 + $0x8] sm:$0xff]
      %v678 = vld [vmem:[%s6 + $0x10] sm:$0xff]
      %v679 = vld [vmem:[%s6 + $0x18] sm:$0xff]
      %681 = vset.pattern.permute.xlu0 0
      %682 = vperm.xlu0 %681, %v676
      %v683 = vpop.permute.xlu0 %682
      %686 = vset.pattern.permute.xlu0 0
      %687 = vperm.xlu0 %686, %v677
      %v688 = vpop.permute.xlu0 %687
      %691 = vset.pattern.permute.xlu0 0
      %692 = vperm.xlu0 %691, %v678
      %v693 = vpop.permute.xlu0 %692
      %696 = vset.pattern.permute.xlu0 0
      %697 = vperm.xlu0 %696, %v679
      %v698 = vpop.permute.xlu0 %697
      %v700 = vmul.f32 %v667, %v683
      %v701 = vmul.f32 %v669, %v688
      %v702 = vmul.f32 %v672, %v693
      %v703 = vmul.f32 %v674, %v698
      %v704 = vld [vmem:[%s7] sm:$0xff]
      %v705 = vld [vmem:[%s7 + $0x8] sm:$0xff]
      %v706 = vld [vmem:[%s7 + $0x10] sm:$0xff]
      %v707 = vld [vmem:[%s7 + $0x18] sm:$0xff]
      %709 = vset.pattern.permute.xlu0 0
      %710 = vperm.xlu0 %709, %v704
      %v711 = vpop.permute.xlu0 %710
      %714 = vset.pattern.permute.xlu0 0
      %715 = vperm.xlu0 %714, %v705
      %v716 = vpop.permute.xlu0 %715
      %719 = vset.pattern.permute.xlu0 0
      %720 = vperm.xlu0 %719, %v706
      %v721 = vpop.permute.xlu0 %720
      %724 = vset.pattern.permute.xlu0 0
      %725 = vperm.xlu0 %724, %v707
      %v726 = vpop.permute.xlu0 %725
      %v728 = vadd.f32 %v700, %v711
      %v729 = vadd.f32 %v701, %v716
      %v730 = vadd.f32 %v702, %v721
      %v731 = vadd.f32 %v703, %v726
      %v732 = vmax.f32 %v728, 0.0
      %v733 = vmax.f32 %v729, 0.0
      %v734 = vmax.f32 %v730, 0.0
      %v735 = vmax.f32 %v731, 0.0
      %v736 = vpack.c.bf16 %v733, %v732
      %v737 = vpack.c.bf16 %v735, %v734
      %738 = vmatpush.bf16.msra.mxu0 %v582
      %739 = vmatpush.bf16.msra.mxu0 %v581
      %740 = vmatpush.bf16.msra.mxu0 %v580
      %741 = vmatpush.bf16.msra.mxu0 %v579
      %742 = vmatpush.bf16.msra.mxu0 %v578
      %743 = vmatpush.bf16.msra.mxu0 %v577
      %744 = vmatpush.bf16.msra.mxu0 %v576
      %745 = vmatpush.bf16.msra.mxu0 %v575
      %746 = vmatmul.bf16.gmra.mxu0 %v736
      %v747 = vpop.f32.mrf.mxu0
      %v748 = vadd.f32 0.0, %v747
      %v749 = vpop.f32.mrf.mxu0
      %v750 = vadd.f32 0.0, %v749
      %751 = vmatmul.bf16.gmra.mxu0 %v737
      %v752 = vpop.f32.mrf.mxu0
      %v753 = vadd.f32 0.0, %v752
      %v754 = vpop.f32.mrf.mxu0
      %v755 = vadd.f32 0.0, %v754
      %756 = vdwg.mxu0
      %v757 = vld [vmem:[%s449] sm:$0xf]
      %v758 = vld [vmem:[%s449 + $0x4] sm:$0xf]
      %v759 = vpack.c.bf16 %v750, %v748
      %v760 = vpack.c.bf16 %v755, %v753
      %v761 = vld [vmem:[%s454] sm:$0xff]
      %v762 = vld [vmem:[%s454 + $0x8] sm:$0xff]
      %764 = vset.pattern.permute.xlu0 0
      %765 = vperm.xlu0 %764, %v761
      %v766 = vpop.permute.xlu0 %765
      %769 = vset.pattern.permute.xlu0 0
      %770 = vperm.xlu0 %769, %v762
      %v771 = vpop.permute.xlu0 %770
      %v775 = vunpack.c.l.b16 %v757
      %v776 = vunpack.c.l.b16 %v758
      %v777 = vpack.c.b16 %v776, %v775
      %v779 = vsel %vm650, %v777, 0
      %781 = vmatpush.bf16.msra.mxu0 0
      %782 = vmatpush.bf16.msra.mxu0 0
      %783 = vmatpush.bf16.msra.mxu0 0
      %784 = vmatpush.bf16.msra.mxu0 0
      %785 = vmatpush.bf16.msra.mxu0 %v737
      %786 = vmatpush.bf16.msra.mxu0 %v736
      %787 = vmatpush.bf16.msra.mxu0 %v760
      %788 = vmatpush.bf16.msra.mxu0 %v759
      %789 = vmatmul.bf16.gmra.mxu0 %v779
      %v790 = vpop.f32.mrf.mxu0
      %v791 = vadd.f32 %v766, %v790
      %v792 = vpop.f32.mrf.mxu0
      %v793 = vadd.f32 %v771, %v792
      %794 = vdwg.mxu0
      %795 = vst [vmem:[%s459] sm:$0xff] %v791
      %796 = vst [vmem:[%s459 + $0x8] sm:$0xff] %v793
      %p797 = scmp.lt.s32.totalorder %s21, 2
      %s798 = scalar_select %p797, %s21, 2
      %s799 = smul.addr %s798, 2
      %s800 = smul.addr %s799, 8
      %s801 = scalar_lea.vmem %s10, %s800
      // Predicated region
      $region61: #{spell_forward.4} parent=59 // pred_check
        %p802 = pneg %p279
      $region62: #{spell_forward.4} parent=59 // pred_check_branch
        %804 = sbr.rel (%p802) target = $region64
      $region63: #{spell_forward.4} parent=59 // pred_region
        _
      $region64: #{spell_forward.4} parent=59 // pred_fallthru
        _
    $region60: #{spell_forward.4} parent=5 // pred_fallthru
      _
    %p805 = scmp.le.s32.totalorder 2, %s16
    // Predicated region
    $region65: #{spell_forward.4} parent=5 // pred_check
      %p806 = pneg %p805
    $region66: #{spell_forward.4} parent=5 // pred_check_branch
      %808 = sbr.rel (%p806) target = $region68
    $region67: #{spell_forward.4} parent=5 // pred_region
      %s809 = ssub.s32 %s16, 2
      // Predicated region
      $region69: #{spell_forward.4} parent=67 // pred_check
        %p810 = pneg %p285
      $region70: #{spell_forward.4} parent=67 // pred_check_branch
        %812 = sbr.rel (%p810) target = $region72
      $region71: #{spell_forward.4} parent=67 // pred_region
        %p813 = scmp.lt.s32.totalorder %s22, 2
        %s814 = scalar_select %p813, %s22, 2
        %s815 = smul.addr %s814, 2
        %s816 = smul.addr %s815, 8
        %s817 = scalar_lea.vmem %s10, %s816
      $region72: #{spell_forward.4} parent=67 // pred_fallthru
        _
    $region68: #{spell_forward.4} parent=5 // pred_fallthru
      _
  $region6: #{spell_forward.4} parent=0 // loop_footer
    %s20 = sadd.s32 1, %s16
  $region7: #{spell_forward.4} parent=0 // loop_footer_branch
    %15 = sbr.rel target = $region3
  $region8: #{spell_forward.4} parent=0 // loop_exit
    _

// kernel: spell_forward.5
$region0: #{spell_forward.5}
  #allocation0 [shape = 'u32[]', space=smem, size = 0x4, offset = 0x4, fixed_abs, tag = 'smem constant byte address 0x4 - core index']
  #allocation1 [shape = 'u32[72,128]{1,0:T(1,128)}', space=vmem, size = 0x9000, scoped, tag = 'internal scratch']
  #allocation2 [shape = 'f32[16,128]{1,0:T(8,128)}', space=vmem, size = 0x2000, scoped, tag = 'scratch operand']
  %s0 = inlined_call_operand.vmem [shape: f32[16,128], index: 0, kind: input, shape index: {}]
  %s1 = inlined_call_operand.vmem [shape: bf16[2,64,16], index: 1, kind: input, shape index: {}]
  %s2 = inlined_call_operand.vmem [shape: f32[2,64,1], index: 2, kind: input, shape index: {}]
  %s3 = inlined_call_operand.vmem [shape: bf16[2,10,64,192], index: 3, kind: input, shape index: {}]
  %s4 = inlined_call_operand.vmem [shape: bf16[2,10,64,64], index: 4, kind: input, shape index: {}]
  %s5 = inlined_call_operand.vmem [shape: f32[2,10,64,1], index: 5, kind: input, shape index: {}]
  %s6 = inlined_call_operand.vmem [shape: bf16[2,10,64,64], index: 6, kind: input, shape index: {}]
  %s7 = inlined_call_operand.vmem [shape: f32[2,10,64,1], index: 7, kind: input, shape index: {}]
  %s8 = inlined_call_operand.vmem [shape: bf16[2,16,64], index: 8, kind: input, shape index: {}]
  %s9 = inlined_call_operand.vmem [shape: f32[2,16,1], index: 9, kind: input, shape index: {}]
  %s10 = inlined_call_operand.vmem [shape: f32[2,16,128], index: 10, kind: output, shape index: {}]
  %s11 = sld [smem:[#allocation0]]
  $region77: #{spell_forward.5} parent=0
    _
  %s13 = ssub.s32 1, %s11
  %s14 = scalar_select 0, %s13, %s11
  loop: start=0, step=1, limit=4
  $region2: #{spell_forward.5} parent=0 // loop_pre_header
    _
  $region3: #{spell_forward.5} parent=0 // loop_header
    %s16 = sphi 0, %s20
    %p17 = scmp.ge.s32.totalorder %s16, 4
    %s24 = sphi 0, %s24
    %s26 = sphi 0, %s24
    %s27 = sphi 0, %s26
    %s41 = sphi 0, %s27
    %s47 = sphi 0, %s49
    %s50 = sphi 0, %s47
    %s51 = sphi 0, %s50
    %s67 = sphi 0, %s51
    %s73 = sphi 0, %s75
    %s76 = sphi 0, %s73
    %s77 = sphi 0, %s76
    %s93 = sphi 0, %s77
    %s99 = sphi 0, %s101
    %s102 = sphi 0, %s99
    %s103 = sphi 0, %s102
    %s119 = sphi 0, %s103
    %s125 = sphi 0, %s127
    %s128 = sphi 0, %s125
    %s129 = sphi 0, %s128
    %s145 = sphi 0, %s129
    %s151 = sphi 0, %s153
    %s154 = sphi 0, %s151
    %s155 = sphi 0, %s154
    %s171 = sphi 0, %s155
    %s177 = sphi 0, %s179
    %s180 = sphi 0, %s177
    %s181 = sphi 0, %s180
    %s197 = sphi 0, %s181
    %s203 = sphi 0, %s205
    %s206 = sphi 0, %s203
    %s207 = sphi 0, %s206
    %s223 = sphi 0, %s207
    %s229 = sphi 0, %s231
    %s232 = sphi 0, %s229
    %s233 = sphi 0, %s232
    %s249 = sphi 0, %s233
    %s255 = sphi 0, %s257
    %s258 = sphi 0, %s255
    %s259 = sphi 0, %s258
    %s275 = sphi 0, %s259
    %s281 = sphi 0, %s283
    %s284 = sphi 0, %s281
    %s285 = sphi 0, %s284
    %s301 = sphi 0, %s285
  $region4: #{spell_forward.5} parent=0 // loop_header_branch
    %19 = sbr.rel (%p17) target = $region8
  $region5: #{spell_forward.5} parent=0 // loop_body
    %s21 = ssub.s32 %s16, 1
    %s22 = ssub.s32 %s16, 2
    %s23 = sadd.s32 %s16, 1
    %s25 = sadd.s32 %s24, 1
    %p28 = scmp.eq.s32.totalorder %s16, 1
    %p29 = scmp.ne.s32.totalorder %s24, %s26
    %p30 = scmp.eq.s32.totalorder %s16, 0
    %p31 = por %p29, %p30
    %p32 = scmp.ne.s32.totalorder %s24, %s26
    %p33 = scmp.eq.s32.totalorder %s21, 1
    %p34 = por %p32, %p33
    %p35 = scmp.ne.s32.totalorder %s26, %s27
    %p36 = scmp.eq.s32.totalorder %s21, 0
    %p37 = por %p35, %p36
    %p38 = scmp.ne.s32.totalorder %s26, %s27
    %p39 = scmp.eq.s32.totalorder %s22, 1
    %p40 = por %p38, %p39
    %p42 = scmp.ne.s32.totalorder %s27, %s41
    %p43 = scmp.eq.s32.totalorder %s22, 0
    %p44 = por %p42, %p43
    %s45 = ssub.s32 %s16, %s23
    %p46 = scmp.eq.s32.totalorder %s45, 0
    %s48 = sadd.s32 %s47, 1
    %s49 = scalar_select %p46, %s47, %s48
    %p52 = pneg %p46
    %p53 = scmp.eq.s32.totalorder %s16, 1
    %p54 = por %p52, %p53
    %p55 = scmp.ne.s32.totalorder %s47, %s50
    %p56 = scmp.eq.s32.totalorder %s16, 0
    %p57 = por %p55, %p56
    %p58 = scmp.ne.s32.totalorder %s47, %s50
    %p59 = scmp.eq.s32.totalorder %s21, 1
    %p60 = por %p58, %p59
    %p61 = scmp.ne.s32.totalorder %s50, %s51
    %p62 = scmp.eq.s32.totalorder %s21, 0
    %p63 = por %p61, %p62
    %p64 = scmp.ne.s32.totalorder %s50, %s51
    %p65 = scmp.eq.s32.totalorder %s22, 1
    %p66 = por %p64, %p65
    %p68 = scmp.ne.s32.totalorder %s51, %s67
    %p69 = scmp.eq.s32.totalorder %s22, 0
    %p70 = por %p68, %p69
    %s71 = ssub.s32 %s16, %s23
    %p72 = scmp.eq.s32.totalorder %s71, 0
    %s74 = sadd.s32 %s73, 1
    %s75 = scalar_select %p72, %s73, %s74
    %p78 = pneg %p72
    %p79 = scmp.eq.s32.totalorder %s16, 1
    %p80 = por %p78, %p79
    %p81 = scmp.ne.s32.totalorder %s73, %s76
    %p82 = scmp.eq.s32.totalorder %s16, 0
    %p83 = por %p81, %p82
    %p84 = scmp.ne.s32.totalorder %s73, %s76
    %p85 = scmp.eq.s32.totalorder %s21, 1
    %p86 = por %p84, %p85
    %p87 = scmp.ne.s32.totalorder %s76, %s77
    %p88 = scmp.eq.s32.totalorder %s21, 0
    %p89 = por %p87, %p88
    %p90 = scmp.ne.s32.totalorder %s76, %s77
    %p91 = scmp.eq.s32.totalorder %s22, 1
    %p92 = por %p90, %p91
    %p94 = scmp.ne.s32.totalorder %s77, %s93
    %p95 = scmp.eq.s32.totalorder %s22, 0
    %p96 = por %p94, %p95
    %s97 = ssub.s32 %s16, %s23
    %p98 = scmp.eq.s32.totalorder %s97, 0
    %s100 = sadd.s32 %s99, 1
    %s101 = scalar_select %p98, %s99, %s100
    %p104 = pneg %p98
    %p105 = scmp.eq.s32.totalorder %s16, 1
    %p106 = por %p104, %p105
    %p107 = scmp.ne.s32.totalorder %s99, %s102
    %p108 = scmp.eq.s32.totalorder %s16, 0
    %p109 = por %p107, %p108
    %p110 = scmp.ne.s32.totalorder %s99, %s102
    %p111 = scmp.eq.s32.totalorder %s21, 1
    %p112 = por %p110, %p111
    %p113 = scmp.ne.s32.totalorder %s102, %s103
    %p114 = scmp.eq.s32.totalorder %s21, 0
    %p115 = por %p113, %p114
    %p116 = scmp.ne.s32.totalorder %s102, %s103
    %p117 = scmp.eq.s32.totalorder %s22, 1
    %p118 = por %p116, %p117
    %p120 = scmp.ne.s32.totalorder %s103, %s119
    %p121 = scmp.eq.s32.totalorder %s22, 0
    %p122 = por %p120, %p121
    %s123 = ssub.s32 %s16, %s23
    %p124 = scmp.eq.s32.totalorder %s123, 0
    %s126 = sadd.s32 %s125, 1
    %s127 = scalar_select %p124, %s125, %s126
    %p130 = pneg %p124
    %p131 = scmp.eq.s32.totalorder %s16, 1
    %p132 = por %p130, %p131
    %p133 = scmp.ne.s32.totalorder %s125, %s128
    %p134 = scmp.eq.s32.totalorder %s16, 0
    %p135 = por %p133, %p134
    %p136 = scmp.ne.s32.totalorder %s125, %s128
    %p137 = scmp.eq.s32.totalorder %s21, 1
    %p138 = por %p136, %p137
    %p139 = scmp.ne.s32.totalorder %s128, %s129
    %p140 = scmp.eq.s32.totalorder %s21, 0
    %p141 = por %p139, %p140
    %p142 = scmp.ne.s32.totalorder %s128, %s129
    %p143 = scmp.eq.s32.totalorder %s22, 1
    %p144 = por %p142, %p143
    %p146 = scmp.ne.s32.totalorder %s129, %s145
    %p147 = scmp.eq.s32.totalorder %s22, 0
    %p148 = por %p146, %p147
    %s149 = ssub.s32 %s16, %s23
    %p150 = scmp.eq.s32.totalorder %s149, 0
    %s152 = sadd.s32 %s151, 1
    %s153 = scalar_select %p150, %s151, %s152
    %p156 = pneg %p150
    %p157 = scmp.eq.s32.totalorder %s16, 1
    %p158 = por %p156, %p157
    %p159 = scmp.ne.s32.totalorder %s151, %s154
    %p160 = scmp.eq.s32.totalorder %s16, 0
    %p161 = por %p159, %p160
    %p162 = scmp.ne.s32.totalorder %s151, %s154
    %p163 = scmp.eq.s32.totalorder %s21, 1
    %p164 = por %p162, %p163
    %p165 = scmp.ne.s32.totalorder %s154, %s155
    %p166 = scmp.eq.s32.totalorder %s21, 0
    %p167 = por %p165, %p166
    %p168 = scmp.ne.s32.totalorder %s154, %s155
    %p169 = scmp.eq.s32.totalorder %s22, 1
    %p170 = por %p168, %p169
    %p172 = scmp.ne.s32.totalorder %s155, %s171
    %p173 = scmp.eq.s32.totalorder %s22, 0
    %p174 = por %p172, %p173
    %s175 = ssub.s32 %s16, %s23
    %p176 = scmp.eq.s32.totalorder %s175, 0
    %s178 = sadd.s32 %s177, 1
    %s179 = scalar_select %p176, %s177, %s178
    %p182 = pneg %p176
    %p183 = scmp.eq.s32.totalorder %s16, 1
    %p184 = por %p182, %p183
    %p185 = scmp.ne.s32.totalorder %s177, %s180
    %p186 = scmp.eq.s32.totalorder %s16, 0
    %p187 = por %p185, %p186
    %p188 = scmp.ne.s32.totalorder %s177, %s180
    %p189 = scmp.eq.s32.totalorder %s21, 1
    %p190 = por %p188, %p189
    %p191 = scmp.ne.s32.totalorder %s180, %s181
    %p192 = scmp.eq.s32.totalorder %s21, 0
    %p193 = por %p191, %p192
    %p194 = scmp.ne.s32.totalorder %s180, %s181
    %p195 = scmp.eq.s32.totalorder %s22, 1
    %p196 = por %p194, %p195
    %p198 = scmp.ne.s32.totalorder %s181, %s197
    %p199 = scmp.eq.s32.totalorder %s22, 0
    %p200 = por %p198, %p199
    %s201 = ssub.s32 %s16, %s23
    %p202 = scmp.eq.s32.totalorder %s201, 0
    %s204 = sadd.s32 %s203, 1
    %s205 = scalar_select %p202, %s203, %s204
    %p208 = pneg %p202
    %p209 = scmp.eq.s32.totalorder %s16, 1
    %p210 = por %p208, %p209
    %p211 = scmp.ne.s32.totalorder %s203, %s206
    %p212 = scmp.eq.s32.totalorder %s16, 0
    %p213 = por %p211, %p212
    %p214 = scmp.ne.s32.totalorder %s203, %s206
    %p215 = scmp.eq.s32.totalorder %s21, 1
    %p216 = por %p214, %p215
    %p217 = scmp.ne.s32.totalorder %s206, %s207
    %p218 = scmp.eq.s32.totalorder %s21, 0
    %p219 = por %p217, %p218
    %p220 = scmp.ne.s32.totalorder %s206, %s207
    %p221 = scmp.eq.s32.totalorder %s22, 1
    %p222 = por %p220, %p221
    %p224 = scmp.ne.s32.totalorder %s207, %s223
    %p225 = scmp.eq.s32.totalorder %s22, 0
    %p226 = por %p224, %p225
    %s227 = ssub.s32 %s16, %s23
    %p228 = scmp.eq.s32.totalorder %s227, 0
    %s230 = sadd.s32 %s229, 1
    %s231 = scalar_select %p228, %s229, %s230
    %p234 = pneg %p228
    %p235 = scmp.eq.s32.totalorder %s16, 1
    %p236 = por %p234, %p235
    %p237 = scmp.ne.s32.totalorder %s229, %s232
    %p238 = scmp.eq.s32.totalorder %s16, 0
    %p239 = por %p237, %p238
    %p240 = scmp.ne.s32.totalorder %s229, %s232
    %p241 = scmp.eq.s32.totalorder %s21, 1
    %p242 = por %p240, %p241
    %p243 = scmp.ne.s32.totalorder %s232, %s233
    %p244 = scmp.eq.s32.totalorder %s21, 0
    %p245 = por %p243, %p244
    %p246 = scmp.ne.s32.totalorder %s232, %s233
    %p247 = scmp.eq.s32.totalorder %s22, 1
    %p248 = por %p246, %p247
    %p250 = scmp.ne.s32.totalorder %s233, %s249
    %p251 = scmp.eq.s32.totalorder %s22, 0
    %p252 = por %p250, %p251
    %s253 = ssub.s32 %s16, %s23
    %p254 = scmp.eq.s32.totalorder %s253, 0
    %s256 = sadd.s32 %s255, 1
    %s257 = scalar_select %p254, %s255, %s256
    %p260 = pneg %p254
    %p261 = scmp.eq.s32.totalorder %s16, 1
    %p262 = por %p260, %p261
    %p263 = scmp.ne.s32.totalorder %s255, %s258
    %p264 = scmp.eq.s32.totalorder %s16, 0
    %p265 = por %p263, %p264
    %p266 = scmp.ne.s32.totalorder %s255, %s258
    %p267 = scmp.eq.s32.totalorder %s21, 1
    %p268 = por %p266, %p267
    %p269 = scmp.ne.s32.totalorder %s258, %s259
    %p270 = scmp.eq.s32.totalorder %s21, 0
    %p271 = por %p269, %p270
    %p272 = scmp.ne.s32.totalorder %s258, %s259
    %p273 = scmp.eq.s32.totalorder %s22, 1
    %p274 = por %p272, %p273
    %p276 = scmp.ne.s32.totalorder %s259, %s275
    %p277 = scmp.eq.s32.totalorder %s22, 0
    %p278 = por %p276, %p277
    %s279 = ssub.s32 %s16, %s23
    %p280 = scmp.eq.s32.totalorder %s279, 0
    %s282 = sadd.s32 %s281, 1
    %s283 = scalar_select %p280, %s281, %s282
    %p286 = pneg %p280
    %p287 = scmp.eq.s32.totalorder %s16, 1
    %p288 = por %p286, %p287
    %p289 = scmp.ne.s32.totalorder %s281, %s284
    %p290 = scmp.eq.s32.totalorder %s16, 0
    %p291 = por %p289, %p290
    %p292 = scmp.ne.s32.totalorder %s281, %s284
    %p293 = scmp.eq.s32.totalorder %s21, 1
    %p294 = por %p292, %p293
    %p295 = scmp.ne.s32.totalorder %s284, %s285
    %p296 = scmp.eq.s32.totalorder %s21, 0
    %p297 = por %p295, %p296
    %p298 = scmp.ne.s32.totalorder %s284, %s285
    %p299 = scmp.eq.s32.totalorder %s22, 1
    %p300 = por %p298, %p299
    %p302 = scmp.ne.s32.totalorder %s285, %s301
    %p303 = scmp.eq.s32.totalorder %s22, 0
    %p304 = por %p302, %p303
    %p305 = scmp.le.s32.totalorder 1, %s16
    %p306 = scmp.lt.s32.totalorder %s16, 3
    %p307 = pnand %p305, %p306
    %p308 = pneg %p307
    // Predicated region
    $region9: #{spell_forward.5} parent=5 // pred_check
      _
    $region10: #{spell_forward.5} parent=5 // pred_check_branch
      %310 = sbr.rel (%p307) target = $region12
    $region11: #{spell_forward.5} parent=5 // pred_region
      %s311 = ssub.s32 %s16, 1
      // Predicated region
      $region13: #{spell_forward.5} parent=11 // pred_check
        %p312 = pneg %p37
      $region14: #{spell_forward.5} parent=11 // pred_check_branch
        %314 = sbr.rel (%p312) target = $region16
      $region15: #{spell_forward.5} parent=11 // pred_region
        _
      $region16: #{spell_forward.5} parent=11 // pred_fallthru
        _
    $region12: #{spell_forward.5} parent=5 // pred_fallthru
      _
    %p315 = scmp.lt.s32.totalorder %s16, 2
    // Predicated region
    $region17: #{spell_forward.5} parent=5 // pred_check
      %p316 = pneg %p315
    $region18: #{spell_forward.5} parent=5 // pred_check_branch
      %318 = sbr.rel (%p316) target = $region20
    $region19: #{spell_forward.5} parent=5 // pred_region
      // Predicated region
      $region21: #{spell_forward.5} parent=19 // pred_check
        %p319 = pneg %p57
      $region22: #{spell_forward.5} parent=19 // pred_check_branch
        %321 = sbr.rel (%p319) target = $region24
      $region23: #{spell_forward.5} parent=19 // pred_region
        %p322 = scmp.lt.s32.totalorder %s16, 1
        %s323 = scalar_select %p322, %s16, 1
        %s324 = smul.addr %s323, 8
        %s325 = smul.addr %s324, 4
        %s326 = scalar_lea.vmem %s1, %s325
      $region24: #{spell_forward.5} parent=19 // pred_fallthru
        _
      // Predicated region
      $region25: #{spell_forward.5} parent=19 // pred_check
        %p327 = pneg %p83
      $region26: #{spell_forward.5} parent=19 // pred_check_branch
        %329 = sbr.rel (%p327) target = $region28
      $region27: #{spell_forward.5} parent=19 // pred_region
        %p330 = scmp.lt.s32.totalorder %s16, 1
        %s331 = scalar_select %p330, %s16, 1
        %s332 = smul.addr %s331, 8
        %s333 = smul.addr %s332, 8
        %s334 = scalar_lea.vmem %s2, %s333
      $region28: #{spell_forward.5} parent=19 // pred_fallthru
        _
      // Predicated region
      $region29: #{spell_forward.5} parent=19 // pred_check
        %p335 = pneg %p109
      $region30: #{spell_forward.5} parent=19 // pred_check_branch
        %337 = sbr.rel (%p335) target = $region32
      $region31: #{spell_forward.5} parent=19 // pred_region
        %p338 = scmp.lt.s32.totalorder %s16, 1
        %s339 = scalar_select %p338, %s16, 1
        %s340 = smul.addr %s339, 160
        %s341 = smul.addr %s340, 4
        %s342 = scalar_lea.vmem %s3, %s341
      $region32: #{spell_forward.5} parent=19 // pred_fallthru
        _
      // Predicated region
      $region33: #{spell_forward.5} parent=19 // pred_check
        %p343 = pneg %p135
      $region34: #{spell_forward.5} parent=19 // pred_check_branch
        %345 = sbr.rel (%p343) target = $region36
      $region35: #{spell_forward.5} parent=19 // pred_region
        %p346 = scmp.lt.s32.totalorder %s16, 1
        %s347 = scalar_select %p346, %s16, 1
        %s348 = smul.addr %s347, 80
        %s349 = smul.addr %s348, 4
        %s350 = scalar_lea.vmem %s4, %s349
      $region36: #{spell_forward.5} parent=19 // pred_fallthru
        _
      // Predicated region
      $region37: #{spell_forward.5} parent=19 // pred_check
        %p351 = pneg %p161
      $region38: #{spell_forward.5} parent=19 // pred_check_branch
        %353 = sbr.rel (%p351) target = $region40
      $region39: #{spell_forward.5} parent=19 // pred_region
        %p354 = scmp.lt.s32.totalorder %s16, 1
        %s355 = scalar_select %p354, %s16, 1
        %s356 = smul.addr %s355, 80
        %s357 = smul.addr %s356, 8
        %s358 = scalar_lea.vmem %s5, %s357
      $region40: #{spell_forward.5} parent=19 // pred_fallthru
        _
      // Predicated region
      $region41: #{spell_forward.5} parent=19 // pred_check
        %p359 = pneg %p187
      $region42: #{spell_forward.5} parent=19 // pred_check_branch
        %361 = sbr.rel (%p359) target = $region44
      $region43: #{spell_forward.5} parent=19 // pred_region
        %p362 = scmp.lt.s32.totalorder %s16, 1
        %s363 = scalar_select %p362, %s16, 1
        %s364 = smul.addr %s363, 80
        %s365 = smul.addr %s364, 4
        %s366 = scalar_lea.vmem %s6, %s365
      $region44: #{spell_forward.5} parent=19 // pred_fallthru
        _
      // Predicated region
      $region45: #{spell_forward.5} parent=19 // pred_check
        %p367 = pneg %p213
      $region46: #{spell_forward.5} parent=19 // pred_check_branch
        %369 = sbr.rel (%p367) target = $region48
      $region47: #{spell_forward.5} parent=19 // pred_region
        %p370 = scmp.lt.s32.totalorder %s16, 1
        %s371 = scalar_select %p370, %s16, 1
        %s372 = smul.addr %s371, 80
        %s373 = smul.addr %s372, 8
        %s374 = scalar_lea.vmem %s7, %s373
      $region48: #{spell_forward.5} parent=19 // pred_fallthru
        _
      // Predicated region
      $region49: #{spell_forward.5} parent=19 // pred_check
        %p375 = pneg %p239
      $region50: #{spell_forward.5} parent=19 // pred_check_branch
        %377 = sbr.rel (%p375) target = $region52
      $region51: #{spell_forward.5} parent=19 // pred_region
        %p378 = scmp.lt.s32.totalorder %s16, 1
        %s379 = scalar_select %p378, %s16, 1
        %s380 = smul.addr %s379, 2
        %s381 = smul.addr %s380, 4
        %s382 = scalar_lea.vmem %s8, %s381
      $region52: #{spell_forward.5} parent=19 // pred_fallthru
        _
      // Predicated region
      $region53: #{spell_forward.5} parent=19 // pred_check
        %p383 = pneg %p265
      $region54: #{spell_forward.5} parent=19 // pred_check_branch
        %385 = sbr.rel (%p383) target = $region56
      $region55: #{spell_forward.5} parent=19 // pred_region
        %p386 = scmp.lt.s32.totalorder %s16, 1
        %s387 = scalar_select %p386, %s16, 1
        %s388 = smul.addr %s387, 2
        %s389 = smul.addr %s388, 8
        %s390 = scalar_lea.vmem %s9, %s389
      $region56: #{spell_forward.5} parent=19 // pred_fallthru
        _
    $region20: #{spell_forward.5} parent=5 // pred_fallthru
      _
    %p391 = scmp.le.s32.totalorder 1, %s16
    %p392 = scmp.lt.s32.totalorder %s16, 3
    %p393 = pnand %p391, %p392
    %p394 = pneg %p393
    // Predicated region
    $region57: #{spell_forward.5} parent=5 // pred_check
      _
    $region58: #{spell_forward.5} parent=5 // pred_check_branch
      %396 = sbr.rel (%p393) target = $region60
    $region59: #{spell_forward.5} parent=5 // pred_region
      %s397 = ssub.s32 %s16, 1
      %p398 = pneg %p37
      %p399 = pneg %p34
      %p400 = scmp.lt.s32.totalorder %s21, 1
      %s401 = scalar_select %p400, %s21, 1
      %s402 = smul.addr %s401, 8
      %s403 = smul.addr %s402, 4
      %s404 = scalar_lea.vmem %s1, %s403
      %p405 = pneg %p63
      %p406 = pneg %p60
      %p407 = scmp.lt.s32.totalorder %s21, 1
      %s408 = scalar_select %p407, %s21, 1
      %s409 = smul.addr %s408, 8
      %s410 = smul.addr %s409, 8
      %s411 = scalar_lea.vmem %s2, %s410
      %p412 = pneg %p89
      %p413 = pneg %p86
      %p414 = scmp.lt.s32.totalorder %s21, 1
      %s415 = scalar_select %p414, %s21, 1
      %s416 = smul.addr %s415, 160
      %s417 = smul.addr %s416, 4
      %s418 = scalar_lea.vmem %s3, %s417
      %p419 = pneg %p115
      %p420 = pneg %p112
      %p421 = scmp.lt.s32.totalorder %s21, 1
      %s422 = scalar_select %p421, %s21, 1
      %s423 = smul.addr %s422, 80
      %s424 = smul.addr %s423, 4
      %s425 = scalar_lea.vmem %s4, %s424
      %p426 = pneg %p141
      %p427 = pneg %p138
      %p428 = scmp.lt.s32.totalorder %s21, 1
      %s429 = scalar_select %p428, %s21, 1
      %s430 = smul.addr %s429, 80
      %s431 = smul.addr %s430, 8
      %s432 = scalar_lea.vmem %s5, %s431
      %p433 = pneg %p167
      %p434 = pneg %p164
      %p435 = scmp.lt.s32.totalorder %s21, 1
      %s436 = scalar_select %p435, %s21, 1
      %s437 = smul.addr %s436, 80
      %s438 = smul.addr %s437, 4
      %s439 = scalar_lea.vmem %s6, %s438
      %p440 = pneg %p193
      %p441 = pneg %p190
      %p442 = scmp.lt.s32.totalorder %s21, 1
      %s443 = scalar_select %p442, %s21, 1
      %s444 = smul.addr %s443, 80
      %s445 = smul.addr %s444, 8
      %s446 = scalar_lea.vmem %s7, %s445
      %p447 = pneg %p219
      %p448 = pneg %p216
      %p449 = scmp.lt.s32.totalorder %s21, 1
      %s450 = scalar_select %p449, %s21, 1
      %s451 = smul.addr %s450, 2
      %s452 = smul.addr %s451, 4
      %s453 = scalar_lea.vmem %s8, %s452
      %p454 = pneg %p245
      %p455 = pneg %p242
      %p456 = scmp.lt.s32.totalorder %s21, 1
      %s457 = scalar_select %p456, %s21, 1
      %s458 = smul.addr %s457, 2
      %s459 = smul.addr %s458, 8
      %s460 = scalar_lea.vmem %s9, %s459
      %p461 = pneg %p271
      %p462 = pneg %p268
      %p463 = pneg %p297
      %p464 = pneg %p294
      %p465 = scmp.lt.s32.totalorder %s21, 1
      %s466 = scalar_select %p465, %s21, 1
      %s467 = smul.addr %s466, 2
      %s468 = smul.addr %s467, 8
      %s469 = scalar_lea.vmem %s10, %s468
      %p470 = scmp.lt.s32.totalorder %s21, 1
      %s471 = scalar_select %p470, %s21, 1
      %s472 = smul.addr %s471, 8
      %s473 = smul.addr %s472, 4
      %s474 = scalar_lea.vmem %s1, %s473
      %p475 = scmp.lt.s32.totalorder %s21, 1
      %s476 = scalar_select %p475, %s21, 1
      %s477 = smul.addr %s476, 8
      %s478 = smul.addr %s477, 8
      %s479 = scalar_lea.vmem %s2, %s478
      %p480 = scmp.lt.s32.totalorder %s21, 1
      %s481 = scalar_select %p480, %s21, 1
      %s482 = smul.addr %s481, 160
      %s483 = smul.addr %s482, 4
      %s484 = scalar_lea.vmem %s3, %s483
      %p485 = scmp.lt.s32.totalorder %s21, 1
      %s486 = scalar_select %p485, %s21, 1
      %s487 = smul.addr %s486, 80
      %s488 = smul.addr %s487, 4
      %s489 = scalar_lea.vmem %s4, %s488
      %p490 = scmp.lt.s32.totalorder %s21, 1
      %s491 = scalar_select %p490, %s21, 1
      %s492 = smul.addr %s491, 80
      %s493 = smul.addr %s492, 8
      %s494 = scalar_lea.vmem %s5, %s493
      %p495 = scmp.lt.s32.totalorder %s21, 1
      %s496 = scalar_select %p495, %s21, 1
      %s497 = smul.addr %s496, 80
      %s498 = smul.addr %s497, 4
      %s499 = scalar_lea.vmem %s6, %s498
      %p500 = scmp.lt.s32.totalorder %s21, 1
      %s501 = scalar_select %p500, %s21, 1
      %s502 = smul.addr %s501, 80
      %s503 = smul.addr %s502, 8
      %s504 = scalar_lea.vmem %s7, %s503
      %p505 = scmp.lt.s32.totalorder %s21, 1
      %s506 = scalar_select %p505, %s21, 1
      %s507 = smul.addr %s506, 2
      %s508 = smul.addr %s507, 4
      %s509 = scalar_lea.vmem %s8, %s508
      %p510 = scmp.lt.s32.totalorder %s21, 1
      %s511 = scalar_select %p510, %s21, 1
      %s512 = smul.addr %s511, 2
      %s513 = smul.addr %s512, 8
      %s514 = scalar_lea.vmem %s9, %s513
      %p515 = scmp.lt.s32.totalorder %s21, 1
      %s516 = scalar_select %p515, %s21, 1
      %s517 = smul.addr %s516, 2
      %s518 = smul.addr %s517, 8
      %s519 = scalar_lea.vmem %s10, %s518
      %p521 = scmp.eq.s32.totalorder %s21, 0
      // Predicated region
      $region61: #{spell_forward.5} parent=59 // pred_check
        %p522 = pneg %p521
      $region62: #{spell_forward.5} parent=59 // pred_check_branch
        %524 = sbr.rel (%p522) target = $region64
      $region63: #{spell_forward.5} parent=59 // pred_region
        %v525 = vld [vmem:[%s0] sm:$0xff]
        %v526 = vld [vmem:[%s0 + $0x8] sm:$0xff]
        %527 = vst [vmem:[#allocation2] sm:$0xff] %v525
        %528 = vst [vmem:[#allocation2 + $0x8] sm:$0xff] %v526
      $region64: #{spell_forward.5} parent=59 // pred_fallthru
        _
      %v529 = vld [vmem:[#allocation2] sm:$0xff]
      %v530 = vld [vmem:[#allocation2 + $0x8] sm:$0xff]
      %v531 = vmax.f32 %v529, %v530
      %v532 = vrot.slane %v531, 4
      %v533 = vmax.f32 %v531, %v532
      %v534 = vrot.slane %v533, 2
      %v535 = vmax.f32 %v533, %v534
      %v536 = vrot.slane %v535, 1
      %v537 = vmax.f32 %v535, %v536
      %v538 = vsub.f32 %v529, %v537
      %v539 = vsub.f32 %v530, %v537
      %v540 = vmul.f32 %v538, 1.442695
      %v541 = vpow.pop %v540
      %v542 = vmul.f32 %v539, 1.442695
      %v543 = vpow.pop %v542
      %v544 = vadd.f32 %v541, %v543
      %v545 = vrot.slane %v544, 4
      %v546 = vadd.f32 %v544, %v545
      %v547 = vrot.slane %v546, 2
      %v548 = vadd.f32 %v546, %v547
      %v549 = vrot.slane %v548, 1
      %v550 = vadd.f32 %v548, %v549
      %v551 = vrcp.pop %v550
      %v552 = vmul.f32 %v541, %v551
      %v553 = vmul.f32 %v543, %v551
      %v554 = vlaneseq
      %v555 = vand.u32 %v554, 127
      %vm556 = vcmp.lt.s32.totalorder %v555, 24
      %v557 = vld [vmem:[%s474] sm:$0xf]
      %v558 = vld [vmem:[%s474 + $0x4] sm:$0xf]
      %v559 = vld [vmem:[%s474 + $0x8] sm:$0xf]
      %v560 = vld [vmem:[%s474 + $0xc] sm:$0xf]
      %v561 = vld [vmem:[%s474 + $0x10] sm:$0xf]
      %v562 = vld [vmem:[%s474 + $0x14] sm:$0xf]
      %v563 = vld [vmem:[%s474 + $0x18] sm:$0xf]
      %v564 = vld [vmem:[%s474 + $0x1c] sm:$0xf]
      %v565 = vpack.c.bf16 %v553, %v552
      %v566 = vld [vmem:[%s479] sm:$0xff]
      %v567 = vld [vmem:[%s479 + $0x8] sm:$0xff]
      %v568 = vld [vmem:[%s479 + $0x10] sm:$0xff]
      %v569 = vld [vmem:[%s479 + $0x18] sm:$0xff]
      %v570 = vld [vmem:[%s479 + $0x20] sm:$0xff]
      %v571 = vld [vmem:[%s479 + $0x28] sm:$0xff]
      %v572 = vld [vmem:[%s479 + $0x30] sm:$0xff]
      %v573 = vld [vmem:[%s479 + $0x38] sm:$0xff]
      %575 = vset.pattern.permute.xlu0 0
      %576 = vperm.xlu0 %575, %v566
      %v577 = vpop.permute.xlu0 %576
      %580 = vset.pattern.permute.xlu0 0
      %581 = vperm.xlu0 %580, %v567
      %v582 = vpop.permute.xlu0 %581
      %585 = vset.pattern.permute.xlu0 0
      %586 = vperm.xlu0 %585, %v568
      %v587 = vpop.permute.xlu0 %586
      %590 = vset.pattern.permute.xlu0 0
      %591 = vperm.xlu0 %590, %v569
      %v592 = vpop.permute.xlu0 %591
      %595 = vset.pattern.permute.xlu0 0
      %596 = vperm.xlu0 %595, %v570
      %v597 = vpop.permute.xlu0 %596
      %600 = vset.pattern.permute.xlu0 0
      %601 = vperm.xlu0 %600, %v571
      %v602 = vpop.permute.xlu0 %601
      %605 = vset.pattern.permute.xlu0 0
      %606 = vperm.xlu0 %605, %v572
      %v607 = vpop.permute.xlu0 %606
      %610 = vset.pattern.permute.xlu0 0
      %611 = vperm.xlu0 %610, %v573
      %v612 = vpop.permute.xlu0 %611
      %v622 = vunpack.c.l.b16 %v557
      %v623 = vunpack.c.l.b16 %v558
      %v624 = vunpack.c.l.b16 %v559
      %v625 = vunpack.c.l.b16 %v560
      %v626 = vunpack.c.l.b16 %v561
      %v627 = vunpack.c.l.b16 %v562
      %v628 = vunpack.c.l.b16 %v563
      %v629 = vunpack.c.l.b16 %v564
      %v630 = vpack.c.b16 %v623, %v622
      %v631 = vpack.c.b16 %v625, %v624
      %v632 = vpack.c.b16 %v627, %v626
      %v633 = vpack.c.b16 %v629, %v628
      %vm634 = vcmask 130048
      %v636 = vsel %vm634, %v630, 0
      %v639 = vsel %vm634, %v631, 0
      %v642 = vsel %vm634, %v632, 0
      %v645 = vsel %vm634, %v633, 0
      %647 = vmatpush.bf16.msra.mxu0 0
      %648 = vmatpush.bf16.msra.mxu0 0
      %649 = vmatpush.bf16.msra.mxu0 0
      %650 = vmatpush.bf16.msra.mxu0 0
      %651 = vmatpush.bf16.msra.mxu0 0
      %652 = vmatpush.bf16.msra.mxu0 0
      %653 = vmatpush.bf16.msra.mxu0 0
      %654 = vmatpush.bf16.msra.mxu0 %v565
      %655 = vmatmul.bf16.gmra.mxu0 %v636
      %v656 = vpop.f32.mrf.mxu0
      %v657 = vadd.f32 %v577, %v656
      %v658 = vpop.f32.mrf.mxu0
      %v659 = vadd.f32 %v582, %v658
      %660 = vmatmul.bf16.gmra.mxu0 %v639
      %v661 = vpop.f32.mrf.mxu0
      %v662 = vadd.f32 %v587, %v661
      %v663 = vpop.f32.mrf.mxu0
      %v664 = vadd.f32 %v592, %v663
      %665 = vmatmul.bf16.gmra.mxu0 %v642
      %v666 = vpop.f32.mrf.mxu0
      %v667 = vadd.f32 %v597, %v666
      %v668 = vpop.f32.mrf.mxu0
      %v669 = vadd.f32 %v602, %v668
      %670 = vmatmul.bf16.gmra.mxu0 %v645
      %v671 = vpop.f32.mrf.mxu0
      %v672 = vadd.f32 %v607, %v671
      %v673 = vpop.f32.mrf.mxu0
      %v674 = vadd.f32 %v612, %v673
      %675 = vdwg.mxu0
      %v676 = vsel %vm556, 1, 0
      %vm677 = vcmp.eq.s32.totalorder %v676, 1
      %v678 = vsel %vm677, %v657, 0.0
      %v679 = vsel %vm677, %v659, 0.0
      %v680 = vsel %vm677, %v662, 0.0
      %v681 = vsel %vm677, %v664, 0.0
      %v682 = vsel %vm677, %v667, 0.0
      %v683 = vsel %vm677, %v669, 0.0
      %v684 = vsel %vm677, %v672, 0.0
      %v685 = vsel %vm677, %v674, 0.0
      %vm686 = vcmp.ge.s32.totalorder %v555, 1
      %687 = vrot.lane.b32.xlu0 %v678, 1
      %v688 = vpop.permute.xlu0 %687
      %689 = vrot.lane.b32.xlu0 %v679, 1
      %v690 = vpop.permute.xlu0 %689
      %691 = vrot.lane.b32.xlu0 %v680, 1
      %v692 = vpop.permute.xlu0 %691
      %693 = vrot.lane.b32.xlu0 %v681, 1
      %v694 = vpop.permute.xlu0 %693
      %695 = vrot.lane.b32.xlu0 %v682, 1
      %v696 = vpop.permute.xlu0 %695
      %697 = vrot.lane.b32.xlu0 %v683, 1
      %v698 = vpop.permute.xlu0 %697
      %699 = vrot.lane.b32.xlu0 %v684, 1
      %v700 = vpop.permute.xlu0 %699
      %701 = vrot.lane.b32.xlu0 %v685, 1
      %v702 = vpop.permute.xlu0 %701
      %v703 = vsel %vm686, 1, 0
      %vm704 = vcmp.eq.s32.totalorder %v703, 1
      %v705 = vsel %vm704, %v688, 0.0
      %v706 = vsel %vm704, %v690, 0.0
      %v707 = vsel %vm704, %v692, 0.0
      %v708 = vsel %vm704, %v694, 0.0
      %v709 = vsel %vm704, %v696, 0.0
      %v710 = vsel %vm704, %v698, 0.0
      %v711 = vsel %vm704, %v700, 0.0
      %v712 = vsel %vm704, %v702, 0.0
      %vm713 = vcmp.lt.s32.totalorder %v555, 127
      %714 = vrot.lane.b32.xlu0 %v678, 127
      %v715 = vpop.permute.xlu0 %714
      %716 = vrot.lane.b32.xlu0 %v679, 127
      %v717 = vpop.permute.xlu0 %716
      %718 = vrot.lane.b32.xlu0 %v680, 127
      %v719 = vpop.permute.xlu0 %718
      %720 = vrot.lane.b32.xlu0 %v681, 127
      %v721 = vpop.permute.xlu0 %720
      %722 = vrot.lane.b32.xlu0 %v682, 127
      %v723 = vpop.permute.xlu0 %722
      %724 = vrot.lane.b32.xlu0 %v683, 127
      %v725 = vpop.permute.xlu0 %724
      %726 = vrot.lane.b32.xlu0 %v684, 127
      %v727 = vpop.permute.xlu0 %726
      %728 = vrot.lane.b32.xlu0 %v685, 127
      %v729 = vpop.permute.xlu0 %728
      %v730 = vsel %vm713, 1, 0
      %vm731 = vcmp.eq.s32.totalorder %v730, 1
      %v732 = vsel %vm731, %v715, 0.0
      %v733 = vsel %vm731, %v717, 0.0
      %v734 = vsel %vm731, %v719, 0.0
      %v735 = vsel %vm731, %v721, 0.0
      %v736 = vsel %vm731, %v723, 0.0
      %v737 = vsel %vm731, %v725, 0.0
      %v738 = vsel %vm731, %v727, 0.0
      %v739 = vsel %vm731, %v729, 0.0
      %v740 = vpack.c.bf16 %v706, %v705
      %v741 = vpack.c.bf16 %v708, %v707
      %v742 = vpack.c.bf16 %v710, %v709
      %v743 = vpack.c.bf16 %v712, %v711
      %v744 = vpack.c.bf16 %v679, %v678
      %v745 = vpack.c.bf16 %v681, %v680
      %v746 = vpack.c.bf16 %v683, %v682
      %v747 = vpack.c.bf16 %v685, %v684
      %v748 = vpack.c.bf16 %v733, %v732
      %v749 = vpack.c.bf16 %v735, %v734
      %v750 = vpack.c.bf16 %v737, %v736
      %v751 = vpack.c.bf16 %v739, %v738
      %v752 = vld [vmem:[%s484] sm:$0xff]
      %v753 = vld [vmem:[%s484 + $0x8] sm:$0xff]
      %v754 = vld [vmem:[%s484 + $0x10] sm:$0xff]
      %v755 = vld [vmem:[%s484 + $0x18] sm:$0xff]
      %v756 = vld [vmem:[%s484 + $0x20] sm:$0xff]
      %v757 = vld [vmem:[%s484 + $0x28] sm:$0xff]
      %v758 = vld [vmem:[%s484 + $0x30] sm:$0xff]
      %v759 = vld [vmem:[%s484 + $0x38] sm:$0xff]
      %v760 = vld [vmem:[%s494] sm:$0xff]
      %v761 = vld [vmem:[%s494 + $0x8] sm:$0xff]
      %v762 = vld [vmem:[%s494 + $0x10] sm:$0xff]
      %v763 = vld [vmem:[%s494 + $0x18] sm:$0xff]
      %v764 = vld [vmem:[%s494 + $0x20] sm:$0xff]
      %v765 = vld [vmem:[%s494 + $0x28] sm:$0xff]
      %v766 = vld [vmem:[%s494 + $0x30] sm:$0xff]
      %v767 = vld [vmem:[%s494 + $0x38] sm:$0xff]
      %769 = vset.pattern.permute.xlu0 0
      %770 = vperm.xlu0 %769, %v760
      %v771 = vpop.permute.xlu0 %770
      %774 = vset.pattern.permute.xlu0 0
      %775 = vperm.xlu0 %774, %v761
      %v776 = vpop.permute.xlu0 %775
      %779 = vset.pattern.permute.xlu0 0
      %780 = vperm.xlu0 %779, %v762
      %v781 = vpop.permute.xlu0 %780
      %784 = vset.pattern.permute.xlu0 0
      %785 = vperm.xlu0 %784, %v763
      %v786 = vpop.permute.xlu0 %785
      %789 = vset.pattern.permute.xlu0 0
      %790 = vperm.xlu0 %789, %v764
      %v791 = vpop.permute.xlu0 %790
      %794 = vset.pattern.permute.xlu0 0
      %795 = vperm.xlu0 %794, %v765
      %v796 = vpop.permute.xlu0 %795
      %799 = vset.pattern.permute.xlu0 0
      %800 = vperm.xlu0 %799, %v766
      %v801 = vpop.permute.xlu0 %800
      %804 = vset.pattern.permute.xlu0 0
      %805 = vperm.xlu0 %804, %v767
      %v806 = vpop.permute.xlu0 %805
      %v816 = vunpack.c.l.b16 %v752
      %v817 = vunpack.c.h.b16 %v752
      %v818 = vunpack.c.l.b16 %v753
      %v819 = vunpack.c.h.b16 %v753
      %v820 = vunpack.c.l.b16 %v754
      %v821 = vunpack.c.h.b16 %v754
      %v822 = vunpack.c.l.b16 %v755
      %v823 = vunpack.c.h.b16 %v755
      %v824 = vunpack.c.l.b16 %v756
      %v825 = vunpack.c.h.b16 %v756
      %v826 = vunpack.c.l.b16 %v757
      %v827 = vunpack.c.h.b16 %v757
      %v828 = vunpack.c.l.b16 %v758
      %v829 = vunpack.c.h.b16 %v758
      %v830 = vunpack.c.l.b16 %v759
      %v831 = vunpack.c.h.b16 %v759
      %v832 = vpack.c.b16 %v818, %v816
      %v833 = vpack.c.b16 %v819, %v817
      %v834 = vpack.c.b16 %v822, %v820
      %v835 = vpack.c.b16 %v823, %v821
      %v836 = vpack.c.b16 %v826, %v824
      %v837 = vpack.c.b16 %v827, %v825
      %v838 = vpack.c.b16 %v830, %v828
      %v839 = vpack.c.b16 %v831, %v829
      %vm844 = vcmask 523264
      %v846 = vsel %vm844, %v833, 0
      %v849 = vsel %vm844, %v835, 0
      %v852 = vsel %vm844, %v837, 0
      %v855 = vsel %vm844, %v839, 0
      %857 = vmatpush.bf16.msra.mxu0 %v747
      %858 = vmatpush.bf16.msra.mxu0 %v746
      %859 = vmatpush.bf16.msra.mxu0 %v745
      %860 = vmatpush.bf16.msra.mxu0 %v744
      %861 = vmatpush.bf16.msra.mxu0 %v743
      %862 = vmatpush.bf16.msra.mxu0 %v742
      %863 = vmatpush.bf16.msra.mxu0 %v741
      %864 = vmatpush.bf16.msra.mxu0 %v740
      %865 = vmatmul.bf16.gmra.mxu0 %v832
      %v866 = vpop.f32.mrf.mxu0
      %v867 = vadd.f32 %v771, %v866
      %v868 = vpop.f32.mrf.mxu0
      %v869 = vadd.f32 %v776, %v868
      %870 = vmatmul.bf16.gmra.mxu0 %v834
      %v871 = vpop.f32.mrf.mxu0
      %v872 = vadd.f32 %v781, %v871
      %v873 = vpop.f32.mrf.mxu0
      %v874 = vadd.f32 %v786, %v873
      %875 = vmatmul.bf16.gmra.mxu0 %v836
      %v876 = vpop.f32.mrf.mxu0
      %v877 = vadd.f32 %v791, %v876
      %v878 = vpop.f32.mrf.mxu0
      %v879 = vadd.f32 %v796, %v878
      %880 = vmatmul.bf16.gmra.mxu0 %v838
      %v881 = vpop.f32.mrf.mxu0
      %v882 = vadd.f32 %v801, %v881
      %v883 = vpop.f32.mrf.mxu0
      %v884 = vadd.f32 %v806, %v883
      %885 = vdwg.mxu0
      %886 = vmatpush.bf16.msra.mxu0 0
      %887 = vmatpush.bf16.msra.mxu0 0
      %888 = vmatpush.bf16.msra.mxu0 0
      %889 = vmatpush.bf16.msra.mxu0 0
      %890 = vmatpush.bf16.msra.mxu0 %v751
      %891 = vmatpush.bf16.msra.mxu0 %v750
      %892 = vmatpush.bf16.msra.mxu0 %v749
      %893 = vmatpush.bf16.msra.mxu0 %v748
      %894 = vmatmul.bf16.gmra.mxu0 %v846
      %v895 = vpop.f32.mrf.mxu0
      %v896 = vadd.f32 %v867, %v895
      %v897 = vpop.f32.mrf.mxu0
      %v898 = vadd.f32 %v869, %v897
      %899 = vmatmul.bf16.gmra.mxu0 %v849
      %v900 = vpop.f32.mrf.mxu0
      %v901 = vadd.f32 %v872, %v900
      %v902 = vpop.f32.mrf.mxu0
      %v903 = vadd.f32 %v874, %v902
      %904 = vmatmul.bf16.gmra.mxu0 %v852
      %v905 = vpop.f32.mrf.mxu0
      %v906 = vadd.f32 %v877, %v905
      %v907 = vpop.f32.mrf.mxu0
      %v908 = vadd.f32 %v879, %v907
      %909 = vmatmul.bf16.gmra.mxu0 %v855
      %v910 = vpop.f32.mrf.mxu0
      %v911 = vadd.f32 %v882, %v910
      %v912 = vpop.f32.mrf.mxu0
      %v913 = vadd.f32 %v884, %v912
      %914 = vdwg.mxu0
      %v915 = vmax.f32 %v896, 0.0
      %v916 = vmax.f32 %v898, 0.0
      %v917 = vmax.f32 %v901, 0.0
      %v918 = vmax.f32 %v903, 0.0
      %v919 = vmax.f32 %v906, 0.0
      %v920 = vmax.f32 %v908, 0.0
      %v921 = vmax.f32 %v911, 0.0
      %v922 = vmax.f32 %v913, 0.0
      %v923 = vld [vmem:[%s499] sm:$0xf]
      %v924 = vld [vmem:[%s499 + $0x4] sm:$0xf]
      %v925 = vld [vmem:[%s499 + $0x8] sm:$0xf]
      %v926 = vld [vmem:[%s499 + $0xc] sm:$0xf]
      %v927 = vld [vmem:[%s499 + $0x10] sm:$0xf]
      %v928 = vld [vmem:[%s499 + $0x14] sm:$0xf]
      %v929 = vld [vmem:[%s499 + $0x18] sm:$0xf]
      %v930 = vld [vmem:[%s499 + $0x1c] sm:$0xf]
      %v931 = vpack.c.bf16 %v916, %v915
      %v932 = vpack.c.bf16 %v918, %v917
      %v933 = vpack.c.bf16 %v920, %v919
      %v934 = vpack.c.bf16 %v922, %v921
      %v935 = vld [vmem:[%s504] sm:$0xff]
      %v936 = vld [vmem:[%s504 + $0x8] sm:$0xff]
      %v937 = vld [vmem:[%s504 + $0x10] sm:$0xff]
      %v938 = vld [vmem:[%s504 + $0x18] sm:$0xff]
      %v939 = vld [vmem:[%s504 + $0x20] sm:$0xff]
      %v940 = vld [vmem:[%s504 + $0x28] sm:$0xff]
      %v941 = vld [vmem:[%s504 + $0x30] sm:$0xff]
      %v942 = vld [vmem:[%s504 + $0x38] sm:$0xff]
      %944 = vset.pattern.permute.xlu0 0
      %945 = vperm.xlu0 %944, %v935
      %v946 = vpop.permute.xlu0 %945
      %949 = vset.pattern.permute.xlu0 0
      %950 = vperm.xlu0 %949, %v936
      %v951 = vpop.permute.xlu0 %950
      %954 = vset.pattern.permute.xlu0 0
      %955 = vperm.xlu0 %954, %v937
      %v956 = vpop.permute.xlu0 %955
      %959 = vset.pattern.permute.xlu0 0
      %960 = vperm.xlu0 %959, %v938
      %v961 = vpop.permute.xlu0 %960
      %964 = vset.pattern.permute.xlu0 0
      %965 = vperm.xlu0 %964, %v939
      %v966 = vpop.permute.xlu0 %965
      %969 = vset.pattern.permute.xlu0 0
      %970 = vperm.xlu0 %969, %v940
      %v971 = vpop.permute.xlu0 %970
      %974 = vset.pattern.permute.xlu0 0
      %975 = vperm.xlu0 %974, %v941
      %v976 = vpop.permute.xlu0 %975
      %979 = vset.pattern.permute.xlu0 0
      %980 = vperm.xlu0 %979, %v942
      %v981 = vpop.permute.xlu0 %980
      %v991 = vunpack.c.l.b16 %v923
      %v992 = vunpack.c.l.b16 %v924
      %v993 = vunpack.c.l.b16 %v925
      %v994 = vunpack.c.l.b16 %v926
      %v995 = vunpack.c.l.b16 %v927
      %v996 = vunpack.c.l.b16 %v928
      %v997 = vunpack.c.l.b16 %v929
      %v998 = vunpack.c.l.b16 %v930
      %v999 = vpack.c.b16 %v992, %v991
      %v1000 = vpack.c.b16 %v994, %v993
      %v1001 = vpack.c.b16 %v996, %v995
      %v1002 = vpack.c.b16 %v998, %v997
      %v1004 = vsel %vm844, %v999, 0
      %v1007 = vsel %vm844, %v1000, 0
      %v1010 = vsel %vm844, %v1001, 0
      %v1013 = vsel %vm844, %v1002, 0
      %1015 = vmatpush.bf16.msra.mxu0 0
      %1016 = vmatpush.bf16.msra.mxu0 0
      %1017 = vmatpush.bf16.msra.mxu0 0
      %1018 = vmatpush.bf16.msra.mxu0 0
      %1019 = vmatpush.bf16.msra.mxu0 %v934
      %1020 = vmatpush.bf16.msra.mxu0 %v933
      %1021 = vmatpush.bf16.msra.mxu0 %v932
      %1022 = vmatpush.bf16.msra.mxu0 %v931
      %1023 = vmatmul.bf16.gmra.mxu0 %v1004
      %v1024 = vpop.f32.mrf.mxu0
      %v1025 = vadd.f32 %v946, %v1024
      %v1026 = vpop.f32.mrf.mxu0
      %v1027 = vadd.f32 %v951, %v1026
      %1028 = vmatmul.bf16.gmra.mxu0 %v1007
      %v1029 = vpop.f32.mrf.mxu0
      %v1030 = vadd.f32 %v956, %v1029
      %v1031 = vpop.f32.mrf.mxu0
      %v1032 = vadd.f32 %v961, %v1031
      %1033 = vmatmul.bf16.gmra.mxu0 %v1010
      %v1034 = vpop.f32.mrf.mxu0
      %v1035 = vadd.f32 %v966, %v1034
      %v1036 = vpop.f32.mrf.mxu0
      %v1037 = vadd.f32 %v971, %v1036
      %1038 = vmatmul.bf16.gmra.mxu0 %v1013
      %v1039 = vpop.f32.mrf.mxu0
      %v1040 = vadd.f32 %v976, %v1039
      %v1041 = vpop.f32.mrf.mxu0
      %v1042 = vadd.f32 %v981, %v1041
      %1043 = vdwg.mxu0
      %v1044 = vadd.f32 %v678, %v1025
      %v1045 = vadd.f32 %v679, %v1027
      %v1046 = vadd.f32 %v680, %v1030
      %v1047 = vadd.f32 %v681, %v1032
      %v1048 = vadd.f32 %v682, %v1035
      %v1049 = vadd.f32 %v683, %v1037
      %v1050 = vadd.f32 %v684, %v1040
      %v1051 = vadd.f32 %v685, %v1042
      %v1052 = vsel %vm677, %v1044, 0.0
      %v1053 = vsel %vm677, %v1045, 0.0
      %v1054 = vsel %vm677, %v1046, 0.0
      %v1055 = vsel %vm677, %v1047, 0.0
      %v1056 = vsel %vm677, %v1048, 0.0
      %v1057 = vsel %vm677, %v1049, 0.0
      %v1058 = vsel %vm677, %v1050, 0.0
      %v1059 = vsel %vm677, %v1051, 0.0
      %vm1060 = vcmp.ge.s32.totalorder %v555, 2
      %1061 = vrot.lane.b32.xlu0 %v1052, 2
      %v1062 = vpop.permute.xlu0 %1061
      %1063 = vrot.lane.b32.xlu0 %v1053, 2
      %v1064 = vpop.permute.xlu0 %1063
      %1065 = vrot.lane.b32.xlu0 %v1054, 2
      %v1066 = vpop.permute.xlu0 %1065
      %1067 = vrot.lane.b32.xlu0 %v1055, 2
      %v1068 = vpop.permute.xlu0 %1067
      %1069 = vrot.lane.b32.xlu0 %v1056, 2
      %v1070 = vpop.permute.xlu0 %1069
      %1071 = vrot.lane.b32.xlu0 %v1057, 2
      %v1072 = vpop.permute.xlu0 %1071
      %1073 = vrot.lane.b32.xlu0 %v1058, 2
      %v1074 = vpop.permute.xlu0 %1073
      %1075 = vrot.lane.b32.xlu0 %v1059, 2
      %v1076 = vpop.permute.xlu0 %1075
      %v1077 = vsel %vm1060, 1, 0
      %vm1078 = vcmp.eq.s32.totalorder %v1077, 1
      %v1079 = vsel %vm1078, %v1062, 0.0
      %v1080 = vsel %vm1078, %v1064, 0.0
      %v1081 = vsel %vm1078, %v1066, 0.0
      %v1082 = vsel %vm1078, %v1068, 0.0
      %v1083 = vsel %vm1078, %v1070, 0.0
      %v1084 = vsel %vm1078, %v1072, 0.0
      %v1085 = vsel %vm1078, %v1074, 0.0
      %v1086 = vsel %vm1078, %v1076, 0.0
      %vm1087 = vcmp.lt.s32.totalorder %v555, 126
      %1088 = vrot.lane.b32.xlu0 %v1052, 126
      %v1089 = vpop.permute.xlu0 %1088
      %1090 = vrot.lane.b32.xlu0 %v1053, 126
      %v1091 = vpop.permute.xlu0 %1090
      %1092 = vrot.lane.b32.xlu0 %v1054, 126
      %v1093 = vpop.permute.xlu0 %1092
      %1094 = vrot.lane.b32.xlu0 %v1055, 126
      %v1095 = vpop.permute.xlu0 %1094
      %1096 = vrot.lane.b32.xlu0 %v1056, 126
      %v1097 = vpop.permute.xlu0 %1096
      %1098 = vrot.lane.b32.xlu0 %v1057, 126
      %v1099 = vpop.permute.xlu0 %1098
      %1100 = vrot.lane.b32.xlu0 %v1058, 126
      %v1101 = vpop.permute.xlu0 %1100
      %1102 = vrot.lane.b32.xlu0 %v1059, 126
      %v1103 = vpop.permute.xlu0 %1102
      %v1104 = vsel %vm1087, 1, 0
      %vm1105 = vcmp.eq.s32.totalorder %v1104, 1
      %v1106 = vsel %vm1105, %v1089, 0.0
      %v1107 = vsel %vm1105, %v1091, 0.0
      %v1108 = vsel %vm1105, %v1093, 0.0
      %v1109 = vsel %vm1105, %v1095, 0.0
      %v1110 = vsel %vm1105, %v1097, 0.0
      %v1111 = vsel %vm1105, %v1099, 0.0
      %v1112 = vsel %vm1105, %v1101, 0.0
      %v1113 = vsel %vm1105, %v1103, 0.0
      %v1114 = vpack.c.bf16 %v1080, %v1079
      %v1115 = vpack.c.bf16 %v1082, %v1081
      %v1116 = vpack.c.bf16 %v1084, %v1083
      %v1117 = vpack.c.bf16 %v1086, %v1085
      %v1118 = vpack.c.bf16 %v1053, %v1052
      %v1119 = vpack.c.bf16 %v1055, %v1054
      %v1120 = vpack.c.bf16 %v1057, %v1056
      %v1121 = vpack.c.bf16 %v1059, %v1058
      %v1122 = vpack.c.bf16 %v1107, %v1106
      %v1123 = vpack.c.bf16 %v1109, %v1108
      %v1124 = vpack.c.bf16 %v1111, %v1110
      %v1125 = vpack.c.bf16 %v1113, %v1112
      %s1126 = scalar_lea.vmem %s484, 64
      %v1127 = vld [vmem:[%s1126] sm:$0xff]
      %v1128 = vld [vmem:[%s1126 + $0x8] sm:$0xff]
      %v1129 = vld [vmem:[%s1126 + $0x10] sm:$0xff]
      %v1130 = vld [vmem:[%s1126 + $0x18] sm:$0xff]
      %v1131 = vld [vmem:[%s1126 + $0x20] sm:$0xff]
      %v1132 = vld [vmem:[%s1126 + $0x28] sm:$0xff]
      %v1133 = vld [vmem:[%s1126 + $0x30] sm:$0xff]
      %v1134 = vld [vmem:[%s1126 + $0x38] sm:$0xff]
      %s1135 = scalar_lea.vmem %s494, 64
      %v1136 = vld [vmem:[%s1135] sm:$0xff]
      %v1137 = vld [vmem:[%s1135 + $0x8] sm:$0xff]
      %v1138 = vld [vmem:[%s1135 + $0x10] sm:$0xff]
      %v1139 = vld [vmem:[%s1135 + $0x18] sm:$0xff]
      %v1140 = vld [vmem:[%s1135 + $0x20] sm:$0xff]
      %v1141 = vld [vmem:[%s1135 + $0x28] sm:$0xff]
      %v1142 = vld [vmem:[%s1135 + $0x30] sm:$0xff]
      %v1143 = vld [vmem:[%s1135 + $0x38] sm:$0xff]
      %1145 = vset.pattern.permute.xlu0 0
      %1146 = vperm.xlu0 %1145, %v1136
      %v1147 = vpop.permute.xlu0 %1146
      %1150 = vset.pattern.permute.xlu0 0
      %1151 = vperm.xlu0 %1150, %v1137
      %v1152 = vpop.permute.xlu0 %1151
      %1155 = vset.pattern.permute.xlu0 0
      %1156 = vperm.xlu0 %1155, %v1138
      %v1157 = vpop.permute.xlu0 %1156
      %1160 = vset.pattern.permute.xlu0 0
      %1161 = vperm.xlu0 %1160, %v1139
      %v1162 = vpop.permute.xlu0 %1161
      %1165 = vset.pattern.permute.xlu0 0
      %1166 = vperm.xlu0 %1165, %v1140
      %v1167 = vpop.permute.xlu0 %1166
      %1170 = vset.pattern.permute.xlu0 0
      %1171 = vperm.xlu0 %1170, %v1141
      %v1172 = vpop.permute.xlu0 %1171
      %1175 = vset.pattern.permute.xlu0 0
      %1176 = vperm.xlu0 %1175, %v1142
      %v1177 = vpop.permute.xlu0 %1176
      %1180 = vset.pattern.permute.xlu0 0
      %1181 = vperm.xlu0 %1180, %v1143
      %v1182 = vpop.permute.xlu0 %1181
      %v1192 = vunpack.c.l.b16 %v1127
      %v1193 = vunpack.c.h.b16 %v1127
      %v1194 = vunpack.c.l.b16 %v1128
      %v1195 = vunpack.c.h.b16 %v1128
      %v1196 = vunpack.c.l.b16 %v1129
      %v1197 = vunpack.c.h.b16 %v1129
      %v1198 = vunpack.c.l.b16 %v1130
      %v1199 = vunpack.c.h.b16 %v1130
      %v1200 = vunpack.c.l.b16 %v1131
      %v1201 = vunpack.c.h.b16 %v1131
      %v1202 = vunpack.c.l.b16 %v1132
      %v1203 = vunpack.c.h.b16 %v1132
      %v1204 = vunpack.c.l.b16 %v1133
      %v1205 = vunpack.c.h.b16 %v1133
      %v1206 = vunpack.c.l.b16 %v1134
      %v1207 = vunpack.c.h.b16 %v1134
      %v1208 = vpack.c.b16 %v1194, %v1192
      %v1209 = vpack.c.b16 %v1195, %v1193
      %v1210 = vpack.c.b16 %v1198, %v1196
      %v1211 = vpack.c.b16 %v1199, %v1197
      %v1212 = vpack.c.b16 %v1202, %v1200
      %v1213 = vpack.c.b16 %v1203, %v1201
      %v1214 = vpack.c.b16 %v1206, %v1204
      %v1215 = vpack.c.b16 %v1207, %v1205
      %v1221 = vsel %vm844, %v1209, 0
      %v1224 = vsel %vm844, %v1211, 0
      %v1227 = vsel %vm844, %v1213, 0
      %v1230 = vsel %vm844, %v1215, 0
      %1232 = vmatpush.bf16.msra.mxu0 %v1121
      %1233 = vmatpush.bf16.msra.mxu0 %v1120
      %1234 = vmatpush.bf16.msra.mxu0 %v1119
      %1235 = vmatpush.bf16.msra.mxu0 %v1118
      %1236 = vmatpush.bf16.msra.mxu0 %v1117
      %1237 = vmatpush.bf16.msra.mxu0 %v1116
      %1238 = vmatpush.bf16.msra.mxu0 %v1115
      %1239 = vmatpush.bf16.msra.mxu0 %v1114
      %1240 = vmatmul.bf16.gmra.mxu0 %v1208
      %v1241 = vpop.f32.mrf.mxu0
      %v1242 = vadd.f32 %v1147, %v1241
      %v1243 = vpop.f32.mrf.mxu0
      %v1244 = vadd.f32 %v1152, %v1243
      %1245 = vmatmul.bf16.gmra.mxu0 %v1210
      %v1246 = vpop.f32.mrf.mxu0
      %v1247 = vadd.f32 %v1157, %v1246
      %v1248 = vpop.f32.mrf.mxu0
      %v1249 = vadd.f32 %v1162, %v1248
      %1250 = vmatmul.bf16.gmra.mxu0 %v1212
      %v1251 = vpop.f32.mrf.mxu0
      %v1252 = vadd.f32 %v1167, %v1251
      %v1253 = vpop.f32.mrf.mxu0
      %v1254 = vadd.f32 %v1172, %v1253
      %1255 = vmatmul.bf16.gmra.mxu0 %v1214
      %v1256 = vpop.f32.mrf.mxu0
      %v1257 = vadd.f32 %v1177, %v1256
      %v1258 = vpop.f32.mrf.mxu0
      %v1259 = vadd.f32 %v1182, %v1258
      %1260 = vdwg.mxu0
      %1261 = vmatpush.bf16.msra.mxu0 0
      %1262 = vmatpush.bf16.msra.mxu0 0
      %1263 = vmatpush.bf16.msra.mxu0 0
      %1264 = vmatpush.bf16.msra.mxu0 0
      %1265 = vmatpush.bf16.msra.mxu0 %v1125
      %1266 = vmatpush.bf16.msra.mxu0 %v1124
      %1267 = vmatpush.bf16.msra.mxu0 %v1123
      %1268 = vmatpush.bf16.msra.mxu0 %v1122
      %1269 = vmatmul.bf16.gmra.mxu0 %v1221
      %v1270 = vpop.f32.mrf.mxu0
      %v1271 = vadd.f32 %v1242, %v1270
      %v1272 = vpop.f32.mrf.mxu0
      %v1273 = vadd.f32 %v1244, %v1272
      %1274 = vmatmul.bf16.gmra.mxu0 %v1224
      %v1275 = vpop.f32.mrf.mxu0
      %v1276 = vadd.f32 %v1247, %v1275
      %v1277 = vpop.f32.mrf.mxu0
      %v1278 = vadd.f32 %v1249, %v1277
      %1279 = vmatmul.bf16.gmra.mxu0 %v1227
      %v1280 = vpop.f32.mrf.mxu0
      %v1281 = vadd.f32 %v1252, %v1280
      %v1282 = vpop.f32.mrf.mxu0
      %v1283 = vadd.f32 %v1254, %v1282
      %1284 = vmatmul.bf16.gmra.mxu0 %v1230
      %v1285 = vpop.f32.mrf.mxu0
      %v1286 = vadd.f32 %v1257, %v1285
      %v1287 = vpop.f32.mrf.mxu0
      %v1288 = vadd.f32 %v1259, %v1287
      %1289 = vdwg.mxu0
      %v1290 = vmax.f32 %v1271, 0.0
      %v1291 = vmax.f32 %v1273, 0.0
      %v1292 = vmax.f32 %v1276, 0.0
      %v1293 = vmax.f32 %v1278, 0.0
      %v1294 = vmax.f32 %v1281, 0.0
      %v1295 = vmax.f32 %v1283, 0.0
      %v1296 = vmax.f32 %v1286, 0.0
      %v1297 = vmax.f32 %v1288, 0.0
      %s1298 = scalar_lea.vmem %s499, 32
      %v1299 = vld [vmem:[%s1298] sm:$0xf]
      %v1300 = vld [vmem:[%s1298 + $0x4] sm:$0xf]
      %v1301 = vld [vmem:[%s1298 + $0x8] sm:$0xf]
      %v1302 = vld [vmem:[%s1298 + $0xc] sm:$0xf]
      %v1303 = vld [vmem:[%s1298 + $0x10] sm:$0xf]
      %v1304 = vld [vmem:[%s1298 + $0x14] sm:$0xf]
      %v1305 = vld [vmem:[%s1298 + $0x18] sm:$0xf]
      %v1306 = vld [vmem:[%s1298 + $0x1c] sm:$0xf]
      %v1307 = vpack.c.bf16 %v1291, %v1290
      %v1308 = vpack.c.bf16 %v1293, %v1292
      %v1309 = vpack.c.bf16 %v1295, %v1294
      %v1310 = vpack.c.bf16 %v1297, %v1296
      %s1311 = scalar_lea.vmem %s504, 64
      %v1312 = vld [vmem:[%s1311] sm:$0xff]
      %v1313 = vld [vmem:[%s1311 + $0x8] sm:$0xff]
      %v1314 = vld [vmem:[%s1311 + $0x10] sm:$0xff]
      %v1315 = vld [vmem:[%s1311 + $0x18] sm:$0xff]
      %v1316 = vld [vmem:[%s1311 + $0x20] sm:$0xff]
      %v1317 = vld [vmem:[%s1311 + $0x28] sm:$0xff]
      %v1318 = vld [vmem:[%s1311 + $0x30] sm:$0xff]
      %v1319 = vld [vmem:[%s1311 + $0x38] sm:$0xff]
      %1321 = vset.pattern.permute.xlu0 0
      %1322 = vperm.xlu0 %1321, %v1312
      %v1323 = vpop.permute.xlu0 %1322
      %1326 = vset.pattern.permute.xlu0 0
      %1327 = vperm.xlu0 %1326, %v1313
      %v1328 = vpop.permute.xlu0 %1327
      %1331 = vset.pattern.permute.xlu0 0
      %1332 = vperm.xlu0 %1331, %v1314
      %v1333 = vpop.permute.xlu0 %1332
      %1336 = vset.pattern.permute.xlu0 0
      %1337 = vperm.xlu0 %1336, %v1315
      %v1338 = vpop.permute.xlu0 %1337
      %1341 = vset.pattern.permute.xlu0 0
      %1342 = vperm.xlu0 %1341, %v1316
      %v1343 = vpop.permute.xlu0 %1342
      %1346 = vset.pattern.permute.xlu0 0
      %1347 = vperm.xlu0 %1346, %v1317
      %v1348 = vpop.permute.xlu0 %1347
      %1351 = vset.pattern.permute.xlu0 0
      %1352 = vperm.xlu0 %1351, %v1318
      %v1353 = vpop.permute.xlu0 %1352
      %1356 = vset.pattern.permute.xlu0 0
      %1357 = vperm.xlu0 %1356, %v1319
      %v1358 = vpop.permute.xlu0 %1357
      %v1368 = vunpack.c.l.b16 %v1299
      %v1369 = vunpack.c.l.b16 %v1300
      %v1370 = vunpack.c.l.b16 %v1301
      %v1371 = vunpack.c.l.b16 %v1302
      %v1372 = vunpack.c.l.b16 %v1303
      %v1373 = vunpack.c.l.b16 %v1304
      %v1374 = vunpack.c.l.b16 %v1305
      %v1375 = vunpack.c.l.b16 %v1306
      %v1376 = vpack.c.b16 %v1369, %v1368
      %v1377 = vpack.c.b16 %v1371, %v1370
      %v1378 = vpack.c.b16 %v1373, %v1372
      %v1379 = vpack.c.b16 %v1375, %v1374
      %v1381 = vsel %vm844, %v1376, 0
      %v1384 = vsel %vm844, %v1377, 0
      %v1387 = vsel %vm844, %v1378, 0
      %v1390 = vsel %vm844, %v1379, 0
      %1392 = vmatpush.bf16.msra.mxu0 0
      %1393 = vmatpush.bf16.msra.mxu0 0
      %1394 = vmatpush.bf16.msra.mxu0 0
      %1395 = vmatpush.bf16.msra.mxu0 0
      %1396 = vmatpush.bf16.msra.mxu0 %v1310
      %1397 = vmatpush.bf16.msra.mxu0 %v1309
      %1398 = vmatpush.bf16.msra.mxu0 %v1308
      %1399 = vmatpush.bf16.msra.mxu0 %v1307
      %1400 = vmatmul.bf16.gmra.mxu0 %v1381
      %v1401 = vpop.f32.mrf.mxu0
      %v1402 = vadd.f32 %v1323, %v1401
      %v1403 = vpop.f32.mrf.mxu0
      %v1404 = vadd.f32 %v1328, %v1403
      %1405 = vmatmul.bf16.gmra.mxu0 %v1384
      %v1406 = vpop.f32.mrf.mxu0
      %v1407 = vadd.f32 %v1333, %v1406
      %v1408 = vpop.f32.mrf.mxu0
      %v1409 = vadd.f32 %v1338, %v1408
      %1410 = vmatmul.bf16.gmra.mxu0 %v1387
      %v1411 = vpop.f32.mrf.mxu0
      %v1412 = vadd.f32 %v1343, %v1411
      %v1413 = vpop.f32.mrf.mxu0
      %v1414 = vadd.f32 %v1348, %v1413
      %1415 = vmatmul.bf16.gmra.mxu0 %v1390
      %v1416 = vpop.f32.mrf.mxu0
      %v1417 = vadd.f32 %v1353, %v1416
      %v1418 = vpop.f32.mrf.mxu0
      %v1419 = vadd.f32 %v1358, %v1418
      %1420 = vdwg.mxu0
      %v1421 = vadd.f32 %v1052, %v1402
      %v1422 = vadd.f32 %v1053, %v1404
      %v1423 = vadd.f32 %v1054, %v1407
      %v1424 = vadd.f32 %v1055, %v1409
      %v1425 = vadd.f32 %v1056, %v1412
      %v1426 = vadd.f32 %v1057, %v1414
      %v1427 = vadd.f32 %v1058, %v1417
      %v1428 = vadd.f32 %v1059, %v1419
      %v1429 = vsel %vm677, %v1421, 0.0
      %v1430 = vsel %vm677, %v1422, 0.0
      %v1431 = vsel %vm677, %v1423, 0.0
      %v1432 = vsel %vm677, %v1424, 0.0
      %v1433 = vsel %vm677, %v1425, 0.0
      %v1434 = vsel %vm677, %v1426, 0.0
      %v1435 = vsel %vm677, %v1427, 0.0
      %v1436 = vsel %vm677, %v1428, 0.0
      %vm1437 = vcmp.ge.s32.totalorder %v555, 4
      %1438 = vrot.lane.b32.xlu0 %v1429, 4
      %v1439 = vpop.permute.xlu0 %1438
      %1440 = vrot.lane.b32.xlu0 %v1430, 4
      %v1441 = vpop.permute.xlu0 %1440
      %1442 = vrot.lane.b32.xlu0 %v1431, 4
      %v1443 = vpop.permute.xlu0 %1442
      %1444 = vrot.lane.b32.xlu0 %v1432, 4
      %v1445 = vpop.permute.xlu0 %1444
      %1446 = vrot.lane.b32.xlu0 %v1433, 4
      %v1447 = vpop.permute.xlu0 %1446
      %1448 = vrot.lane.b32.xlu0 %v1434, 4
      %v1449 = vpop.permute.xlu0 %1448
      %1450 = vrot.lane.b32.xlu0 %v1435, 4
      %v1451 = vpop.permute.xlu0 %1450
      %1452 = vrot.lane.b32.xlu0 %v1436, 4
      %v1453 = vpop.permute.xlu0 %1452
      %v1454 = vsel %vm1437, 1, 0
      %vm1455 = vcmp.eq.s32.totalorder %v1454, 1
      %v1456 = vsel %vm1455, %v1439, 0.0
      %v1457 = vsel %vm1455, %v1441, 0.0
      %v1458 = vsel %vm1455, %v1443, 0.0
      %v1459 = vsel %vm1455, %v1445, 0.0
      %v1460 = vsel %vm1455, %v1447, 0.0
      %v1461 = vsel %vm1455, %v1449, 0.0
      %v1462 = vsel %vm1455, %v1451, 0.0
      %v1463 = vsel %vm1455, %v1453, 0.0
      %vm1464 = vcmp.lt.s32.totalorder %v555, 124
      %1465 = vrot.lane.b32.xlu0 %v1429, 124
      %v1466 = vpop.permute.xlu0 %1465
      %1467 = vrot.lane.b32.xlu0 %v1430, 124
      %v1468 = vpop.permute.xlu0 %1467
      %1469 = vrot.lane.b32.xlu0 %v1431, 124
      %v1470 = vpop.permute.xlu0 %1469
      %1471 = vrot.lane.b32.xlu0 %v1432, 124
      %v1472 = vpop.permute.xlu0 %1471
      %1473 = vrot.lane.b32.xlu0 %v1433, 124
      %v1474 = vpop.permute.xlu0 %1473
      %1475 = vrot.lane.b32.xlu0 %v1434, 124
      %v1476 = vpop.permute.xlu0 %1475
      %1477 = vrot.lane.b32.xlu0 %v1435, 124
      %v1478 = vpop.permute.xlu0 %1477
      %1479 = vrot.lane.b32.xlu0 %v1436, 124
      %v1480 = vpop.permute.xlu0 %1479
      %v1481 = vsel %vm1464, 1, 0
      %vm1482 = vcmp.eq.s32.totalorder %v1481, 1
      %v1483 = vsel %vm1482, %v1466, 0.0
      %v1484 = vsel %vm1482, %v1468, 0.0
      %v1485 = vsel %vm1482, %v1470, 0.0
      %v1486 = vsel %vm1482, %v1472, 0.0
      %v1487 = vsel %vm1482, %v1474, 0.0
      %v1488 = vsel %vm1482, %v1476, 0.0
      %v1489 = vsel %vm1482, %v1478, 0.0
      %v1490 = vsel %vm1482, %v1480, 0.0
      %v1491 = vpack.c.bf16 %v1457, %v1456
      %v1492 = vpack.c.bf16 %v1459, %v1458
      %v1493 = vpack.c.bf16 %v1461, %v1460
      %v1494 = vpack.c.bf16 %v1463, %v1462
      %v1495 = vpack.c.bf16 %v1430, %v1429
      %v1496 = vpack.c.bf16 %v1432, %v1431
      %v1497 = vpack.c.bf16 %v1434, %v1433
      %v1498 = vpack.c.bf16 %v1436, %v1435
      %v1499 = vpack.c.bf16 %v1484, %v1483
      %v1500 = vpack.c.bf16 %v1486, %v1485
      %v1501 = vpack.c.bf16 %v1488, %v1487
      %v1502 = vpack.c.bf16 %v1490, %v1489
      %s1503 = scalar_lea.vmem %s484, 128
      %v1504 = vld [vmem:[%s1503] sm:$0xff]
      %v1505 = vld [vmem:[%s1503 + $0x8] sm:$0xff]
      %v1506 = vld [vmem:[%s1503 + $0x10] sm:$0xff]
      %v1507 = vld [vmem:[%s1503 + $0x18] sm:$0xff]
      %v1508 = vld [vmem:[%s1503 + $0x20] sm:$0xff]
      %v1509 = vld [vmem:[%s1503 + $0x28] sm:$0xff]
      %v1510 = vld [vmem:[%s1503 + $0x30] sm:$0xff]
      %v1511 = vld [vmem:[%s1503 + $0x38] sm:$0xff]
      %s1512 = scalar_lea.vmem %s494, 128
      %v1513 = vld [vmem:[%s1512] sm:$0xff]
      %v1514 = vld [vmem:[%s1512 + $0x8] sm:$0xff]
      %v1515 = vld [vmem:[%s1512 + $0x10] sm:$0xff]
      %v1516 = vld [vmem:[%s1512 + $0x18] sm:$0xff]
      %v1517 = vld [vmem:[%s1512 + $0x20] sm:$0xff]
      %v1518 = vld [vmem:[%s1512 + $0x28] sm:$0xff]
      %v1519 = vld [vmem:[%s1512 + $0x30] sm:$0xff]
      %v1520 = vld [vmem:[%s1512 + $0x38] sm:$0xff]
      %1522 = vset.pattern.permute.xlu0 0
      %1523 = vperm.xlu0 %1522, %v1513
      %v1524 = vpop.permute.xlu0 %1523
      %1527 = vset.pattern.permute.xlu0 0
      %1528 = vperm.xlu0 %1527, %v1514
      %v1529 = vpop.permute.xlu0 %1528
      %1532 = vset.pattern.permute.xlu0 0
      %1533 = vperm.xlu0 %1532, %v1515
      %v1534 = vpop.permute.xlu0 %1533
      %1537 = vset.pattern.permute.xlu0 0
      %1538 = vperm.xlu0 %1537, %v1516
      %v1539 = vpop.permute.xlu0 %1538
      %1542 = vset.pattern.permute.xlu0 0
      %1543 = vperm.xlu0 %1542, %v1517
      %v1544 = vpop.permute.xlu0 %1543
      %1547 = vset.pattern.permute.xlu0 0
      %1548 = vperm.xlu0 %1547, %v1518
      %v1549 = vpop.permute.xlu0 %1548
      %1552 = vset.pattern.permute.xlu0 0
      %1553 = vperm.xlu0 %1552, %v1519
      %v1554 = vpop.permute.xlu0 %1553
      %1557 = vset.pattern.permute.xlu0 0
      %1558 = vperm.xlu0 %1557, %v1520
      %v1559 = vpop.permute.xlu0 %1558
      %v1569 = vunpack.c.l.b16 %v1504
      %v1570 = vunpack.c.h.b16 %v1504
      %v1571 = vunpack.c.l.b16 %v1505
      %v1572 = vunpack.c.h.b16 %v1505
      %v1573 = vunpack.c.l.b16 %v1506
      %v1574 = vunpack.c.h.b16 %v1506
      %v1575 = vunpack.c.l.b16 %v1507
      %v1576 = vunpack.c.h.b16 %v1507
      %v1577 = vunpack.c.l.b16 %v1508
      %v1578 = vunpack.c.h.b16 %v1508
      %v1579 = vunpack.c.l.b16 %v1509
      %v1580 = vunpack.c.h.b16 %v1509
      %v1581 = vunpack.c.l.b16 %v1510
      %v1582 = vunpack.c.h.b16 %v1510
      %v1583 = vunpack.c.l.b16 %v1511
      %v1584 = vunpack.c.h.b16 %v1511
      %v1585 = vpack.c.b16 %v1571, %v1569
      %v1586 = vpack.c.b16 %v1572, %v1570
      %v1587 = vpack.c.b16 %v1575, %v1573
      %v1588 = vpack.c.b16 %v1576, %v1574
      %v1589 = vpack.c.b16 %v1579, %v1577
      %v1590 = vpack.c.b16 %v1580, %v1578
      %v1591 = vpack.c.b16 %v1583, %v1581
      %v1592 = vpack.c.b16 %v1584, %v1582
      %v1598 = vsel %vm844, %v1586, 0
      %v1601 = vsel %vm844, %v1588, 0
      %v1604 = vsel %vm844, %v1590, 0
      %v1607 = vsel %vm844, %v1592, 0
      %1609 = vmatpush.bf16.msra.mxu0 %v1498
      %1610 = vmatpush.bf16.msra.mxu0 %v1497
      %1611 = vmatpush.bf16.msra.mxu0 %v1496
      %1612 = vmatpush.bf16.msra.mxu0 %v1495
      %1613 = vmatpush.bf16.msra.mxu0 %v1494
      %1614 = vmatpush.bf16.msra.mxu0 %v1493
      %1615 = vmatpush.bf16.msra.mxu0 %v1492
      %1616 = vmatpush.bf16.msra.mxu0 %v1491
      %1617 = vmatmul.bf16.gmra.mxu0 %v1585
      %v1618 = vpop.f32.mrf.mxu0
      %v1619 = vadd.f32 %v1524, %v1618
      %v1620 = vpop.f32.mrf.mxu0
      %v1621 = vadd.f32 %v1529, %v1620
      %1622 = vmatmul.bf16.gmra.mxu0 %v1587
      %v1623 = vpop.f32.mrf.mxu0
      %v1624 = vadd.f32 %v1534, %v1623
      %v1625 = vpop.f32.mrf.mxu0
      %v1626 = vadd.f32 %v1539, %v1625
      %1627 = vmatmul.bf16.gmra.mxu0 %v1589
      %v1628 = vpop.f32.mrf.mxu0
      %v1629 = vadd.f32 %v1544, %v1628
      %v1630 = vpop.f32.mrf.mxu0
      %v1631 = vadd.f32 %v1549, %v1630
      %1632 = vmatmul.bf16.gmra.mxu0 %v1591
      %v1633 = vpop.f32.mrf.mxu0
      %v1634 = vadd.f32 %v1554, %v1633
      %v1635 = vpop.f32.mrf.mxu0
      %v1636 = vadd.f32 %v1559, %v1635
      %1637 = vdwg.mxu0
      %1638 = vmatpush.bf16.msra.mxu0 0
      %1639 = vmatpush.bf16.msra.mxu0 0
      %1640 = vmatpush.bf16.msra.mxu0 0
      %1641 = vmatpush.bf16.msra.mxu0 0
      %1642 = vmatpush.bf16.msra.mxu0 %v1502
      %1643 = vmatpush.bf16.msra.mxu0 %v1501
      %1644 = vmatpush.bf16.msra.mxu0 %v1500
      %1645 = vmatpush.bf16.msra.mxu0 %v1499
      %1646 = vmatmul.bf16.gmra.mxu0 %v1598
      %v1647 = vpop.f32.mrf.mxu0
      %v1648 = vadd.f32 %v1619, %v1647
      %v1649 = vpop.f32.mrf.mxu0
      %v1650 = vadd.f32 %v1621, %v1649
      %1651 = vmatmul.bf16.gmra.mxu0 %v1601
      %v1652 = vpop.f32.mrf.mxu0
      %v1653 = vadd.f32 %v1624, %v1652
      %v1654 = vpop.f32.mrf.mxu0
      %v1655 = vadd.f32 %v1626, %v1654
      %1656 = vmatmul.bf16.gmra.mxu0 %v1604
      %v1657 = vpop.f32.mrf.mxu0
      %v1658 = vadd.f32 %v1629, %v1657
      %v1659 = vpop.f32.mrf.mxu0
      %v1660 = vadd.f32 %v1631, %v1659
      %1661 = vmatmul.bf16.gmra.mxu0 %v1607
      %v1662 = vpop.f32.mrf.mxu0
      %v1663 = vadd.f32 %v1634, %v1662
      %v1664 = vpop.f32.mrf.mxu0
      %v1665 = vadd.f32 %v1636, %v1664
      %1666 = vdwg.mxu0
      %v1667 = vmax.f32 %v1648, 0.0
      %v1668 = vmax.f32 %v1650, 0.0
      %v1669 = vmax.f32 %v1653, 0.0
      %v1670 = vmax.f32 %v1655, 0.0
      %v1671 = vmax.f32 %v1658, 0.0
      %v1672 = vmax.f32 %v1660, 0.0
      %v1673 = vmax.f32 %v1663, 0.0
      %v1674 = vmax.f32 %v1665, 0.0
      %s1675 = scalar_lea.vmem %s499, 64
      %v1676 = vld [vmem:[%s1675] sm:$0xf]
      %v1677 = vld [vmem:[%s1675 + $0x4] sm:$0xf]
      %v1678 = vld [vmem:[%s1675 + $0x8] sm:$0xf]
      %v1679 = vld [vmem:[%s1675 + $0xc] sm:$0xf]
      %v1680 = vld [vmem:[%s1675 + $0x10] sm:$0xf]
      %v1681 = vld [vmem:[%s1675 + $0x14] sm:$0xf]
      %v1682 = vld [vmem:[%s1675 + $0x18] sm:$0xf]
      %v1683 = vld [vmem:[%s1675 + $0x1c] sm:$0xf]
      %v1684 = vpack.c.bf16 %v1668, %v1667
      %v1685 = vpack.c.bf16 %v1670, %v1669
      %v1686 = vpack.c.bf16 %v1672, %v1671
      %v1687 = vpack.c.bf16 %v1674, %v1673
      %s1688 = scalar_lea.vmem %s504, 128
      %v1689 = vld [vmem:[%s1688] sm:$0xff]
      %v1690 = vld [vmem:[%s1688 + $0x8] sm:$0xff]
      %v1691 = vld [vmem:[%s1688 + $0x10] sm:$0xff]
      %v1692 = vld [vmem:[%s1688 + $0x18] sm:$0xff]
      %v1693 = vld [vmem:[%s1688 + $0x20] sm:$0xff]
      %v1694 = vld [vmem:[%s1688 + $0x28] sm:$0xff]
      %v1695 = vld [vmem:[%s1688 + $0x30] sm:$0xff]
      %v1696 = vld [vmem:[%s1688 + $0x38] sm:$0xff]
      %1698 = vset.pattern.permute.xlu0 0
      %1699 = vperm.xlu0 %1698, %v1689
      %v1700 = vpop.permute.xlu0 %1699
      %1703 = vset.pattern.permute.xlu0 0
      %1704 = vperm.xlu0 %1703, %v1690
      %v1705 = vpop.permute.xlu0 %1704
      %1708 = vset.pattern.permute.xlu0 0
      %1709 = vperm.xlu0 %1708, %v1691
      %v1710 = vpop.permute.xlu0 %1709
      %1713 = vset.pattern.permute.xlu0 0
      %1714 = vperm.xlu0 %1713, %v1692
      %v1715 = vpop.permute.xlu0 %1714
      %1718 = vset.pattern.permute.xlu0 0
      %1719 = vperm.xlu0 %1718, %v1693
      %v1720 = vpop.permute.xlu0 %1719
      %1723 = vset.pattern.permute.xlu0 0
      %1724 = vperm.xlu0 %1723, %v1694
      %v1725 = vpop.permute.xlu0 %1724
      %1728 = vset.pattern.permute.xlu0 0
      %1729 = vperm.xlu0 %1728, %v1695
      %v1730 = vpop.permute.xlu0 %1729
      %1733 = vset.pattern.permute.xlu0 0
      %1734 = vperm.xlu0 %1733, %v1696
      %v1735 = vpop.permute.xlu0 %1734
      %v1745 = vunpack.c.l.b16 %v1676
      %v1746 = vunpack.c.l.b16 %v1677
      %v1747 = vunpack.c.l.b16 %v1678
      %v1748 = vunpack.c.l.b16 %v1679
      %v1749 = vunpack.c.l.b16 %v1680
      %v1750 = vunpack.c.l.b16 %v1681
      %v1751 = vunpack.c.l.b16 %v1682
      %v1752 = vunpack.c.l.b16 %v1683
      %v1753 = vpack.c.b16 %v1746, %v1745
      %v1754 = vpack.c.b16 %v1748, %v1747
      %v1755 = vpack.c.b16 %v1750, %v1749
      %v1756 = vpack.c.b16 %v1752, %v1751
      %v1758 = vsel %vm844, %v1753, 0
      %v1761 = vsel %vm844, %v1754, 0
      %v1764 = vsel %vm844, %v1755, 0
      %v1767 = vsel %vm844, %v1756, 0
      %1769 = vmatpush.bf16.msra.mxu0 0
      %1770 = vmatpush.bf16.msra.mxu0 0
      %1771 = vmatpush.bf16.msra.mxu0 0
      %1772 = vmatpush.bf16.msra.mxu0 0
      %1773 = vmatpush.bf16.msra.mxu0 %v1687
      %1774 = vmatpush.bf16.msra.mxu0 %v1686
      %1775 = vmatpush.bf16.msra.mxu0 %v1685
      %1776 = vmatpush.bf16.msra.mxu0 %v1684
      %1777 = vmatmul.bf16.gmra.mxu0 %v1758
      %v1778 = vpop.f32.mrf.mxu0
      %v1779 = vadd.f32 %v1700, %v1778
      %v1780 = vpop.f32.mrf.mxu0
      %v1781 = vadd.f32 %v1705, %v1780
      %1782 = vmatmul.bf16.gmra.mxu0 %v1761
      %v1783 = vpop.f32.mrf.mxu0
      %v1784 = vadd.f32 %v1710, %v1783
      %v1785 = vpop.f32.mrf.mxu0
      %v1786 = vadd.f32 %v1715, %v1785
      %1787 = vmatmul.bf16.gmra.mxu0 %v1764
      %v1788 = vpop.f32.mrf.mxu0
      %v1789 = vadd.f32 %v1720, %v1788
      %v1790 = vpop.f32.mrf.mxu0
      %v1791 = vadd.f32 %v1725, %v1790
      %1792 = vmatmul.bf16.gmra.mxu0 %v1767
      %v1793 = vpop.f32.mrf.mxu0
      %v1794 = vadd.f32 %v1730, %v1793
      %v1795 = vpop.f32.mrf.mxu0
      %v1796 = vadd.f32 %v1735, %v1795
      %1797 = vdwg.mxu0
      %v1798 = vadd.f32 %v1429, %v1779
      %v1799 = vadd.f32 %v1430, %v1781
      %v1800 = vadd.f32 %v1431, %v1784
      %v1801 = vadd.f32 %v1432, %v1786
      %v1802 = vadd.f32 %v1433, %v1789
      %v1803 = vadd.f32 %v1434, %v1791
      %v1804 = vadd.f32 %v1435, %v1794
      %v1805 = vadd.f32 %v1436, %v1796
      %v1806 = vsel %vm677, %v1798, 0.0
      %v1807 = vsel %vm677, %v1799, 0.0
      %v1808 = vsel %vm677, %v1800, 0.0
      %v1809 = vsel %vm677, %v1801, 0.0
      %v1810 = vsel %vm677, %v1802, 0.0
      %v1811 = vsel %vm677, %v1803, 0.0
      %v1812 = vsel %vm677, %v1804, 0.0
      %v1813 = vsel %vm677, %v1805, 0.0
      %vm1814 = vcmp.ge.s32.totalorder %v555, 8
      %1815 = vrot.lane.b32.xlu0 %v1806, 8
      %v1816 = vpop.permute.xlu0 %1815
      %1817 = vrot.lane.b32.xlu0 %v1807, 8
      %v1818 = vpop.permute.xlu0 %1817
      %1819 = vrot.lane.b32.xlu0 %v1808, 8
      %v1820 = vpop.permute.xlu0 %1819
      %1821 = vrot.lane.b32.xlu0 %v1809, 8
      %v1822 = vpop.permute.xlu0 %1821
      %1823 = vrot.lane.b32.xlu0 %v1810, 8
      %v1824 = vpop.permute.xlu0 %1823
      %1825 = vrot.lane.b32.xlu0 %v1811, 8
      %v1826 = vpop.permute.xlu0 %1825
      %1827 = vrot.lane.b32.xlu0 %v1812, 8
      %v1828 = vpop.permute.xlu0 %1827
      %1829 = vrot.lane.b32.xlu0 %v1813, 8
      %v1830 = vpop.permute.xlu0 %1829
      %v1831 = vsel %vm1814, 1, 0
      %vm1832 = vcmp.eq.s32.totalorder %v1831, 1
      %v1833 = vsel %vm1832, %v1816, 0.0
      %v1834 = vsel %vm1832, %v1818, 0.0
      %v1835 = vsel %vm1832, %v1820, 0.0
      %v1836 = vsel %vm1832, %v1822, 0.0
      %v1837 = vsel %vm1832, %v1824, 0.0
      %v1838 = vsel %vm1832, %v1826, 0.0
      %v1839 = vsel %vm1832, %v1828, 0.0
      %v1840 = vsel %vm1832, %v1830, 0.0
      %vm1841 = vcmp.lt.s32.totalorder %v555, 120
      %1842 = vrot.lane.b32.xlu0 %v1806, 120
      %v1843 = vpop.permute.xlu0 %1842
      %1844 = vrot.lane.b32.xlu0 %v1807, 120
      %v1845 = vpop.permute.xlu0 %1844
      %1846 = vrot.lane.b32.xlu0 %v1808, 120
      %v1847 = vpop.permute.xlu0 %1846
      %1848 = vrot.lane.b32.xlu0 %v1809, 120
      %v1849 = vpop.permute.xlu0 %1848
      %1850 = vrot.lane.b32.xlu0 %v1810, 120
      %v1851 = vpop.permute.xlu0 %1850
      %1852 = vrot.lane.b32.xlu0 %v1811, 120
      %v1853 = vpop.permute.xlu0 %1852
      %1854 = vrot.lane.b32.xlu0 %v1812, 120
      %v1855 = vpop.permute.xlu0 %1854
      %1856 = vrot.lane.b32.xlu0 %v1813, 120
      %v1857 = vpop.permute.xlu0 %1856
      %v1858 = vsel %vm1841, 1, 0
      %vm1859 = vcmp.eq.s32.totalorder %v1858, 1
      %v1860 = vsel %vm1859, %v1843, 0.0
      %v1861 = vsel %vm1859, %v1845, 0.0
      %v1862 = vsel %vm1859, %v1847, 0.0
      %v1863 = vsel %vm1859, %v1849, 0.0
      %v1864 = vsel %vm1859, %v1851, 0.0
      %v1865 = vsel %vm1859, %v1853, 0.0
      %v1866 = vsel %vm1859, %v1855, 0.0
      %v1867 = vsel %vm1859, %v1857, 0.0
      %v1868 = vpack.c.bf16 %v1834, %v1833
      %v1869 = vpack.c.bf16 %v1836, %v1835
      %v1870 = vpack.c.bf16 %v1838, %v1837
      %v1871 = vpack.c.bf16 %v1840, %v1839
      %v1872 = vpack.c.bf16 %v1807, %v1806
      %v1873 = vpack.c.bf16 %v1809, %v1808
      %v1874 = vpack.c.bf16 %v1811, %v1810
      %v1875 = vpack.c.bf16 %v1813, %v1812
      %v1876 = vpack.c.bf16 %v1861, %v1860
      %v1877 = vpack.c.bf16 %v1863, %v1862
      %v1878 = vpack.c.bf16 %v1865, %v1864
      %v1879 = vpack.c.bf16 %v1867, %v1866
      %s1880 = scalar_lea.vmem %s484, 192
      %v1881 = vld [vmem:[%s1880] sm:$0xff]
      %v1882 = vld [vmem:[%s1880 + $0x8] sm:$0xff]
      %v1883 = vld [vmem:[%s1880 + $0x10] sm:$0xff]
      %v1884 = vld [vmem:[%s1880 + $0x18] sm:$0xff]
      %v1885 = vld [vmem:[%s1880 + $0x20] sm:$0xff]
      %v1886 = vld [vmem:[%s1880 + $0x28] sm:$0xff]
      %v1887 = vld [vmem:[%s1880 + $0x30] sm:$0xff]
      %v1888 = vld [vmem:[%s1880 + $0x38] sm:$0xff]
      %s1889 = scalar_lea.vmem %s494, 192
      %v1890 = vld [vmem:[%s1889] sm:$0xff]
      %v1891 = vld [vmem:[%s1889 + $0x8] sm:$0xff]
      %v1892 = vld [vmem:[%s1889 + $0x10] sm:$0xff]
      %v1893 = vld [vmem:[%s1889 + $0x18] sm:$0xff]
      %v1894 = vld [vmem:[%s1889 + $0x20] sm:$0xff]
      %v1895 = vld [vmem:[%s1889 + $0x28] sm:$0xff]
      %v1896 = vld [vmem:[%s1889 + $0x30] sm:$0xff]
      %v1897 = vld [vmem:[%s1889 + $0x38] sm:$0xff]
      %1899 = vset.pattern.permute.xlu0 0
      %1900 = vperm.xlu0 %1899, %v1890
      %v1901 = vpop.permute.xlu0 %1900
      %1904 = vset.pattern.permute.xlu0 0
      %1905 = vperm.xlu0 %1904, %v1891
      %v1906 = vpop.permute.xlu0 %1905
      %1909 = vset.pattern.permute.xlu0 0
      %1910 = vperm.xlu0 %1909, %v1892
      %v1911 = vpop.permute.xlu0 %1910
      %1914 = vset.pattern.permute.xlu0 0
      %1915 = vperm.xlu0 %1914, %v1893
      %v1916 = vpop.permute.xlu0 %1915
      %1919 = vset.pattern.permute.xlu0 0
      %1920 = vperm.xlu0 %1919, %v1894
      %v1921 = vpop.permute.xlu0 %1920
      %1924 = vset.pattern.permute.xlu0 0
      %1925 = vperm.xlu0 %1924, %v1895
      %v1926 = vpop.permute.xlu0 %1925
      %1929 = vset.pattern.permute.xlu0 0
      %1930 = vperm.xlu0 %1929, %v1896
      %v1931 = vpop.permute.xlu0 %1930
      %1934 = vset.pattern.permute.xlu0 0
      %1935 = vperm.xlu0 %1934, %v1897
      %v1936 = vpop.permute.xlu0 %1935
      %v1946 = vunpack.c.l.b16 %v1881
      %v1947 = vunpack.c.h.b16 %v1881
      %v1948 = vunpack.c.l.b16 %v1882
      %v1949 = vunpack.c.h.b16 %v1882
      %v1950 = vunpack.c.l.b16 %v1883
      %v1951 = vunpack.c.h.b16 %v1883
      %v1952 = vunpack.c.l.b16 %v1884
      %v1953 = vunpack.c.h.b16 %v1884
      %v1954 = vunpack.c.l.b16 %v1885
      %v1955 = vunpack.c.h.b16 %v1885
      %v1956 = vunpack.c.l.b16 %v1886
      %v1957 = vunpack.c.h.b16 %v1886
      %v1958 = vunpack.c.l.b16 %v1887
      %v1959 = vunpack.c.h.b16 %v1887
      %v1960 = vunpack.c.l.b16 %v1888
      %v1961 = vunpack.c.h.b16 %v1888
      %v1962 = vpack.c.b16 %v1948, %v1946
      %v1963 = vpack.c.b16 %v1949, %v1947
      %v1964 = vpack.c.b16 %v1952, %v1950
      %v1965 = vpack.c.b16 %v1953, %v1951
      %v1966 = vpack.c.b16 %v1956, %v1954
      %v1967 = vpack.c.b16 %v1957, %v1955
      %v1968 = vpack.c.b16 %v1960, %v1958
      %v1969 = vpack.c.b16 %v1961, %v1959
      %v1975 = vsel %vm844, %v1963, 0
      %v1978 = vsel %vm844, %v1965, 0
      %v1981 = vsel %vm844, %v1967, 0
      %v1984 = vsel %vm844, %v1969, 0
      %1986 = vmatpush.bf16.msra.mxu0 %v1875
      %1987 = vmatpush.bf16.msra.mxu0 %v1874
      %1988 = vmatpush.bf16.msra.mxu0 %v1873
      %1989 = vmatpush.bf16.msra.mxu0 %v1872
      %1990 = vmatpush.bf16.msra.mxu0 %v1871
      %1991 = vmatpush.bf16.msra.mxu0 %v1870
      %1992 = vmatpush.bf16.msra.mxu0 %v1869
      %1993 = vmatpush.bf16.msra.mxu0 %v1868
      %1994 = vmatmul.bf16.gmra.mxu0 %v1962
      %v1995 = vpop.f32.mrf.mxu0
      %v1996 = vadd.f32 %v1901, %v1995
      %v1997 = vpop.f32.mrf.mxu0
      %v1998 = vadd.f32 %v1906, %v1997
      %1999 = vmatmul.bf16.gmra.mxu0 %v1964
      %v2000 = vpop.f32.mrf.mxu0
      %v2001 = vadd.f32 %v1911, %v2000
      %v2002 = vpop.f32.mrf.mxu0
      %v2003 = vadd.f32 %v1916, %v2002
      %2004 = vmatmul.bf16.gmra.mxu0 %v1966
      %v2005 = vpop.f32.mrf.mxu0
      %v2006 = vadd.f32 %v1921, %v2005
      %v2007 = vpop.f32.mrf.mxu0
      %v2008 = vadd.f32 %v1926, %v2007
      %2009 = vmatmul.bf16.gmra.mxu0 %v1968
      %v2010 = vpop.f32.mrf.mxu0
      %v2011 = vadd.f32 %v1931, %v2010
      %v2012 = vpop.f32.mrf.mxu0
      %v2013 = vadd.f32 %v1936, %v2012
      %2014 = vdwg.mxu0
      %2015 = vmatpush.bf16.msra.mxu0 0
      %2016 = vmatpush.bf16.msra.mxu0 0
      %2017 = vmatpush.bf16.msra.mxu0 0
      %2018 = vmatpush.bf16.msra.mxu0 0
      %2019 = vmatpush.bf16.msra.mxu0 %v1879
      %2020 = vmatpush.bf16.msra.mxu0 %v1878
      %2021 = vmatpush.bf16.msra.mxu0 %v1877
      %2022 = vmatpush.bf16.msra.mxu0 %v1876
      %2023 = vmatmul.bf16.gmra.mxu0 %v1975
      %v2024 = vpop.f32.mrf.mxu0
      %v2025 = vadd.f32 %v1996, %v2024
      %v2026 = vpop.f32.mrf.mxu0
      %v2027 = vadd.f32 %v1998, %v2026
      %2028 = vmatmul.bf16.gmra.mxu0 %v1978
      %v2029 = vpop.f32.mrf.mxu0
      %v2030 = vadd.f32 %v2001, %v2029
      %v2031 = vpop.f32.mrf.mxu0
      %v2032 = vadd.f32 %v2003, %v2031
      %2033 = vmatmul.bf16.gmra.mxu0 %v1981
      %v2034 = vpop.f32.mrf.mxu0
      %v2035 = vadd.f32 %v2006, %v2034
      %v2036 = vpop.f32.mrf.mxu0
      %v2037 = vadd.f32 %v2008, %v2036
      %2038 = vmatmul.bf16.gmra.mxu0 %v1984
      %v2039 = vpop.f32.mrf.mxu0
      %v2040 = vadd.f32 %v2011, %v2039
      %v2041 = vpop.f32.mrf.mxu0
      %v2042 = vadd.f32 %v2013, %v2041
      %2043 = vdwg.mxu0
      %v2044 = vmax.f32 %v2025, 0.0
      %v2045 = vmax.f32 %v2027, 0.0
      %v2046 = vmax.f32 %v2030, 0.0
      %v2047 = vmax.f32 %v2032, 0.0
      %v2048 = vmax.f32 %v2035, 0.0
      %v2049 = vmax.f32 %v2037, 0.0
      %v2050 = vmax.f32 %v2040, 0.0
      %v2051 = vmax.f32 %v2042, 0.0
      %s2052 = scalar_lea.vmem %s499, 96
      %v2053 = vld [vmem:[%s2052] sm:$0xf]
      %v2054 = vld [vmem:[%s2052 + $0x4] sm:$0xf]
      %v2055 = vld [vmem:[%s2052 + $0x8] sm:$0xf]
      %v2056 = vld [vmem:[%s2052 + $0xc] sm:$0xf]
      %v2057 = vld [vmem:[%s2052 + $0x10] sm:$0xf]
      %v2058 = vld [vmem:[%s2052 + $0x14] sm:$0xf]
      %v2059 = vld [vmem:[%s2052 + $0x18] sm:$0xf]
      %v2060 = vld [vmem:[%s2052 + $0x1c] sm:$0xf]
      %v2061 = vpack.c.bf16 %v2045, %v2044
      %v2062 = vpack.c.bf16 %v2047, %v2046
      %v2063 = vpack.c.bf16 %v2049, %v2048
      %v2064 = vpack.c.bf16 %v2051, %v2050
      %s2065 = scalar_lea.vmem %s504, 192
      %v2066 = vld [vmem:[%s2065] sm:$0xff]
      %v2067 = vld [vmem:[%s2065 + $0x8] sm:$0xff]
      %v2068 = vld [vmem:[%s2065 + $0x10] sm:$0xff]
      %v2069 = vld [vmem:[%s2065 + $0x18] sm:$0xff]
      %v2070 = vld [vmem:[%s2065 + $0x20] sm:$0xff]
      %v2071 = vld [vmem:[%s2065 + $0x28] sm:$0xff]
      %v2072 = vld [vmem:[%s2065 + $0x30] sm:$0xff]
      %v2073 = vld [vmem:[%s2065 + $0x38] sm:$0xff]
      %2075 = vset.pattern.permute.xlu0 0
      %2076 = vperm.xlu0 %2075, %v2066
      %v2077 = vpop.permute.xlu0 %2076
      %2080 = vset.pattern.permute.xlu0 0
      %2081 = vperm.xlu0 %2080, %v2067
      %v2082 = vpop.permute.xlu0 %2081
      %2085 = vset.pattern.permute.xlu0 0
      %2086 = vperm.xlu0 %2085, %v2068
      %v2087 = vpop.permute.xlu0 %2086
      %2090 = vset.pattern.permute.xlu0 0
      %2091 = vperm.xlu0 %2090, %v2069
      %v2092 = vpop.permute.xlu0 %2091
      %2095 = vset.pattern.permute.xlu0 0
      %2096 = vperm.xlu0 %2095, %v2070
      %v2097 = vpop.permute.xlu0 %2096
      %2100 = vset.pattern.permute.xlu0 0
      %2101 = vperm.xlu0 %2100, %v2071
      %v2102 = vpop.permute.xlu0 %2101
      %2105 = vset.pattern.permute.xlu0 0
      %2106 = vperm.xlu0 %2105, %v2072
      %v2107 = vpop.permute.xlu0 %2106
      %2110 = vset.pattern.permute.xlu0 0
      %2111 = vperm.xlu0 %2110, %v2073
      %v2112 = vpop.permute.xlu0 %2111
      %v2122 = vunpack.c.l.b16 %v2053
      %v2123 = vunpack.c.l.b16 %v2054
      %v2124 = vunpack.c.l.b16 %v2055
      %v2125 = vunpack.c.l.b16 %v2056
      %v2126 = vunpack.c.l.b16 %v2057
      %v2127 = vunpack.c.l.b16 %v2058
      %v2128 = vunpack.c.l.b16 %v2059
      %v2129 = vunpack.c.l.b16 %v2060
      %v2130 = vpack.c.b16 %v2123, %v2122
      %v2131 = vpack.c.b16 %v2125, %v2124
      %v2132 = vpack.c.b16 %v2127, %v2126
      %v2133 = vpack.c.b16 %v2129, %v2128
      %v2135 = vsel %vm844, %v2130, 0
      %v2138 = vsel %vm844, %v2131, 0
      %v2141 = vsel %vm844, %v2132, 0
      %v2144 = vsel %vm844, %v2133, 0
      %2146 = vmatpush.bf16.msra.mxu0 0
      %2147 = vmatpush.bf16.msra.mxu0 0
      %2148 = vmatpush.bf16.msra.mxu0 0
      %2149 = vmatpush.bf16.msra.mxu0 0
      %2150 = vmatpush.bf16.msra.mxu0 %v2064
      %2151 = vmatpush.bf16.msra.mxu0 %v2063
      %2152 = vmatpush.bf16.msra.mxu0 %v2062
      %2153 = vmatpush.bf16.msra.mxu0 %v2061
      %2154 = vmatmul.bf16.gmra.mxu0 %v2135
      %v2155 = vpop.f32.mrf.mxu0
      %v2156 = vadd.f32 %v2077, %v2155
      %v2157 = vpop.f32.mrf.mxu0
      %v2158 = vadd.f32 %v2082, %v2157
      %2159 = vmatmul.bf16.gmra.mxu0 %v2138
      %v2160 = vpop.f32.mrf.mxu0
      %v2161 = vadd.f32 %v2087, %v2160
      %v2162 = vpop.f32.mrf.mxu0
      %v2163 = vadd.f32 %v2092, %v2162
      %2164 = vmatmul.bf16.gmra.mxu0 %v2141
      %v2165 = vpop.f32.mrf.mxu0
      %v2166 = vadd.f32 %v2097, %v2165
      %v2167 = vpop.f32.mrf.mxu0
      %v2168 = vadd.f32 %v2102, %v2167
      %2169 = vmatmul.bf16.gmra.mxu0 %v2144
      %v2170 = vpop.f32.mrf.mxu0
      %v2171 = vadd.f32 %v2107, %v2170
      %v2172 = vpop.f32.mrf.mxu0
      %v2173 = vadd.f32 %v2112, %v2172
      %2174 = vdwg.mxu0
      %v2175 = vadd.f32 %v1806, %v2156
      %v2176 = vadd.f32 %v1807, %v2158
      %v2177 = vadd.f32 %v1808, %v2161
      %v2178 = vadd.f32 %v1809, %v2163
      %v2179 = vadd.f32 %v1810, %v2166
      %v2180 = vadd.f32 %v1811, %v2168
      %v2181 = vadd.f32 %v1812, %v2171
      %v2182 = vadd.f32 %v1813, %v2173
      %v2183 = vsel %vm677, %v2175, 0.0
      %v2184 = vsel %vm677, %v2176, 0.0
      %v2185 = vsel %vm677, %v2177, 0.0
      %v2186 = vsel %vm677, %v2178, 0.0
      %v2187 = vsel %vm677, %v2179, 0.0
      %v2188 = vsel %vm677, %v2180, 0.0
      %v2189 = vsel %vm677, %v2181, 0.0
      %v2190 = vsel %vm677, %v2182, 0.0
      %vm2191 = vcmp.ge.s32.totalorder %v555, 16
      %2192 = vrot.lane.b32.xlu0 %v2183, 16
      %v2193 = vpop.permute.xlu0 %2192
      %2194 = vrot.lane.b32.xlu0 %v2184, 16
      %v2195 = vpop.permute.xlu0 %2194
      %2196 = vrot.lane.b32.xlu0 %v2185, 16
      %v2197 = vpop.permute.xlu0 %2196
      %2198 = vrot.lane.b32.xlu0 %v2186, 16
      %v2199 = vpop.permute.xlu0 %2198
      %2200 = vrot.lane.b32.xlu0 %v2187, 16
      %v2201 = vpop.permute.xlu0 %2200
      %2202 = vrot.lane.b32.xlu0 %v2188, 16
      %v2203 = vpop.permute.xlu0 %2202
      %2204 = vrot.lane.b32.xlu0 %v2189, 16
      %v2205 = vpop.permute.xlu0 %2204
      %2206 = vrot.lane.b32.xlu0 %v2190, 16
      %v2207 = vpop.permute.xlu0 %2206
      %v2208 = vsel %vm2191, 1, 0
      %vm2209 = vcmp.eq.s32.totalorder %v2208, 1
      %v2210 = vsel %vm2209, %v2193, 0.0
      %v2211 = vsel %vm2209, %v2195, 0.0
      %v2212 = vsel %vm2209, %v2197, 0.0
      %v2213 = vsel %vm2209, %v2199, 0.0
      %v2214 = vsel %vm2209, %v2201, 0.0
      %v2215 = vsel %vm2209, %v2203, 0.0
      %v2216 = vsel %vm2209, %v2205, 0.0
      %v2217 = vsel %vm2209, %v2207, 0.0
      %vm2218 = vcmp.lt.s32.totalorder %v555, 112
      %2219 = vrot.lane.b32.xlu0 %v2183, 112
      %v2220 = vpop.permute.xlu0 %2219
      %2221 = vrot.lane.b32.xlu0 %v2184, 112
      %v2222 = vpop.permute.xlu0 %2221
      %2223 = vrot.lane.b32.xlu0 %v2185, 112
      %v2224 = vpop.permute.xlu0 %2223
      %2225 = vrot.lane.b32.xlu0 %v2186, 112
      %v2226 = vpop.permute.xlu0 %2225
      %2227 = vrot.lane.b32.xlu0 %v2187, 112
      %v2228 = vpop.permute.xlu0 %2227
      %2229 = vrot.lane.b32.xlu0 %v2188, 112
      %v2230 = vpop.permute.xlu0 %2229
      %2231 = vrot.lane.b32.xlu0 %v2189, 112
      %v2232 = vpop.permute.xlu0 %2231
      %2233 = vrot.lane.b32.xlu0 %v2190, 112
      %v2234 = vpop.permute.xlu0 %2233
      %v2235 = vsel %vm2218, 1, 0
      %vm2236 = vcmp.eq.s32.totalorder %v2235, 1
      %v2237 = vsel %vm2236, %v2220, 0.0
      %v2238 = vsel %vm2236, %v2222, 0.0
      %v2239 = vsel %vm2236, %v2224, 0.0
      %v2240 = vsel %vm2236, %v2226, 0.0
      %v2241 = vsel %vm2236, %v2228, 0.0
      %v2242 = vsel %vm2236, %v2230, 0.0
      %v2243 = vsel %vm2236, %v2232, 0.0
      %v2244 = vsel %vm2236, %v2234, 0.0
      %v2245 = vpack.c.bf16 %v2211, %v2210
      %v2246 = vpack.c.bf16 %v2213, %v2212
      %v2247 = vpack.c.bf16 %v2215, %v2214
      %v2248 = vpack.c.bf16 %v2217, %v2216
      %v2249 = vpack.c.bf16 %v2184, %v2183
      %v2250 = vpack.c.bf16 %v2186, %v2185
      %v2251 = vpack.c.bf16 %v2188, %v2187
      %v2252 = vpack.c.bf16 %v2190, %v2189
      %v2253 = vpack.c.bf16 %v2238, %v2237
      %v2254 = vpack.c.bf16 %v2240, %v2239
      %v2255 = vpack.c.bf16 %v2242, %v2241
      %v2256 = vpack.c.bf16 %v2244, %v2243
      %s2257 = scalar_lea.vmem %s484, 256
      %v2258 = vld [vmem:[%s2257] sm:$0xff]
      %v2259 = vld [vmem:[%s2257 + $0x8] sm:$0xff]
      %v2260 = vld [vmem:[%s2257 + $0x10] sm:$0xff]
      %v2261 = vld [vmem:[%s2257 + $0x18] sm:$0xff]
      %v2262 = vld [vmem:[%s2257 + $0x20] sm:$0xff]
      %v2263 = vld [vmem:[%s2257 + $0x28] sm:$0xff]
      %v2264 = vld [vmem:[%s2257 + $0x30] sm:$0xff]
      %v2265 = vld [vmem:[%s2257 + $0x38] sm:$0xff]
      %s2266 = scalar_lea.vmem %s494, 256
      %v2267 = vld [vmem:[%s2266] sm:$0xff]
      %v2268 = vld [vmem:[%s2266 + $0x8] sm:$0xff]
      %v2269 = vld [vmem:[%s2266 + $0x10] sm:$0xff]
      %v2270 = vld [vmem:[%s2266 + $0x18] sm:$0xff]
      %v2271 = vld [vmem:[%s2266 + $0x20] sm:$0xff]
      %v2272 = vld [vmem:[%s2266 + $0x28] sm:$0xff]
      %v2273 = vld [vmem:[%s2266 + $0x30] sm:$0xff]
      %v2274 = vld [vmem:[%s2266 + $0x38] sm:$0xff]
      %2276 = vset.pattern.permute.xlu0 0
      %2277 = vperm.xlu0 %2276, %v2267
      %v2278 = vpop.permute.xlu0 %2277
      %2281 = vset.pattern.permute.xlu0 0
      %2282 = vperm.xlu0 %2281, %v2268
      %v2283 = vpop.permute.xlu0 %2282
      %2286 = vset.pattern.permute.xlu0 0
      %2287 = vperm.xlu0 %2286, %v2269
      %v2288 = vpop.permute.xlu0 %2287
      %2291 = vset.pattern.permute.xlu0 0
      %2292 = vperm.xlu0 %2291, %v2270
      %v2293 = vpop.permute.xlu0 %2292
      %2296 = vset.pattern.permute.xlu0 0
      %2297 = vperm.xlu0 %2296, %v2271
      %v2298 = vpop.permute.xlu0 %2297
      %2301 = vset.pattern.permute.xlu0 0
      %2302 = vperm.xlu0 %2301, %v2272
      %v2303 = vpop.permute.xlu0 %2302
      %2306 = vset.pattern.permute.xlu0 0
      %2307 = vperm.xlu0 %2306, %v2273
      %v2308 = vpop.permute.xlu0 %2307
      %2311 = vset.pattern.permute.xlu0 0
      %2312 = vperm.xlu0 %2311, %v2274
      %v2313 = vpop.permute.xlu0 %2312
      %v2323 = vunpack.c.l.b16 %v2258
      %v2324 = vunpack.c.h.b16 %v2258
      %v2325 = vunpack.c.l.b16 %v2259
      %v2326 = vunpack.c.h.b16 %v2259
      %v2327 = vunpack.c.l.b16 %v2260
      %v2328 = vunpack.c.h.b16 %v2260
      %v2329 = vunpack.c.l.b16 %v2261
      %v2330 = vunpack.c.h.b16 %v2261
      %v2331 = vunpack.c.l.b16 %v2262
      %v2332 = vunpack.c.h.b16 %v2262
      %v2333 = vunpack.c.l.b16 %v2263
      %v2334 = vunpack.c.h.b16 %v2263
      %v2335 = vunpack.c.l.b16 %v2264
      %v2336 = vunpack.c.h.b16 %v2264
      %v2337 = vunpack.c.l.b16 %v2265
      %v2338 = vunpack.c.h.b16 %v2265
      %v2339 = vpack.c.b16 %v2325, %v2323
      %v2340 = vpack.c.b16 %v2326, %v2324
      %v2341 = vpack.c.b16 %v2329, %v2327
      %v2342 = vpack.c.b16 %v2330, %v2328
      %v2343 = vpack.c.b16 %v2333, %v2331
      %v2344 = vpack.c.b16 %v2334, %v2332
      %v2345 = vpack.c.b16 %v2337, %v2335
      %v2346 = vpack.c.b16 %v2338, %v2336
      %v2352 = vsel %vm844, %v2340, 0
      %v2355 = vsel %vm844, %v2342, 0
      %v2358 = vsel %vm844, %v2344, 0
      %v2361 = vsel %vm844, %v2346, 0
      %2363 = vmatpush.bf16.msra.mxu0 %v2252
      %2364 = vmatpush.bf16.msra.mxu0 %v2251
      %2365 = vmatpush.bf16.msra.mxu0 %v2250
      %2366 = vmatpush.bf16.msra.mxu0 %v2249
      %2367 = vmatpush.bf16.msra.mxu0 %v2248
      %2368 = vmatpush.bf16.msra.mxu0 %v2247
      %2369 = vmatpush.bf16.msra.mxu0 %v2246
      %2370 = vmatpush.bf16.msra.mxu0 %v2245
      %2371 = vmatmul.bf16.gmra.mxu0 %v2339
      %v2372 = vpop.f32.mrf.mxu0
      %v2373 = vadd.f32 %v2278, %v2372
      %v2374 = vpop.f32.mrf.mxu0
      %v2375 = vadd.f32 %v2283, %v2374
      %2376 = vmatmul.bf16.gmra.mxu0 %v2341
      %v2377 = vpop.f32.mrf.mxu0
      %v2378 = vadd.f32 %v2288, %v2377
      %v2379 = vpop.f32.mrf.mxu0
      %v2380 = vadd.f32 %v2293, %v2379
      %2381 = vmatmul.bf16.gmra.mxu0 %v2343
      %v2382 = vpop.f32.mrf.mxu0
      %v2383 = vadd.f32 %v2298, %v2382
      %v2384 = vpop.f32.mrf.mxu0
      %v2385 = vadd.f32 %v2303, %v2384
      %2386 = vmatmul.bf16.gmra.mxu0 %v2345
      %v2387 = vpop.f32.mrf.mxu0
      %v2388 = vadd.f32 %v2308, %v2387
      %v2389 = vpop.f32.mrf.mxu0
      %v2390 = vadd.f32 %v2313, %v2389
      %2391 = vdwg.mxu0
      %2392 = vmatpush.bf16.msra.mxu0 0
      %2393 = vmatpush.bf16.msra.mxu0 0
      %2394 = vmatpush.bf16.msra.mxu0 0
      %2395 = vmatpush.bf16.msra.mxu0 0
      %2396 = vmatpush.bf16.msra.mxu0 %v2256
      %2397 = vmatpush.bf16.msra.mxu0 %v2255
      %2398 = vmatpush.bf16.msra.mxu0 %v2254
      %2399 = vmatpush.bf16.msra.mxu0 %v2253
      %2400 = vmatmul.bf16.gmra.mxu0 %v2352
      %v2401 = vpop.f32.mrf.mxu0
      %v2402 = vadd.f32 %v2373, %v2401
      %v2403 = vpop.f32.mrf.mxu0
      %v2404 = vadd.f32 %v2375, %v2403
      %2405 = vmatmul.bf16.gmra.mxu0 %v2355
      %v2406 = vpop.f32.mrf.mxu0
      %v2407 = vadd.f32 %v2378, %v2406
      %v2408 = vpop.f32.mrf.mxu0
      %v2409 = vadd.f32 %v2380, %v2408
      %2410 = vmatmul.bf16.gmra.mxu0 %v2358
      %v2411 = vpop.f32.mrf.mxu0
      %v2412 = vadd.f32 %v2383, %v2411
      %v2413 = vpop.f32.mrf.mxu0
      %v2414 = vadd.f32 %v2385, %v2413
      %2415 = vmatmul.bf16.gmra.mxu0 %v2361
      %v2416 = vpop.f32.mrf.mxu0
      %v2417 = vadd.f32 %v2388, %v2416
      %v2418 = vpop.f32.mrf.mxu0
      %v2419 = vadd.f32 %v2390, %v2418
      %2420 = vdwg.mxu0
      %v2421 = vmax.f32 %v2402, 0.0
      %v2422 = vmax.f32 %v2404, 0.0
      %v2423 = vmax.f32 %v2407, 0.0
      %v2424 = vmax.f32 %v2409, 0.0
      %v2425 = vmax.f32 %v2412, 0.0
      %v2426 = vmax.f32 %v2414, 0.0
      %v2427 = vmax.f32 %v2417, 0.0
      %v2428 = vmax.f32 %v2419, 0.0
      %s2429 = scalar_lea.vmem %s499, 128
      %v2430 = vld [vmem:[%s2429] sm:$0xf]
      %v2431 = vld [vmem:[%s2429 + $0x4] sm:$0xf]
      %v2432 = vld [vmem:[%s2429 + $0x8] sm:$0xf]
      %v2433 = vld [vmem:[%s2429 + $0xc] sm:$0xf]
      %v2434 = vld [vmem:[%s2429 + $0x10] sm:$0xf]
      %v2435 = vld [vmem:[%s2429 + $0x14] sm:$0xf]
      %v2436 = vld [vmem:[%s2429 + $0x18] sm:$0xf]
      %v2437 = vld [vmem:[%s2429 + $0x1c] sm:$0xf]
      %v2438 = vpack.c.bf16 %v2422, %v2421
      %v2439 = vpack.c.bf16 %v2424, %v2423
      %v2440 = vpack.c.bf16 %v2426, %v2425
      %v2441 = vpack.c.bf16 %v2428, %v2427
      %s2442 = scalar_lea.vmem %s504, 256
      %v2443 = vld [vmem:[%s2442] sm:$0xff]
      %v2444 = vld [vmem:[%s2442 + $0x8] sm:$0xff]
      %v2445 = vld [vmem:[%s2442 + $0x10] sm:$0xff]
      %v2446 = vld [vmem:[%s2442 + $0x18] sm:$0xff]
      %v2447 = vld [vmem:[%s2442 + $0x20] sm:$0xff]
      %v2448 = vld [vmem:[%s2442 + $0x28] sm:$0xff]
      %v2449 = vld [vmem:[%s2442 + $0x30] sm:$0xff]
      %v2450 = vld [vmem:[%s2442 + $0x38] sm:$0xff]
      %2452 = vset.pattern.permute.xlu0 0
      %2453 = vperm.xlu0 %2452, %v2443
      %v2454 = vpop.permute.xlu0 %2453
      %2457 = vset.pattern.permute.xlu0 0
      %2458 = vperm.xlu0 %2457, %v2444
      %v2459 = vpop.permute.xlu0 %2458
      %2462 = vset.pattern.permute.xlu0 0
      %2463 = vperm.xlu0 %2462, %v2445
      %v2464 = vpop.permute.xlu0 %2463
      %2467 = vset.pattern.permute.xlu0 0
      %2468 = vperm.xlu0 %2467, %v2446
      %v2469 = vpop.permute.xlu0 %2468
      %2472 = vset.pattern.permute.xlu0 0
      %2473 = vperm.xlu0 %2472, %v2447
      %v2474 = vpop.permute.xlu0 %2473
      %2477 = vset.pattern.permute.xlu0 0
      %2478 = vperm.xlu0 %2477, %v2448
      %v2479 = vpop.permute.xlu0 %2478
      %2482 = vset.pattern.permute.xlu0 0
      %2483 = vperm.xlu0 %2482, %v2449
      %v2484 = vpop.permute.xlu0 %2483
      %2487 = vset.pattern.permute.xlu0 0
      %2488 = vperm.xlu0 %2487, %v2450
      %v2489 = vpop.permute.xlu0 %2488
      %v2499 = vunpack.c.l.b16 %v2430
      %v2500 = vunpack.c.l.b16 %v2431
      %v2501 = vunpack.c.l.b16 %v2432
      %v2502 = vunpack.c.l.b16 %v2433
      %v2503 = vunpack.c.l.b16 %v2434
      %v2504 = vunpack.c.l.b16 %v2435
      %v2505 = vunpack.c.l.b16 %v2436
      %v2506 = vunpack.c.l.b16 %v2437
      %v2507 = vpack.c.b16 %v2500, %v2499
      %v2508 = vpack.c.b16 %v2502, %v2501
      %v2509 = vpack.c.b16 %v2504, %v2503
      %v2510 = vpack.c.b16 %v2506, %v2505
      %v2512 = vsel %vm844, %v2507, 0
      %v2515 = vsel %vm844, %v2508, 0
      %v2518 = vsel %vm844, %v2509, 0
      %v2521 = vsel %vm844, %v2510, 0
      %2523 = vmatpush.bf16.msra.mxu0 0
      %2524 = vmatpush.bf16.msra.mxu0 0
      %2525 = vmatpush.bf16.msra.mxu0 0
      %2526 = vmatpush.bf16.msra.mxu0 0
      %2527 = vmatpush.bf16.msra.mxu0 %v2441
      %2528 = vmatpush.bf16.msra.mxu0 %v2440
      %2529 = vmatpush.bf16.msra.mxu0 %v2439
      %2530 = vmatpush.bf16.msra.mxu0 %v2438
      %2531 = vmatmul.bf16.gmra.mxu0 %v2512
      %v2532 = vpop.f32.mrf.mxu0
      %v2533 = vadd.f32 %v2454, %v2532
      %v2534 = vpop.f32.mrf.mxu0
      %v2535 = vadd.f32 %v2459, %v2534
      %2536 = vmatmul.bf16.gmra.mxu0 %v2515
      %v2537 = vpop.f32.mrf.mxu0
      %v2538 = vadd.f32 %v2464, %v2537
      %v2539 = vpop.f32.mrf.mxu0
      %v2540 = vadd.f32 %v2469, %v2539
      %2541 = vmatmul.bf16.gmra.mxu0 %v2518
      %v2542 = vpop.f32.mrf.mxu0
      %v2543 = vadd.f32 %v2474, %v2542
      %v2544 = vpop.f32.mrf.mxu0
      %v2545 = vadd.f32 %v2479, %v2544
      %2546 = vmatmul.bf16.gmra.mxu0 %v2521
      %v2547 = vpop.f32.mrf.mxu0
      %v2548 = vadd.f32 %v2484, %v2547
      %v2549 = vpop.f32.mrf.mxu0
      %v2550 = vadd.f32 %v2489, %v2549
      %2551 = vdwg.mxu0
      %v2552 = vadd.f32 %v2183, %v2533
      %v2553 = vadd.f32 %v2184, %v2535
      %v2554 = vadd.f32 %v2185, %v2538
      %v2555 = vadd.f32 %v2186, %v2540
      %v2556 = vadd.f32 %v2187, %v2543
      %v2557 = vadd.f32 %v2188, %v2545
      %v2558 = vadd.f32 %v2189, %v2548
      %v2559 = vadd.f32 %v2190, %v2550
      %v2560 = vsel %vm677, %v2552, 0.0
      %v2561 = vsel %vm677, %v2553, 0.0
      %v2562 = vsel %vm677, %v2554, 0.0
      %v2563 = vsel %vm677, %v2555, 0.0
      %v2564 = vsel %vm677, %v2556, 0.0
      %v2565 = vsel %vm677, %v2557, 0.0
      %v2566 = vsel %vm677, %v2558, 0.0
      %v2567 = vsel %vm677, %v2559, 0.0
      %s2568 = scalar_lea.vmem %s489, 160
      %v2569 = vld [vmem:[%s2568] sm:$0xf]
      %v2570 = vld [vmem:[%s2568 + $0x4] sm:$0xf]
      %v2571 = vld [vmem:[%s2568 + $0x8] sm:$0xf]
      %v2572 = vld [vmem:[%s2568 + $0xc] sm:$0xf]
      %v2573 = vld [vmem:[%s2568 + $0x10] sm:$0xf]
      %v2574 = vld [vmem:[%s2568 + $0x14] sm:$0xf]
      %v2575 = vld [vmem:[%s2568 + $0x18] sm:$0xf]
      %v2576 = vld [vmem:[%s2568 + $0x1c] sm:$0xf]
      %v2577 = vpack.c.bf16 %v2561, %v2560
      %v2578 = vpack.c.bf16 %v2563, %v2562
      %v2579 = vpack.c.bf16 %v2565, %v2564
      %v2580 = vpack.c.bf16 %v2567, %v2566
      %s2581 = scalar_lea.vmem %s494, 320
      %v2582 = vld [vmem:[%s2581] sm:$0xff]
      %v2583 = vld [vmem:[%s2581 + $0x8] sm:$0xff]
      %v2584 = vld [vmem:[%s2581 + $0x10] sm:$0xff]
      %v2585 = vld [vmem:[%s2581 + $0x18] sm:$0xff]
      %v2586 = vld [vmem:[%s2581 + $0x20] sm:$0xff]
      %v2587 = vld [vmem:[%s2581 + $0x28] sm:$0xff]
      %v2588 = vld [vmem:[%s2581 + $0x30] sm:$0xff]
      %v2589 = vld [vmem:[%s2581 + $0x38] sm:$0xff]
      %2591 = vset.pattern.permute.xlu0 0
      %2592 = vperm.xlu0 %2591, %v2582
      %v2593 = vpop.permute.xlu0 %2592
      %2596 = vset.pattern.permute.xlu0 0
      %2597 = vperm.xlu0 %2596, %v2583
      %v2598 = vpop.permute.xlu0 %2597
      %2601 = vset.pattern.permute.xlu0 0
      %2602 = vperm.xlu0 %2601, %v2584
      %v2603 = vpop.permute.xlu0 %2602
      %2606 = vset.pattern.permute.xlu0 0
      %2607 = vperm.xlu0 %2606, %v2585
      %v2608 = vpop.permute.xlu0 %2607
      %2611 = vset.pattern.permute.xlu0 0
      %2612 = vperm.xlu0 %2611, %v2586
      %v2613 = vpop.permute.xlu0 %2612
      %2616 = vset.pattern.permute.xlu0 0
      %2617 = vperm.xlu0 %2616, %v2587
      %v2618 = vpop.permute.xlu0 %2617
      %2621 = vset.pattern.permute.xlu0 0
      %2622 = vperm.xlu0 %2621, %v2588
      %v2623 = vpop.permute.xlu0 %2622
      %2626 = vset.pattern.permute.xlu0 0
      %2627 = vperm.xlu0 %2626, %v2589
      %v2628 = vpop.permute.xlu0 %2627
      %v2638 = vunpack.c.l.b16 %v2569
      %v2639 = vunpack.c.l.b16 %v2570
      %v2640 = vunpack.c.l.b16 %v2571
      %v2641 = vunpack.c.l.b16 %v2572
      %v2642 = vunpack.c.l.b16 %v2573
      %v2643 = vunpack.c.l.b16 %v2574
      %v2644 = vunpack.c.l.b16 %v2575
      %v2645 = vunpack.c.l.b16 %v2576
      %v2646 = vpack.c.b16 %v2639, %v2638
      %v2647 = vpack.c.b16 %v2641, %v2640
      %v2648 = vpack.c.b16 %v2643, %v2642
      %v2649 = vpack.c.b16 %v2645, %v2644
      %v2651 = vsel %vm844, %v2646, 0
      %v2654 = vsel %vm844, %v2647, 0
      %v2657 = vsel %vm844, %v2648, 0
      %v2660 = vsel %vm844, %v2649, 0
      %2662 = vmatpush.bf16.msra.mxu0 0
      %2663 = vmatpush.bf16.msra.mxu0 0
      %2664 = vmatpush.bf16.msra.mxu0 0
      %2665 = vmatpush.bf16.msra.mxu0 0
      %2666 = vmatpush.bf16.msra.mxu0 %v2580
      %2667 = vmatpush.bf16.msra.mxu0 %v2579
      %2668 = vmatpush.bf16.msra.mxu0 %v2578
      %2669 = vmatpush.bf16.msra.mxu0 %v2577
      %2670 = vmatmul.bf16.gmra.mxu0 %v2651
      %v2671 = vpop.f32.mrf.mxu0
      %v2672 = vadd.f32 %v2593, %v2671
      %v2673 = vpop.f32.mrf.mxu0
      %v2674 = vadd.f32 %v2598, %v2673
      %2675 = vmatmul.bf16.gmra.mxu0 %v2654
      %v2676 = vpop.f32.mrf.mxu0
      %v2677 = vadd.f32 %v2603, %v2676
      %v2678 = vpop.f32.mrf.mxu0
      %v2679 = vadd.f32 %v2608, %v2678
      %2680 = vmatmul.bf16.gmra.mxu0 %v2657
      %v2681 = vpop.f32.mrf.mxu0
      %v2682 = vadd.f32 %v2613, %v2681
      %v2683 = vpop.f32.mrf.mxu0
      %v2684 = vadd.f32 %v2618, %v2683
      %2685 = vmatmul.bf16.gmra.mxu0 %v2660
      %v2686 = vpop.f32.mrf.mxu0
      %v2687 = vadd.f32 %v2623, %v2686
      %v2688 = vpop.f32.mrf.mxu0
      %v2689 = vadd.f32 %v2628, %v2688
      %2690 = vdwg.mxu0
      %v2691 = vmax.f32 %v2672, 0.0
      %v2692 = vmax.f32 %v2674, 0.0
      %v2693 = vmax.f32 %v2677, 0.0
      %v2694 = vmax.f32 %v2679, 0.0
      %v2695 = vmax.f32 %v2682, 0.0
      %v2696 = vmax.f32 %v2684, 0.0
      %v2697 = vmax.f32 %v2687, 0.0
      %v2698 = vmax.f32 %v2689, 0.0
      %s2699 = scalar_lea.vmem %s499, 160
      %v2700 = vld [vmem:[%s2699] sm:$0xf]
      %v2701 = vld [vmem:[%s2699 + $0x4] sm:$0xf]
      %v2702 = vld [vmem:[%s2699 + $0x8] sm:$0xf]
      %v2703 = vld [vmem:[%s2699 + $0xc] sm:$0xf]
      %v2704 = vld [vmem:[%s2699 + $0x10] sm:$0xf]
      %v2705 = vld [vmem:[%s2699 + $0x14] sm:$0xf]
      %v2706 = vld [vmem:[%s2699 + $0x18] sm:$0xf]
      %v2707 = vld [vmem:[%s2699 + $0x1c] sm:$0xf]
      %v2708 = vpack.c.bf16 %v2692, %v2691
      %v2709 = vpack.c.bf16 %v2694, %v2693
      %v2710 = vpack.c.bf16 %v2696, %v2695
      %v2711 = vpack.c.bf16 %v2698, %v2697
      %s2712 = scalar_lea.vmem %s504, 320
      %v2713 = vld [vmem:[%s2712] sm:$0xff]
      %v2714 = vld [vmem:[%s2712 + $0x8] sm:$0xff]
      %v2715 = vld [vmem:[%s2712 + $0x10] sm:$0xff]
      %v2716 = vld [vmem:[%s2712 + $0x18] sm:$0xff]
      %v2717 = vld [vmem:[%s2712 + $0x20] sm:$0xff]
      %v2718 = vld [vmem:[%s2712 + $0x28] sm:$0xff]
      %v2719 = vld [vmem:[%s2712 + $0x30] sm:$0xff]
      %v2720 = vld [vmem:[%s2712 + $0x38] sm:$0xff]
      %2722 = vset.pattern.permute.xlu0 0
      %2723 = vperm.xlu0 %2722, %v2713
      %v2724 = vpop.permute.xlu0 %2723
      %2727 = vset.pattern.permute.xlu0 0
      %2728 = vperm.xlu0 %2727, %v2714
      %v2729 = vpop.permute.xlu0 %2728
      %2732 = vset.pattern.permute.xlu0 0
      %2733 = vperm.xlu0 %2732, %v2715
      %v2734 = vpop.permute.xlu0 %2733
      %2737 = vset.pattern.permute.xlu0 0
      %2738 = vperm.xlu0 %2737, %v2716
      %v2739 = vpop.permute.xlu0 %2738
      %2742 = vset.pattern.permute.xlu0 0
      %2743 = vperm.xlu0 %2742, %v2717
      %v2744 = vpop.permute.xlu0 %2743
      %2747 = vset.pattern.permute.xlu0 0
      %2748 = vperm.xlu0 %2747, %v2718
      %v2749 = vpop.permute.xlu0 %2748
      %2752 = vset.pattern.permute.xlu0 0
      %2753 = vperm.xlu0 %2752, %v2719
      %v2754 = vpop.permute.xlu0 %2753
      %2757 = vset.pattern.permute.xlu0 0
      %2758 = vperm.xlu0 %2757, %v2720
      %v2759 = vpop.permute.xlu0 %2758
      %v2769 = vunpack.c.l.b16 %v2700
      %v2770 = vunpack.c.l.b16 %v2701
      %v2771 = vunpack.c.l.b16 %v2702
      %v2772 = vunpack.c.l.b16 %v2703
      %v2773 = vunpack.c.l.b16 %v2704
      %v2774 = vunpack.c.l.b16 %v2705
      %v2775 = vunpack.c.l.b16 %v2706
      %v2776 = vunpack.c.l.b16 %v2707
      %v2777 = vpack.c.b16 %v2770, %v2769
      %v2778 = vpack.c.b16 %v2772, %v2771
      %v2779 = vpack.c.b16 %v2774, %v2773
      %v2780 = vpack.c.b16 %v2776, %v2775
      %v2782 = vsel %vm844, %v2777, 0
      %v2785 = vsel %vm844, %v2778, 0
      %v2788 = vsel %vm844, %v2779, 0
      %v2791 = vsel %vm844, %v2780, 0
      %2793 = vmatpush.bf16.msra.mxu0 0
      %2794 = vmatpush.bf16.msra.mxu0 0
      %2795 = vmatpush.bf16.msra.mxu0 0
      %2796 = vmatpush.bf16.msra.mxu0 0
      %2797 = vmatpush.bf16.msra.mxu0 %v2711
      %2798 = vmatpush.bf16.msra.mxu0 %v2710
      %2799 = vmatpush.bf16.msra.mxu0 %v2709
      %2800 = vmatpush.bf16.msra.mxu0 %v2708
      %2801 = vmatmul.bf16.gmra.mxu0 %v2782
      %v2802 = vpop.f32.mrf.mxu0
      %v2803 = vadd.f32 %v2724, %v2802
      %v2804 = vpop.f32.mrf.mxu0
      %v2805 = vadd.f32 %v2729, %v2804
      %2806 = vmatmul.bf16.gmra.mxu0 %v2785
      %v2807 = vpop.f32.mrf.mxu0
      %v2808 = vadd.f32 %v2734, %v2807
      %v2809 = vpop.f32.mrf.mxu0
      %v2810 = vadd.f32 %v2739, %v2809
      %2811 = vmatmul.bf16.gmra.mxu0 %v2788
      %v2812 = vpop.f32.mrf.mxu0
      %v2813 = vadd.f32 %v2744, %v2812
      %v2814 = vpop.f32.mrf.mxu0
      %v2815 = vadd.f32 %v2749, %v2814
      %2816 = vmatmul.bf16.gmra.mxu0 %v2791
      %v2817 = vpop.f32.mrf.mxu0
      %v2818 = vadd.f32 %v2754, %v2817
      %v2819 = vpop.f32.mrf.mxu0
      %v2820 = vadd.f32 %v2759, %v2819
      %2821 = vdwg.mxu0
      %v2822 = vadd.f32 %v2560, %v2803
      %v2823 = vadd.f32 %v2561, %v2805
      %v2824 = vadd.f32 %v2562, %v2808
      %v2825 = vadd.f32 %v2563, %v2810
      %v2826 = vadd.f32 %v2564, %v2813
      %v2827 = vadd.f32 %v2565, %v2815
      %v2828 = vadd.f32 %v2566, %v2818
      %v2829 = vadd.f32 %v2567, %v2820
      %v2830 = vsel %vm677, %v2822, 0.0
      %v2831 = vsel %vm677, %v2823, 0.0
      %v2832 = vsel %vm677, %v2824, 0.0
      %v2833 = vsel %vm677, %v2825, 0.0
      %v2834 = vsel %vm677, %v2826, 0.0
      %v2835 = vsel %vm677, %v2827, 0.0
      %v2836 = vsel %vm677, %v2828, 0.0
      %v2837 = vsel %vm677, %v2829, 0.0
      %s2838 = scalar_lea.vmem %s489, 192
      %v2839 = vld [vmem:[%s2838] sm:$0xf]
      %v2840 = vld [vmem:[%s2838 + $0x4] sm:$0xf]
      %v2841 = vld [vmem:[%s2838 + $0x8] sm:$0xf]
      %v2842 = vld [vmem:[%s2838 + $0xc] sm:$0xf]
      %v2843 = vld [vmem:[%s2838 + $0x10] sm:$0xf]
      %v2844 = vld [vmem:[%s2838 + $0x14] sm:$0xf]
      %v2845 = vld [vmem:[%s2838 + $0x18] sm:$0xf]
      %v2846 = vld [vmem:[%s2838 + $0x1c] sm:$0xf]
      %v2847 = vpack.c.bf16 %v2831, %v2830
      %v2848 = vpack.c.bf16 %v2833, %v2832
      %v2849 = vpack.c.bf16 %v2835, %v2834
      %v2850 = vpack.c.bf16 %v2837, %v2836
      %s2851 = scalar_lea.vmem %s494, 384
      %v2852 = vld [vmem:[%s2851] sm:$0xff]
      %v2853 = vld [vmem:[%s2851 + $0x8] sm:$0xff]
      %v2854 = vld [vmem:[%s2851 + $0x10] sm:$0xff]
      %v2855 = vld [vmem:[%s2851 + $0x18] sm:$0xff]
      %v2856 = vld [vmem:[%s2851 + $0x20] sm:$0xff]
      %v2857 = vld [vmem:[%s2851 + $0x28] sm:$0xff]
      %v2858 = vld [vmem:[%s2851 + $0x30] sm:$0xff]
      %v2859 = vld [vmem:[%s2851 + $0x38] sm:$0xff]
      %2861 = vset.pattern.permute.xlu0 0
      %2862 = vperm.xlu0 %2861, %v2852
      %v2863 = vpop.permute.xlu0 %2862
      %2866 = vset.pattern.permute.xlu0 0
      %2867 = vperm.xlu0 %2866, %v2853
      %v2868 = vpop.permute.xlu0 %2867
      %2871 = vset.pattern.permute.xlu0 0
      %2872 = vperm.xlu0 %2871, %v2854
      %v2873 = vpop.permute.xlu0 %2872
      %2876 = vset.pattern.permute.xlu0 0
      %2877 = vperm.xlu0 %2876, %v2855
      %v2878 = vpop.permute.xlu0 %2877
      %2881 = vset.pattern.permute.xlu0 0
      %2882 = vperm.xlu0 %2881, %v2856
      %v2883 = vpop.permute.xlu0 %2882
      %2886 = vset.pattern.permute.xlu0 0
      %2887 = vperm.xlu0 %2886, %v2857
      %v2888 = vpop.permute.xlu0 %2887
      %2891 = vset.pattern.permute.xlu0 0
      %2892 = vperm.xlu0 %2891, %v2858
      %v2893 = vpop.permute.xlu0 %2892
      %2896 = vset.pattern.permute.xlu0 0
      %2897 = vperm.xlu0 %2896, %v2859
      %v2898 = vpop.permute.xlu0 %2897
      %v2908 = vunpack.c.l.b16 %v2839
      %v2909 = vunpack.c.l.b16 %v2840
      %v2910 = vunpack.c.l.b16 %v2841
      %v2911 = vunpack.c.l.b16 %v2842
      %v2912 = vunpack.c.l.b16 %v2843
      %v2913 = vunpack.c.l.b16 %v2844
      %v2914 = vunpack.c.l.b16 %v2845
      %v2915 = vunpack.c.l.b16 %v2846
      %v2916 = vpack.c.b16 %v2909, %v2908
      %v2917 = vpack.c.b16 %v2911, %v2910
      %v2918 = vpack.c.b16 %v2913, %v2912
      %v2919 = vpack.c.b16 %v2915, %v2914
      %v2921 = vsel %vm844, %v2916, 0
      %v2924 = vsel %vm844, %v2917, 0
      %v2927 = vsel %vm844, %v2918, 0
      %v2930 = vsel %vm844, %v2919, 0
      %2932 = vmatpush.bf16.msra.mxu0 0
      %2933 = vmatpush.bf16.msra.mxu0 0
      %2934 = vmatpush.bf16.msra.mxu0 0
      %2935 = vmatpush.bf16.msra.mxu0 0
      %2936 = vmatpush.bf16.msra.mxu0 %v2850
      %2937 = vmatpush.bf16.msra.mxu0 %v2849
      %2938 = vmatpush.bf16.msra.mxu0 %v2848
      %2939 = vmatpush.bf16.msra.mxu0 %v2847
      %2940 = vmatmul.bf16.gmra.mxu0 %v2921
      %v2941 = vpop.f32.mrf.mxu0
      %v2942 = vadd.f32 %v2863, %v2941
      %v2943 = vpop.f32.mrf.mxu0
      %v2944 = vadd.f32 %v2868, %v2943
      %2945 = vmatmul.bf16.gmra.mxu0 %v2924
      %v2946 = vpop.f32.mrf.mxu0
      %v2947 = vadd.f32 %v2873, %v2946
      %v2948 = vpop.f32.mrf.mxu0
      %v2949 = vadd.f32 %v2878, %v2948
      %2950 = vmatmul.bf16.gmra.mxu0 %v2927
      %v2951 = vpop.f32.mrf.mxu0
      %v2952 = vadd.f32 %v2883, %v2951
      %v2953 = vpop.f32.mrf.mxu0
      %v2954 = vadd.f32 %v2888, %v2953
      %2955 = vmatmul.bf16.gmra.mxu0 %v2930
      %v2956 = vpop.f32.mrf.mxu0
      %v2957 = vadd.f32 %v2893, %v2956
      %v2958 = vpop.f32.mrf.mxu0
      %v2959 = vadd.f32 %v2898, %v2958
      %2960 = vdwg.mxu0
      %v2961 = vmax.f32 %v2942, 0.0
      %v2962 = vmax.f32 %v2944, 0.0
      %v2963 = vmax.f32 %v2947, 0.0
      %v2964 = vmax.f32 %v2949, 0.0
      %v2965 = vmax.f32 %v2952, 0.0
      %v2966 = vmax.f32 %v2954, 0.0
      %v2967 = vmax.f32 %v2957, 0.0
      %v2968 = vmax.f32 %v2959, 0.0
      %s2969 = scalar_lea.vmem %s499, 192
      %v2970 = vld [vmem:[%s2969] sm:$0xf]
      %v2971 = vld [vmem:[%s2969 + $0x4] sm:$0xf]
      %v2972 = vld [vmem:[%s2969 + $0x8] sm:$0xf]
      %v2973 = vld [vmem:[%s2969 + $0xc] sm:$0xf]
      %v2974 = vld [vmem:[%s2969 + $0x10] sm:$0xf]
      %v2975 = vld [vmem:[%s2969 + $0x14] sm:$0xf]
      %v2976 = vld [vmem:[%s2969 + $0x18] sm:$0xf]
      %v2977 = vld [vmem:[%s2969 + $0x1c] sm:$0xf]
      %v2978 = vpack.c.bf16 %v2962, %v2961
      %v2979 = vpack.c.bf16 %v2964, %v2963
      %v2980 = vpack.c.bf16 %v2966, %v2965
      %v2981 = vpack.c.bf16 %v2968, %v2967
      %s2982 = scalar_lea.vmem %s504, 384
      %v2983 = vld [vmem:[%s2982] sm:$0xff]
      %v2984 = vld [vmem:[%s2982 + $0x8] sm:$0xff]
      %v2985 = vld [vmem:[%s2982 + $0x10] sm:$0xff]
      %v2986 = vld [vmem:[%s2982 + $0x18] sm:$0xff]
      %v2987 = vld [vmem:[%s2982 + $0x20] sm:$0xff]
      %v2988 = vld [vmem:[%s2982 + $0x28] sm:$0xff]
      %v2989 = vld [vmem:[%s2982 + $0x30] sm:$0xff]
      %v2990 = vld [vmem:[%s2982 + $0x38] sm:$0xff]
      %2992 = vset.pattern.permute.xlu0 0
      %2993 = vperm.xlu0 %2992, %v2983
      %v2994 = vpop.permute.xlu0 %2993
      %2997 = vset.pattern.permute.xlu0 0
      %2998 = vperm.xlu0 %2997, %v2984
      %v2999 = vpop.permute.xlu0 %2998
      %3002 = vset.pattern.permute.xlu0 0
      %3003 = vperm.xlu0 %3002, %v2985
      %v3004 = vpop.permute.xlu0 %3003
      %3007 = vset.pattern.permute.xlu0 0
      %3008 = vperm.xlu0 %3007, %v2986
      %v3009 = vpop.permute.xlu0 %3008
      %3012 = vset.pattern.permute.xlu0 0
      %3013 = vperm.xlu0 %3012, %v2987
      %v3014 = vpop.permute.xlu0 %3013
      %3017 = vset.pattern.permute.xlu0 0
      %3018 = vperm.xlu0 %3017, %v2988
      %v3019 = vpop.permute.xlu0 %3018
      %3022 = vset.pattern.permute.xlu0 0
      %3023 = vperm.xlu0 %3022, %v2989
      %v3024 = vpop.permute.xlu0 %3023
      %3027 = vset.pattern.permute.xlu0 0
      %3028 = vperm.xlu0 %3027, %v2990
      %v3029 = vpop.permute.xlu0 %3028
      %v3039 = vunpack.c.l.b16 %v2970
      %v3040 = vunpack.c.l.b16 %v2971
      %v3041 = vunpack.c.l.b16 %v2972
      %v3042 = vunpack.c.l.b16 %v2973
      %v3043 = vunpack.c.l.b16 %v2974
      %v3044 = vunpack.c.l.b16 %v2975
      %v3045 = vunpack.c.l.b16 %v2976
      %v3046 = vunpack.c.l.b16 %v2977
      %v3047 = vpack.c.b16 %v3040, %v3039
      %v3048 = vpack.c.b16 %v3042, %v3041
      %v3049 = vpack.c.b16 %v3044, %v3043
      %v3050 = vpack.c.b16 %v3046, %v3045
      %v3052 = vsel %vm844, %v3047, 0
      %v3055 = vsel %vm844, %v3048, 0
      %v3058 = vsel %vm844, %v3049, 0
      %v3061 = vsel %vm844, %v3050, 0
      %3063 = vmatpush.bf16.msra.mxu0 0
      %3064 = vmatpush.bf16.msra.mxu0 0
      %3065 = vmatpush.bf16.msra.mxu0 0
      %3066 = vmatpush.bf16.msra.mxu0 0
      %3067 = vmatpush.bf16.msra.mxu0 %v2981
      %3068 = vmatpush.bf16.msra.mxu0 %v2980
      %3069 = vmatpush.bf16.msra.mxu0 %v2979
      %3070 = vmatpush.bf16.msra.mxu0 %v2978
      %3071 = vmatmul.bf16.gmra.mxu0 %v3052
      %v3072 = vpop.f32.mrf.mxu0
      %v3073 = vadd.f32 %v2994, %v3072
      %v3074 = vpop.f32.mrf.mxu0
      %v3075 = vadd.f32 %v2999, %v3074
      %3076 = vmatmul.bf16.gmra.mxu0 %v3055
      %v3077 = vpop.f32.mrf.mxu0
      %v3078 = vadd.f32 %v3004, %v3077
      %v3079 = vpop.f32.mrf.mxu0
      %v3080 = vadd.f32 %v3009, %v3079
      %3081 = vmatmul.bf16.gmra.mxu0 %v3058
      %v3082 = vpop.f32.mrf.mxu0
      %v3083 = vadd.f32 %v3014, %v3082
      %v3084 = vpop.f32.mrf.mxu0
      %v3085 = vadd.f32 %v3019, %v3084
      %3086 = vmatmul.bf16.gmra.mxu0 %v3061
      %v3087 = vpop.f32.mrf.mxu0
      %v3088 = vadd.f32 %v3024, %v3087
      %v3089 = vpop.f32.mrf.mxu0
      %v3090 = vadd.f32 %v3029, %v3089
      %3091 = vdwg.mxu0
      %v3092 = vadd.f32 %v2830, %v3073
      %v3093 = vadd.f32 %v2831, %v3075
      %v3094 = vadd.f32 %v2832, %v3078
      %v3095 = vadd.f32 %v2833, %v3080
      %v3096 = vadd.f32 %v2834, %v3083
      %v3097 = vadd.f32 %v2835, %v3085
      %v3098 = vadd.f32 %v2836, %v3088
      %v3099 = vadd.f32 %v2837, %v3090
      %v3100 = vsel %vm677, %v3092, 0.0
      %v3101 = vsel %vm677, %v3093, 0.0
      %v3102 = vsel %vm677, %v3094, 0.0
      %v3103 = vsel %vm677, %v3095, 0.0
      %v3104 = vsel %vm677, %v3096, 0.0
      %v3105 = vsel %vm677, %v3097, 0.0
      %v3106 = vsel %vm677, %v3098, 0.0
      %v3107 = vsel %vm677, %v3099, 0.0
      %s3108 = scalar_lea.vmem %s489, 224
      %v3109 = vld [vmem:[%s3108] sm:$0xf]
      %v3110 = vld [vmem:[%s3108 + $0x4] sm:$0xf]
      %v3111 = vld [vmem:[%s3108 + $0x8] sm:$0xf]
      %v3112 = vld [vmem:[%s3108 + $0xc] sm:$0xf]
      %v3113 = vld [vmem:[%s3108 + $0x10] sm:$0xf]
      %v3114 = vld [vmem:[%s3108 + $0x14] sm:$0xf]
      %v3115 = vld [vmem:[%s3108 + $0x18] sm:$0xf]
      %v3116 = vld [vmem:[%s3108 + $0x1c] sm:$0xf]
      %v3117 = vpack.c.bf16 %v3101, %v3100
      %v3118 = vpack.c.bf16 %v3103, %v3102
      %v3119 = vpack.c.bf16 %v3105, %v3104
      %v3120 = vpack.c.bf16 %v3107, %v3106
      %s3121 = scalar_lea.vmem %s494, 448
      %v3122 = vld [vmem:[%s3121] sm:$0xff]
      %v3123 = vld [vmem:[%s3121 + $0x8] sm:$0xff]
      %v3124 = vld [vmem:[%s3121 + $0x10] sm:$0xff]
      %v3125 = vld [vmem:[%s3121 + $0x18] sm:$0xff]
      %v3126 = vld [vmem:[%s3121 + $0x20] sm:$0xff]
      %v3127 = vld [vmem:[%s3121 + $0x28] sm:$0xff]
      %v3128 = vld [vmem:[%s3121 + $0x30] sm:$0xff]
      %v3129 = vld [vmem:[%s3121 + $0x38] sm:$0xff]
      %3131 = vset.pattern.permute.xlu0 0
      %3132 = vperm.xlu0 %3131, %v3122
      %v3133 = vpop.permute.xlu0 %3132
      %3136 = vset.pattern.permute.xlu0 0
      %3137 = vperm.xlu0 %3136, %v3123
      %v3138 = vpop.permute.xlu0 %3137
      %3141 = vset.pattern.permute.xlu0 0
      %3142 = vperm.xlu0 %3141, %v3124
      %v3143 = vpop.permute.xlu0 %3142
      %3146 = vset.pattern.permute.xlu0 0
      %3147 = vperm.xlu0 %3146, %v3125
      %v3148 = vpop.permute.xlu0 %3147
      %3151 = vset.pattern.permute.xlu0 0
      %3152 = vperm.xlu0 %3151, %v3126
      %v3153 = vpop.permute.xlu0 %3152
      %3156 = vset.pattern.permute.xlu0 0
      %3157 = vperm.xlu0 %3156, %v3127
      %v3158 = vpop.permute.xlu0 %3157
      %3161 = vset.pattern.permute.xlu0 0
      %3162 = vperm.xlu0 %3161, %v3128
      %v3163 = vpop.permute.xlu0 %3162
      %3166 = vset.pattern.permute.xlu0 0
      %3167 = vperm.xlu0 %3166, %v3129
      %v3168 = vpop.permute.xlu0 %3167
      %v3178 = vunpack.c.l.b16 %v3109
      %v3179 = vunpack.c.l.b16 %v3110
      %v3180 = vunpack.c.l.b16 %v3111
      %v3181 = vunpack.c.l.b16 %v3112
      %v3182 = vunpack.c.l.b16 %v3113
      %v3183 = vunpack.c.l.b16 %v3114
      %v3184 = vunpack.c.l.b16 %v3115
      %v3185 = vunpack.c.l.b16 %v3116
      %v3186 = vpack.c.b16 %v3179, %v3178
      %v3187 = vpack.c.b16 %v3181, %v3180
      %v3188 = vpack.c.b16 %v3183, %v3182
      %v3189 = vpack.c.b16 %v3185, %v3184
      %v3191 = vsel %vm844, %v3186, 0
      %v3194 = vsel %vm844, %v3187, 0
      %v3197 = vsel %vm844, %v3188, 0
      %v3200 = vsel %vm844, %v3189, 0
      %3202 = vmatpush.bf16.msra.mxu0 0
      %3203 = vmatpush.bf16.msra.mxu0 0
      %3204 = vmatpush.bf16.msra.mxu0 0
      %3205 = vmatpush.bf16.msra.mxu0 0
      %3206 = vmatpush.bf16.msra.mxu0 %v3120
      %3207 = vmatpush.bf16.msra.mxu0 %v3119
      %3208 = vmatpush.bf16.msra.mxu0 %v3118
      %3209 = vmatpush.bf16.msra.mxu0 %v3117
      %3210 = vmatmul.bf16.gmra.mxu0 %v3191
      %v3211 = vpop.f32.mrf.mxu0
      %v3212 = vadd.f32 %v3133, %v3211
      %v3213 = vpop.f32.mrf.mxu0
      %v3214 = vadd.f32 %v3138, %v3213
      %3215 = vmatmul.bf16.gmra.mxu0 %v3194
      %v3216 = vpop.f32.mrf.mxu0
      %v3217 = vadd.f32 %v3143, %v3216
      %v3218 = vpop.f32.mrf.mxu0
      %v3219 = vadd.f32 %v3148, %v3218
      %3220 = vmatmul.bf16.gmra.mxu0 %v3197
      %v3221 = vpop.f32.mrf.mxu0
      %v3222 = vadd.f32 %v3153, %v3221
      %v3223 = vpop.f32.mrf.mxu0
      %v3224 = vadd.f32 %v3158, %v3223
      %3225 = vmatmul.bf16.gmra.mxu0 %v3200
      %v3226 = vpop.f32.mrf.mxu0
      %v3227 = vadd.f32 %v3163, %v3226
      %v3228 = vpop.f32.mrf.mxu0
      %v3229 = vadd.f32 %v3168, %v3228
      %3230 = vdwg.mxu0
      %v3231 = vmax.f32 %v3212, 0.0
      %v3232 = vmax.f32 %v3214, 0.0
      %v3233 = vmax.f32 %v3217, 0.0
      %v3234 = vmax.f32 %v3219, 0.0
      %v3235 = vmax.f32 %v3222, 0.0
      %v3236 = vmax.f32 %v3224, 0.0
      %v3237 = vmax.f32 %v3227, 0.0
      %v3238 = vmax.f32 %v3229, 0.0
      %s3239 = scalar_lea.vmem %s499, 224
      %v3240 = vld [vmem:[%s3239] sm:$0xf]
      %v3241 = vld [vmem:[%s3239 + $0x4] sm:$0xf]
      %v3242 = vld [vmem:[%s3239 + $0x8] sm:$0xf]
      %v3243 = vld [vmem:[%s3239 + $0xc] sm:$0xf]
      %v3244 = vld [vmem:[%s3239 + $0x10] sm:$0xf]
      %v3245 = vld [vmem:[%s3239 + $0x14] sm:$0xf]
      %v3246 = vld [vmem:[%s3239 + $0x18] sm:$0xf]
      %v3247 = vld [vmem:[%s3239 + $0x1c] sm:$0xf]
      %v3248 = vpack.c.bf16 %v3232, %v3231
      %v3249 = vpack.c.bf16 %v3234, %v3233
      %v3250 = vpack.c.bf16 %v3236, %v3235
      %v3251 = vpack.c.bf16 %v3238, %v3237
      %s3252 = scalar_lea.vmem %s504, 448
      %v3253 = vld [vmem:[%s3252] sm:$0xff]
      %v3254 = vld [vmem:[%s3252 + $0x8] sm:$0xff]
      %v3255 = vld [vmem:[%s3252 + $0x10] sm:$0xff]
      %v3256 = vld [vmem:[%s3252 + $0x18] sm:$0xff]
      %v3257 = vld [vmem:[%s3252 + $0x20] sm:$0xff]
      %v3258 = vld [vmem:[%s3252 + $0x28] sm:$0xff]
      %v3259 = vld [vmem:[%s3252 + $0x30] sm:$0xff]
      %v3260 = vld [vmem:[%s3252 + $0x38] sm:$0xff]
      %3262 = vset.pattern.permute.xlu0 0
      %3263 = vperm.xlu0 %3262, %v3253
      %v3264 = vpop.permute.xlu0 %3263
      %3267 = vset.pattern.permute.xlu0 0
      %3268 = vperm.xlu0 %3267, %v3254
      %v3269 = vpop.permute.xlu0 %3268
      %3272 = vset.pattern.permute.xlu0 0
      %3273 = vperm.xlu0 %3272, %v3255
      %v3274 = vpop.permute.xlu0 %3273
      %3277 = vset.pattern.permute.xlu0 0
      %3278 = vperm.xlu0 %3277, %v3256
      %v3279 = vpop.permute.xlu0 %3278
      %3282 = vset.pattern.permute.xlu0 0
      %3283 = vperm.xlu0 %3282, %v3257
      %v3284 = vpop.permute.xlu0 %3283
      %3287 = vset.pattern.permute.xlu0 0
      %3288 = vperm.xlu0 %3287, %v3258
      %v3289 = vpop.permute.xlu0 %3288
      %3292 = vset.pattern.permute.xlu0 0
      %3293 = vperm.xlu0 %3292, %v3259
      %v3294 = vpop.permute.xlu0 %3293
      %3297 = vset.pattern.permute.xlu0 0
      %3298 = vperm.xlu0 %3297, %v3260
      %v3299 = vpop.permute.xlu0 %3298
      %v3309 = vunpack.c.l.b16 %v3240
      %v3310 = vunpack.c.l.b16 %v3241
      %v3311 = vunpack.c.l.b16 %v3242
      %v3312 = vunpack.c.l.b16 %v3243
      %v3313 = vunpack.c.l.b16 %v3244
      %v3314 = vunpack.c.l.b16 %v3245
      %v3315 = vunpack.c.l.b16 %v3246
      %v3316 = vunpack.c.l.b16 %v3247
      %v3317 = vpack.c.b16 %v3310, %v3309
      %v3318 = vpack.c.b16 %v3312, %v3311
      %v3319 = vpack.c.b16 %v3314, %v3313
      %v3320 = vpack.c.b16 %v3316, %v3315
      %v3322 = vsel %vm844, %v3317, 0
      %v3325 = vsel %vm844, %v3318, 0
      %v3328 = vsel %vm844, %v3319, 0
      %v3331 = vsel %vm844, %v3320, 0
      %3333 = vmatpush.bf16.msra.mxu0 0
      %3334 = vmatpush.bf16.msra.mxu0 0
      %3335 = vmatpush.bf16.msra.mxu0 0
      %3336 = vmatpush.bf16.msra.mxu0 0
      %3337 = vmatpush.bf16.msra.mxu0 %v3251
      %3338 = vmatpush.bf16.msra.mxu0 %v3250
      %3339 = vmatpush.bf16.msra.mxu0 %v3249
      %3340 = vmatpush.bf16.msra.mxu0 %v3248
      %3341 = vmatmul.bf16.gmra.mxu0 %v3322
      %v3342 = vpop.f32.mrf.mxu0
      %v3343 = vadd.f32 %v3264, %v3342
      %v3344 = vpop.f32.mrf.mxu0
      %v3345 = vadd.f32 %v3269, %v3344
      %3346 = vmatmul.bf16.gmra.mxu0 %v3325
      %v3347 = vpop.f32.mrf.mxu0
      %v3348 = vadd.f32 %v3274, %v3347
      %v3349 = vpop.f32.mrf.mxu0
      %v3350 = vadd.f32 %v3279, %v3349
      %3351 = vmatmul.bf16.gmra.mxu0 %v3328
      %v3352 = vpop.f32.mrf.mxu0
      %v3353 = vadd.f32 %v3284, %v3352
      %v3354 = vpop.f32.mrf.mxu0
      %v3355 = vadd.f32 %v3289, %v3354
      %3356 = vmatmul.bf16.gmra.mxu0 %v3331
      %v3357 = vpop.f32.mrf.mxu0
      %v3358 = vadd.f32 %v3294, %v3357
      %v3359 = vpop.f32.mrf.mxu0
      %v3360 = vadd.f32 %v3299, %v3359
      %3361 = vdwg.mxu0
      %v3362 = vadd.f32 %v3100, %v3343
      %v3363 = vadd.f32 %v3101, %v3345
      %v3364 = vadd.f32 %v3102, %v3348
      %v3365 = vadd.f32 %v3103, %v3350
      %v3366 = vadd.f32 %v3104, %v3353
      %v3367 = vadd.f32 %v3105, %v3355
      %v3368 = vadd.f32 %v3106, %v3358
      %v3369 = vadd.f32 %v3107, %v3360
      %v3370 = vsel %vm677, %v3362, 0.0
      %v3371 = vsel %vm677, %v3363, 0.0
      %v3372 = vsel %vm677, %v3364, 0.0
      %v3373 = vsel %vm677, %v3365, 0.0
      %v3374 = vsel %vm677, %v3366, 0.0
      %v3375 = vsel %vm677, %v3367, 0.0
      %v3376 = vsel %vm677, %v3368, 0.0
      %v3377 = vsel %vm677, %v3369, 0.0
      %s3378 = scalar_lea.vmem %s489, 256
      %v3379 = vld [vmem:[%s3378] sm:$0xf]
      %v3380 = vld [vmem:[%s3378 + $0x4] sm:$0xf]
      %v3381 = vld [vmem:[%s3378 + $0x8] sm:$0xf]
      %v3382 = vld [vmem:[%s3378 + $0xc] sm:$0xf]
      %v3383 = vld [vmem:[%s3378 + $0x10] sm:$0xf]
      %v3384 = vld [vmem:[%s3378 + $0x14] sm:$0xf]
      %v3385 = vld [vmem:[%s3378 + $0x18] sm:$0xf]
      %v3386 = vld [vmem:[%s3378 + $0x1c] sm:$0xf]
      %v3387 = vpack.c.bf16 %v3371, %v3370
      %v3388 = vpack.c.bf16 %v3373, %v3372
      %v3389 = vpack.c.bf16 %v3375, %v3374
      %v3390 = vpack.c.bf16 %v3377, %v3376
      %s3391 = scalar_lea.vmem %s494, 512
      %v3392 = vld [vmem:[%s3391] sm:$0xff]
      %v3393 = vld [vmem:[%s3391 + $0x8] sm:$0xff]
      %v3394 = vld [vmem:[%s3391 + $0x10] sm:$0xff]
      %v3395 = vld [vmem:[%s3391 + $0x18] sm:$0xff]
      %v3396 = vld [vmem:[%s3391 + $0x20] sm:$0xff]
      %v3397 = vld [vmem:[%s3391 + $0x28] sm:$0xff]
      %v3398 = vld [vmem:[%s3391 + $0x30] sm:$0xff]
      %v3399 = vld [vmem:[%s3391 + $0x38] sm:$0xff]
      %3401 = vset.pattern.permute.xlu0 0
      %3402 = vperm.xlu0 %3401, %v3392
      %v3403 = vpop.permute.xlu0 %3402
      %3406 = vset.pattern.permute.xlu0 0
      %3407 = vperm.xlu0 %3406, %v3393
      %v3408 = vpop.permute.xlu0 %3407
      %3411 = vset.pattern.permute.xlu0 0
      %3412 = vperm.xlu0 %3411, %v3394
      %v3413 = vpop.permute.xlu0 %3412
      %3416 = vset.pattern.permute.xlu0 0
      %3417 = vperm.xlu0 %3416, %v3395
      %v3418 = vpop.permute.xlu0 %3417
      %3421 = vset.pattern.permute.xlu0 0
      %3422 = vperm.xlu0 %3421, %v3396
      %v3423 = vpop.permute.xlu0 %3422
      %3426 = vset.pattern.permute.xlu0 0
      %3427 = vperm.xlu0 %3426, %v3397
      %v3428 = vpop.permute.xlu0 %3427
      %3431 = vset.pattern.permute.xlu0 0
      %3432 = vperm.xlu0 %3431, %v3398
      %v3433 = vpop.permute.xlu0 %3432
      %3436 = vset.pattern.permute.xlu0 0
      %3437 = vperm.xlu0 %3436, %v3399
      %v3438 = vpop.permute.xlu0 %3437
      %v3448 = vunpack.c.l.b16 %v3379
      %v3449 = vunpack.c.l.b16 %v3380
      %v3450 = vunpack.c.l.b16 %v3381
      %v3451 = vunpack.c.l.b16 %v3382
      %v3452 = vunpack.c.l.b16 %v3383
      %v3453 = vunpack.c.l.b16 %v3384
      %v3454 = vunpack.c.l.b16 %v3385
      %v3455 = vunpack.c.l.b16 %v3386
      %v3456 = vpack.c.b16 %v3449, %v3448
      %v3457 = vpack.c.b16 %v3451, %v3450
      %v3458 = vpack.c.b16 %v3453, %v3452
      %v3459 = vpack.c.b16 %v3455, %v3454
      %v3461 = vsel %vm844, %v3456, 0
      %v3464 = vsel %vm844, %v3457, 0
      %v3467 = vsel %vm844, %v3458, 0
      %v3470 = vsel %vm844, %v3459, 0
      %3472 = vmatpush.bf16.msra.mxu0 0
      %3473 = vmatpush.bf16.msra.mxu0 0
      %3474 = vmatpush.bf16.msra.mxu0 0
      %3475 = vmatpush.bf16.msra.mxu0 0
      %3476 = vmatpush.bf16.msra.mxu0 %v3390
      %3477 = vmatpush.bf16.msra.mxu0 %v3389
      %3478 = vmatpush.bf16.msra.mxu0 %v3388
      %3479 = vmatpush.bf16.msra.mxu0 %v3387
      %3480 = vmatmul.bf16.gmra.mxu0 %v3461
      %v3481 = vpop.f32.mrf.mxu0
      %v3482 = vadd.f32 %v3403, %v3481
      %v3483 = vpop.f32.mrf.mxu0
      %v3484 = vadd.f32 %v3408, %v3483
      %3485 = vmatmul.bf16.gmra.mxu0 %v3464
      %v3486 = vpop.f32.mrf.mxu0
      %v3487 = vadd.f32 %v3413, %v3486
      %v3488 = vpop.f32.mrf.mxu0
      %v3489 = vadd.f32 %v3418, %v3488
      %3490 = vmatmul.bf16.gmra.mxu0 %v3467
      %v3491 = vpop.f32.mrf.mxu0
      %v3492 = vadd.f32 %v3423, %v3491
      %v3493 = vpop.f32.mrf.mxu0
      %v3494 = vadd.f32 %v3428, %v3493
      %3495 = vmatmul.bf16.gmra.mxu0 %v3470
      %v3496 = vpop.f32.mrf.mxu0
      %v3497 = vadd.f32 %v3433, %v3496
      %v3498 = vpop.f32.mrf.mxu0
      %v3499 = vadd.f32 %v3438, %v3498
      %3500 = vdwg.mxu0
      %v3501 = vmax.f32 %v3482, 0.0
      %v3502 = vmax.f32 %v3484, 0.0
      %v3503 = vmax.f32 %v3487, 0.0
      %v3504 = vmax.f32 %v3489, 0.0
      %v3505 = vmax.f32 %v3492, 0.0
      %v3506 = vmax.f32 %v3494, 0.0
      %v3507 = vmax.f32 %v3497, 0.0
      %v3508 = vmax.f32 %v3499, 0.0
      %s3509 = scalar_lea.vmem %s499, 256
      %v3510 = vld [vmem:[%s3509] sm:$0xf]
      %v3511 = vld [vmem:[%s3509 + $0x4] sm:$0xf]
      %v3512 = vld [vmem:[%s3509 + $0x8] sm:$0xf]
      %v3513 = vld [vmem:[%s3509 + $0xc] sm:$0xf]
      %v3514 = vld [vmem:[%s3509 + $0x10] sm:$0xf]
      %v3515 = vld [vmem:[%s3509 + $0x14] sm:$0xf]
      %v3516 = vld [vmem:[%s3509 + $0x18] sm:$0xf]
      %v3517 = vld [vmem:[%s3509 + $0x1c] sm:$0xf]
      %v3518 = vpack.c.bf16 %v3502, %v3501
      %v3519 = vpack.c.bf16 %v3504, %v3503
      %v3520 = vpack.c.bf16 %v3506, %v3505
      %v3521 = vpack.c.bf16 %v3508, %v3507
      %s3522 = scalar_lea.vmem %s504, 512
      %v3523 = vld [vmem:[%s3522] sm:$0xff]
      %v3524 = vld [vmem:[%s3522 + $0x8] sm:$0xff]
      %v3525 = vld [vmem:[%s3522 + $0x10] sm:$0xff]
      %v3526 = vld [vmem:[%s3522 + $0x18] sm:$0xff]
      %v3527 = vld [vmem:[%s3522 + $0x20] sm:$0xff]
      %v3528 = vld [vmem:[%s3522 + $0x28] sm:$0xff]
      %v3529 = vld [vmem:[%s3522 + $0x30] sm:$0xff]
      %v3530 = vld [vmem:[%s3522 + $0x38] sm:$0xff]
      %3532 = vset.pattern.permute.xlu0 0
      %3533 = vperm.xlu0 %3532, %v3523
      %v3534 = vpop.permute.xlu0 %3533
      %3537 = vset.pattern.permute.xlu0 0
      %3538 = vperm.xlu0 %3537, %v3524
      %v3539 = vpop.permute.xlu0 %3538
      %3542 = vset.pattern.permute.xlu0 0
      %3543 = vperm.xlu0 %3542, %v3525
      %v3544 = vpop.permute.xlu0 %3543
      %3547 = vset.pattern.permute.xlu0 0
      %3548 = vperm.xlu0 %3547, %v3526
      %v3549 = vpop.permute.xlu0 %3548
      %3552 = vset.pattern.permute.xlu0 0
      %3553 = vperm.xlu0 %3552, %v3527
      %v3554 = vpop.permute.xlu0 %3553
      %3557 = vset.pattern.permute.xlu0 0
      %3558 = vperm.xlu0 %3557, %v3528
      %v3559 = vpop.permute.xlu0 %3558
      %3562 = vset.pattern.permute.xlu0 0
      %3563 = vperm.xlu0 %3562, %v3529
      %v3564 = vpop.permute.xlu0 %3563
      %3567 = vset.pattern.permute.xlu0 0
      %3568 = vperm.xlu0 %3567, %v3530
      %v3569 = vpop.permute.xlu0 %3568
      %v3579 = vunpack.c.l.b16 %v3510
      %v3580 = vunpack.c.l.b16 %v3511
      %v3581 = vunpack.c.l.b16 %v3512
      %v3582 = vunpack.c.l.b16 %v3513
      %v3583 = vunpack.c.l.b16 %v3514
      %v3584 = vunpack.c.l.b16 %v3515
      %v3585 = vunpack.c.l.b16 %v3516
      %v3586 = vunpack.c.l.b16 %v3517
      %v3587 = vpack.c.b16 %v3580, %v3579
      %v3588 = vpack.c.b16 %v3582, %v3581
      %v3589 = vpack.c.b16 %v3584, %v3583
      %v3590 = vpack.c.b16 %v3586, %v3585
      %v3592 = vsel %vm844, %v3587, 0
      %v3595 = vsel %vm844, %v3588, 0
      %v3598 = vsel %vm844, %v3589, 0
      %v3601 = vsel %vm844, %v3590, 0
      %3603 = vmatpush.bf16.msra.mxu0 0
      %3604 = vmatpush.bf16.msra.mxu0 0
      %3605 = vmatpush.bf16.msra.mxu0 0
      %3606 = vmatpush.bf16.msra.mxu0 0
      %3607 = vmatpush.bf16.msra.mxu0 %v3521
      %3608 = vmatpush.bf16.msra.mxu0 %v3520
      %3609 = vmatpush.bf16.msra.mxu0 %v3519
      %3610 = vmatpush.bf16.msra.mxu0 %v3518
      %3611 = vmatmul.bf16.gmra.mxu0 %v3592
      %v3612 = vpop.f32.mrf.mxu0
      %v3613 = vadd.f32 %v3534, %v3612
      %v3614 = vpop.f32.mrf.mxu0
      %v3615 = vadd.f32 %v3539, %v3614
      %3616 = vmatmul.bf16.gmra.mxu0 %v3595
      %v3617 = vpop.f32.mrf.mxu0
      %v3618 = vadd.f32 %v3544, %v3617
      %v3619 = vpop.f32.mrf.mxu0
      %v3620 = vadd.f32 %v3549, %v3619
      %3621 = vmatmul.bf16.gmra.mxu0 %v3598
      %v3622 = vpop.f32.mrf.mxu0
      %v3623 = vadd.f32 %v3554, %v3622
      %v3624 = vpop.f32.mrf.mxu0
      %v3625 = vadd.f32 %v3559, %v3624
      %3626 = vmatmul.bf16.gmra.mxu0 %v3601
      %v3627 = vpop.f32.mrf.mxu0
      %v3628 = vadd.f32 %v3564, %v3627
      %v3629 = vpop.f32.mrf.mxu0
      %v3630 = vadd.f32 %v3569, %v3629
      %3631 = vdwg.mxu0
      %v3632 = vadd.f32 %v3370, %v3613
      %v3633 = vadd.f32 %v3371, %v3615
      %v3634 = vadd.f32 %v3372, %v3618
      %v3635 = vadd.f32 %v3373, %v3620
      %v3636 = vadd.f32 %v3374, %v3623
      %v3637 = vadd.f32 %v3375, %v3625
      %v3638 = vadd.f32 %v3376, %v3628
      %v3639 = vadd.f32 %v3377, %v3630
      %v3640 = vsel %vm677, %v3632, 0.0
      %v3641 = vsel %vm677, %v3633, 0.0
      %v3642 = vsel %vm677, %v3634, 0.0
      %v3643 = vsel %vm677, %v3635, 0.0
      %v3644 = vsel %vm677, %v3636, 0.0
      %v3645 = vsel %vm677, %v3637, 0.0
      %v3646 = vsel %vm677, %v3638, 0.0
      %v3647 = vsel %vm677, %v3639, 0.0
      %s3648 = scalar_lea.vmem %s489, 288
      %v3649 = vld [vmem:[%s3648] sm:$0xf]
      %v3650 = vld [vmem:[%s3648 + $0x4] sm:$0xf]
      %v3651 = vld [vmem:[%s3648 + $0x8] sm:$0xf]
      %v3652 = vld [vmem:[%s3648 + $0xc] sm:$0xf]
      %v3653 = vld [vmem:[%s3648 + $0x10] sm:$0xf]
      %v3654 = vld [vmem:[%s3648 + $0x14] sm:$0xf]
      %v3655 = vld [vmem:[%s3648 + $0x18] sm:$0xf]
      %v3656 = vld [vmem:[%s3648 + $0x1c] sm:$0xf]
      %v3657 = vpack.c.bf16 %v3641, %v3640
      %v3658 = vpack.c.bf16 %v3643, %v3642
      %v3659 = vpack.c.bf16 %v3645, %v3644
      %v3660 = vpack.c.bf16 %v3647, %v3646
      %s3661 = scalar_lea.vmem %s494, 576
      %v3662 = vld [vmem:[%s3661] sm:$0xff]
      %v3663 = vld [vmem:[%s3661 + $0x8] sm:$0xff]
      %v3664 = vld [vmem:[%s3661 + $0x10] sm:$0xff]
      %v3665 = vld [vmem:[%s3661 + $0x18] sm:$0xff]
      %v3666 = vld [vmem:[%s3661 + $0x20] sm:$0xff]
      %v3667 = vld [vmem:[%s3661 + $0x28] sm:$0xff]
      %v3668 = vld [vmem:[%s3661 + $0x30] sm:$0xff]
      %v3669 = vld [vmem:[%s3661 + $0x38] sm:$0xff]
      %3671 = vset.pattern.permute.xlu0 0
      %3672 = vperm.xlu0 %3671, %v3662
      %v3673 = vpop.permute.xlu0 %3672
      %3676 = vset.pattern.permute.xlu0 0
      %3677 = vperm.xlu0 %3676, %v3663
      %v3678 = vpop.permute.xlu0 %3677
      %3681 = vset.pattern.permute.xlu0 0
      %3682 = vperm.xlu0 %3681, %v3664
      %v3683 = vpop.permute.xlu0 %3682
      %3686 = vset.pattern.permute.xlu0 0
      %3687 = vperm.xlu0 %3686, %v3665
      %v3688 = vpop.permute.xlu0 %3687
      %3691 = vset.pattern.permute.xlu0 0
      %3692 = vperm.xlu0 %3691, %v3666
      %v3693 = vpop.permute.xlu0 %3692
      %3696 = vset.pattern.permute.xlu0 0
      %3697 = vperm.xlu0 %3696, %v3667
      %v3698 = vpop.permute.xlu0 %3697
      %3701 = vset.pattern.permute.xlu0 0
      %3702 = vperm.xlu0 %3701, %v3668
      %v3703 = vpop.permute.xlu0 %3702
      %3706 = vset.pattern.permute.xlu0 0
      %3707 = vperm.xlu0 %3706, %v3669
      %v3708 = vpop.permute.xlu0 %3707
      %v3718 = vunpack.c.l.b16 %v3649
      %v3719 = vunpack.c.l.b16 %v3650
      %v3720 = vunpack.c.l.b16 %v3651
      %v3721 = vunpack.c.l.b16 %v3652
      %v3722 = vunpack.c.l.b16 %v3653
      %v3723 = vunpack.c.l.b16 %v3654
      %v3724 = vunpack.c.l.b16 %v3655
      %v3725 = vunpack.c.l.b16 %v3656
      %v3726 = vpack.c.b16 %v3719, %v3718
      %v3727 = vpack.c.b16 %v3721, %v3720
      %v3728 = vpack.c.b16 %v3723, %v3722
      %v3729 = vpack.c.b16 %v3725, %v3724
      %v3731 = vsel %vm844, %v3726, 0
      %v3734 = vsel %vm844, %v3727, 0
      %v3737 = vsel %vm844, %v3728, 0
      %v3740 = vsel %vm844, %v3729, 0
      %3742 = vmatpush.bf16.msra.mxu0 0
      %3743 = vmatpush.bf16.msra.mxu0 0
      %3744 = vmatpush.bf16.msra.mxu0 0
      %3745 = vmatpush.bf16.msra.mxu0 0
      %3746 = vmatpush.bf16.msra.mxu0 %v3660
      %3747 = vmatpush.bf16.msra.mxu0 %v3659
      %3748 = vmatpush.bf16.msra.mxu0 %v3658
      %3749 = vmatpush.bf16.msra.mxu0 %v3657
      %3750 = vmatmul.bf16.gmra.mxu0 %v3731
      %v3751 = vpop.f32.mrf.mxu0
      %v3752 = vadd.f32 %v3673, %v3751
      %v3753 = vpop.f32.mrf.mxu0
      %v3754 = vadd.f32 %v3678, %v3753
      %3755 = vmatmul.bf16.gmra.mxu0 %v3734
      %v3756 = vpop.f32.mrf.mxu0
      %v3757 = vadd.f32 %v3683, %v3756
      %v3758 = vpop.f32.mrf.mxu0
      %v3759 = vadd.f32 %v3688, %v3758
      %3760 = vmatmul.bf16.gmra.mxu0 %v3737
      %v3761 = vpop.f32.mrf.mxu0
      %v3762 = vadd.f32 %v3693, %v3761
      %v3763 = vpop.f32.mrf.mxu0
      %v3764 = vadd.f32 %v3698, %v3763
      %3765 = vmatmul.bf16.gmra.mxu0 %v3740
      %v3766 = vpop.f32.mrf.mxu0
      %v3767 = vadd.f32 %v3703, %v3766
      %v3768 = vpop.f32.mrf.mxu0
      %v3769 = vadd.f32 %v3708, %v3768
      %3770 = vdwg.mxu0
      %v3771 = vmax.f32 %v3752, 0.0
      %v3772 = vmax.f32 %v3754, 0.0
      %v3773 = vmax.f32 %v3757, 0.0
      %v3774 = vmax.f32 %v3759, 0.0
      %v3775 = vmax.f32 %v3762, 0.0
      %v3776 = vmax.f32 %v3764, 0.0
      %v3777 = vmax.f32 %v3767, 0.0
      %v3778 = vmax.f32 %v3769, 0.0
      %s3779 = scalar_lea.vmem %s499, 288
      %v3780 = vld [vmem:[%s3779] sm:$0xf]
      %v3781 = vld [vmem:[%s3779 + $0x4] sm:$0xf]
      %v3782 = vld [vmem:[%s3779 + $0x8] sm:$0xf]
      %v3783 = vld [vmem:[%s3779 + $0xc] sm:$0xf]
      %v3784 = vld [vmem:[%s3779 + $0x10] sm:$0xf]
      %v3785 = vld [vmem:[%s3779 + $0x14] sm:$0xf]
      %v3786 = vld [vmem:[%s3779 + $0x18] sm:$0xf]
      %v3787 = vld [vmem:[%s3779 + $0x1c] sm:$0xf]
      %v3788 = vpack.c.bf16 %v3772, %v3771
      %v3789 = vpack.c.bf16 %v3774, %v3773
      %v3790 = vpack.c.bf16 %v3776, %v3775
      %v3791 = vpack.c.bf16 %v3778, %v3777
      %s3792 = scalar_lea.vmem %s504, 576
      %v3793 = vld [vmem:[%s3792] sm:$0xff]
      %v3794 = vld [vmem:[%s3792 + $0x8] sm:$0xff]
      %v3795 = vld [vmem:[%s3792 + $0x10] sm:$0xff]
      %v3796 = vld [vmem:[%s3792 + $0x18] sm:$0xff]
      %v3797 = vld [vmem:[%s3792 + $0x20] sm:$0xff]
      %v3798 = vld [vmem:[%s3792 + $0x28] sm:$0xff]
      %v3799 = vld [vmem:[%s3792 + $0x30] sm:$0xff]
      %v3800 = vld [vmem:[%s3792 + $0x38] sm:$0xff]
      %3802 = vset.pattern.permute.xlu0 0
      %3803 = vperm.xlu0 %3802, %v3793
      %v3804 = vpop.permute.xlu0 %3803
      %3807 = vset.pattern.permute.xlu0 0
      %3808 = vperm.xlu0 %3807, %v3794
      %v3809 = vpop.permute.xlu0 %3808
      %3812 = vset.pattern.permute.xlu0 0
      %3813 = vperm.xlu0 %3812, %v3795
      %v3814 = vpop.permute.xlu0 %3813
      %3817 = vset.pattern.permute.xlu0 0
      %3818 = vperm.xlu0 %3817, %v3796
      %v3819 = vpop.permute.xlu0 %3818
      %3822 = vset.pattern.permute.xlu0 0
      %3823 = vperm.xlu0 %3822, %v3797
      %v3824 = vpop.permute.xlu0 %3823
      %3827 = vset.pattern.permute.xlu0 0
      %3828 = vperm.xlu0 %3827, %v3798
      %v3829 = vpop.permute.xlu0 %3828
      %3832 = vset.pattern.permute.xlu0 0
      %3833 = vperm.xlu0 %3832, %v3799
      %v3834 = vpop.permute.xlu0 %3833
      %3837 = vset.pattern.permute.xlu0 0
      %3838 = vperm.xlu0 %3837, %v3800
      %v3839 = vpop.permute.xlu0 %3838
      %v3849 = vunpack.c.l.b16 %v3780
      %v3850 = vunpack.c.l.b16 %v3781
      %v3851 = vunpack.c.l.b16 %v3782
      %v3852 = vunpack.c.l.b16 %v3783
      %v3853 = vunpack.c.l.b16 %v3784
      %v3854 = vunpack.c.l.b16 %v3785
      %v3855 = vunpack.c.l.b16 %v3786
      %v3856 = vunpack.c.l.b16 %v3787
      %v3857 = vpack.c.b16 %v3850, %v3849
      %v3858 = vpack.c.b16 %v3852, %v3851
      %v3859 = vpack.c.b16 %v3854, %v3853
      %v3860 = vpack.c.b16 %v3856, %v3855
      %v3862 = vsel %vm844, %v3857, 0
      %v3865 = vsel %vm844, %v3858, 0
      %v3868 = vsel %vm844, %v3859, 0
      %v3871 = vsel %vm844, %v3860, 0
      %3873 = vmatpush.bf16.msra.mxu0 0
      %3874 = vmatpush.bf16.msra.mxu0 0
      %3875 = vmatpush.bf16.msra.mxu0 0
      %3876 = vmatpush.bf16.msra.mxu0 0
      %3877 = vmatpush.bf16.msra.mxu0 %v3791
      %3878 = vmatpush.bf16.msra.mxu0 %v3790
      %3879 = vmatpush.bf16.msra.mxu0 %v3789
      %3880 = vmatpush.bf16.msra.mxu0 %v3788
      %3881 = vmatmul.bf16.gmra.mxu0 %v3862
      %v3882 = vpop.f32.mrf.mxu0
      %v3883 = vadd.f32 %v3804, %v3882
      %v3884 = vpop.f32.mrf.mxu0
      %v3885 = vadd.f32 %v3809, %v3884
      %3886 = vmatmul.bf16.gmra.mxu0 %v3865
      %v3887 = vpop.f32.mrf.mxu0
      %v3888 = vadd.f32 %v3814, %v3887
      %v3889 = vpop.f32.mrf.mxu0
      %v3890 = vadd.f32 %v3819, %v3889
      %3891 = vmatmul.bf16.gmra.mxu0 %v3868
      %v3892 = vpop.f32.mrf.mxu0
      %v3893 = vadd.f32 %v3824, %v3892
      %v3894 = vpop.f32.mrf.mxu0
      %v3895 = vadd.f32 %v3829, %v3894
      %3896 = vmatmul.bf16.gmra.mxu0 %v3871
      %v3897 = vpop.f32.mrf.mxu0
      %v3898 = vadd.f32 %v3834, %v3897
      %v3899 = vpop.f32.mrf.mxu0
      %v3900 = vadd.f32 %v3839, %v3899
      %3901 = vdwg.mxu0
      %v3902 = vadd.f32 %v3640, %v3883
      %v3903 = vadd.f32 %v3641, %v3885
      %v3904 = vadd.f32 %v3642, %v3888
      %v3905 = vadd.f32 %v3643, %v3890
      %v3906 = vadd.f32 %v3644, %v3893
      %v3907 = vadd.f32 %v3645, %v3895
      %v3908 = vadd.f32 %v3646, %v3898
      %v3909 = vadd.f32 %v3647, %v3900
      %v3910 = vsel %vm677, %v3902, 0.0
      %v3911 = vsel %vm677, %v3903, 0.0
      %v3912 = vsel %vm677, %v3904, 0.0
      %v3913 = vsel %vm677, %v3905, 0.0
      %v3914 = vsel %vm677, %v3906, 0.0
      %v3915 = vsel %vm677, %v3907, 0.0
      %v3916 = vsel %vm677, %v3908, 0.0
      %v3917 = vsel %vm677, %v3909, 0.0
      %v3918 = vld [vmem:[%s509] sm:$0xf]
      %v3919 = vld [vmem:[%s509 + $0x4] sm:$0xf]
      %v3920 = vpack.c.bf16 %v3911, %v3910
      %v3921 = vpack.c.bf16 %v3913, %v3912
      %v3922 = vpack.c.bf16 %v3915, %v3914
      %v3923 = vpack.c.bf16 %v3917, %v3916
      %v3924 = vld [vmem:[%s514] sm:$0xff]
      %v3925 = vld [vmem:[%s514 + $0x8] sm:$0xff]
      %3927 = vset.pattern.permute.xlu0 0
      %3928 = vperm.xlu0 %3927, %v3924
      %v3929 = vpop.permute.xlu0 %3928
      %3932 = vset.pattern.permute.xlu0 0
      %3933 = vperm.xlu0 %3932, %v3925
      %v3934 = vpop.permute.xlu0 %3933
      %v3938 = vunpack.c.l.b16 %v3918
      %v3939 = vunpack.c.l.b16 %v3919
      %v3940 = vpack.c.b16 %v3939, %v3938
      %v3942 = vsel %vm844, %v3940, 0
      %3944 = vmatpush.bf16.msra.mxu0 0
      %3945 = vmatpush.bf16.msra.mxu0 0
      %3946 = vmatpush.bf16.msra.mxu0 0
      %3947 = vmatpush.bf16.msra.mxu0 0
      %3948 = vmatpush.bf16.msra.mxu0 %v3923
      %3949 = vmatpush.bf16.msra.mxu0 %v3922
      %3950 = vmatpush.bf16.msra.mxu0 %v3921
      %3951 = vmatpush.bf16.msra.mxu0 %v3920
      %3952 = vmatmul.bf16.gmra.mxu0 %v3942
      %v3953 = vpop.f32.mrf.mxu0
      %v3954 = vadd.f32 %v3929, %v3953
      %v3955 = vpop.f32.mrf.mxu0
      %v3956 = vadd.f32 %v3934, %v3955
      %3957 = vdwg.mxu0
      %3958 = vst [vmem:[%s519] sm:$0xff] %v3954
      %3959 = vst [vmem:[%s519 + $0x8] sm:$0xff] %v3956
      %3960 = vst [vmem:[#allocation2] sm:$0xff] %v3954
      %3961 = vst [vmem:[#allocation2 + $0x8] sm:$0xff] %v3956
      %p3962 = scmp.lt.s32.totalorder %s21, 1
      %s3963 = scalar_select %p3962, %s21, 1
      %s3964 = smul.addr %s3963, 2
      %s3965 = smul.addr %s3964, 8
      %s3966 = scalar_lea.vmem %s10, %s3965
      // Predicated region
      $region65: #{spell_forward.5} parent=59 // pred_check
        %p3967 = pneg %p294
      $region66: #{spell_forward.5} parent=59 // pred_check_branch
        %3969 = sbr.rel (%p3967) target = $region68
      $region67: #{spell_forward.5} parent=59 // pred_region
        _
      $region68: #{spell_forward.5} parent=59 // pred_fallthru
        _
    $region60: #{spell_forward.5} parent=5 // pred_fallthru
      _
    %p3970 = scmp.le.s32.totalorder 2, %s16
    // Predicated region
    $region69: #{spell_forward.5} parent=5 // pred_check
      %p3971 = pneg %p3970
    $region70: #{spell_forward.5} parent=5 // pred_check_branch
      %3973 = sbr.rel (%p3971) target = $region72
    $region71: #{spell_forward.5} parent=5 // pred_region
      %s3974 = ssub.s32 %s16, 2
      // Predicated region
      $region73: #{spell_forward.5} parent=71 // pred_check
        %p3975 = pneg %p300
      $region74: #{spell_forward.5} parent=71 // pred_check_branch
        %3977 = sbr.rel (%p3975) target = $region76
      $region75: #{spell_forward.5} parent=71 // pred_region
        %p3978 = scmp.lt.s32.totalorder %s22, 1
        %s3979 = scalar_select %p3978, %s22, 1
        %s3980 = smul.addr %s3979, 2
        %s3981 = smul.addr %s3980, 8
        %s3982 = scalar_lea.vmem %s10, %s3981
      $region76: #{spell_forward.5} parent=71 // pred_fallthru
        _
    $region72: #{spell_forward.5} parent=5 // pred_fallthru
      _
  $region6: #{spell_forward.5} parent=0 // loop_footer
    %s20 = sadd.s32 1, %s16
  $region7: #{spell_forward.5} parent=0 // loop_footer_branch
    %15 = sbr.rel target = $region3
  $region8: #{spell_forward.5} parent=0 // loop_exit
    _

</llo_original>
